<compile_context>
chip_gen: v6e
topology: v6e:2x2x1
jax: 0.10.0
libtpu: 0.0.40
codegen_flags: <defaults>
</compile_context>

<pallas_src>
import math

import jax
import jax.numpy as jnp
from jax import lax
from jax.experimental import pallas as pl
from jax.experimental.pallas import tpu as pltpu

# ----------------------------- configuration -------------------------------
B = 2          # batch
IMG = 16       # image_size
PATCH = 4      # patch_size
CIN = 4        # number_of_input_channels
D = 32         # embedding_dimension
HEADS = 4      # number_of_heads
HD = D // HEADS
MLP = 64       # mlp_dimension
DEPTH = 2      # depth
NCLASS = 8     # number_of_classes

GRID_HW = IMG // PATCH
NPATCH = GRID_HW * GRID_HW
T = NPATCH + 1              # tokens = patches + class token
BT = B * T                  # batch flattened into the matmul M dimension
CPP = CIN * PATCH * PATCH   # flattened patch feature size
F32 = jnp.float32
NEG = -1e9                  # additive mask for cross-batch attention


def gelu_exact(x):
    # nn.GELU default: exact (erf) form.
    return 0.5 * x * (1.0 + lax.erf(x / math.sqrt(2.0)))


# ------------------------------- fused kernel -------------------------------
def fused_kernel(p_ref, wp_ref, add_ref, g0_ref, mask_ref, sel_ref,
                 wqkv_ref, bqkv_ref, wo_ref, gvec_ref, w1_ref, b1_ref,
                 w2_ref, wc_ref, bc_ref, o_ref):
    # ---- patch embedding + class token + positional embedding + TanhGate ----
    # p_ref: (BT, CPP) patches with a zero row at each batch's CLS slot.
    # add_ref row b*T+0 = class_token + pos[0]; rows b*T+t = conv_bias + pos[t].
    emb = jnp.dot(p_ref[...], wp_ref[...],
                  preferred_element_type=jnp.float32) + add_ref[...]
    a0 = g0_ref[0:1, :]
    b0 = g0_ref[1:2, :]
    tokens = a0 * jnp.tanh(emb) + b0                       # (BT, D)

    mask = mask_ref[...]                                   # (BT, BT) block-diag

    x = tokens
    for d in range(DEPTH):                                 # static, DEPTH = 2
        wqkv = wqkv_ref[d]                                 # (D, 3D), scale folded
        bqkv = bqkv_ref[d]                                 # (1, 3D)
        wo = wo_ref[d]                                     # (D, D)
        gv = gvec_ref[d]                                   # (6, D)
        bo, a1, be1 = gv[0:1, :], gv[1:2, :], gv[2:3, :]
        b2, a2, be2 = gv[3:4, :], gv[4:5, :], gv[5:6, :]
        w1 = w1_ref[d]                                     # (D, MLP)
        b1 = b1_ref[d]                                     # (1, MLP)
        w2 = w2_ref[d]                                     # (MLP, D)

        # SelfAttentionBlock: same TanhGate before and after attention.
        nx = a1 * jnp.tanh(x) + be1
        qkv = jnp.dot(nx, wqkv, preferred_element_type=jnp.float32) + bqkv
        q = qkv[:, :D]                                     # 1/sqrt(HD) pre-folded
        k = qkv[:, D:2 * D]
        v = qkv[:, 2 * D:]

        o_heads = []
        for h in range(HEADS):                             # static unroll (4)
            c0 = h * HD
            qh = q[:, c0:c0 + HD]
            kh = k[:, c0:c0 + HD]
            vh = v[:, c0:c0 + HD]
            s = lax.dot_general(qh, kh, (((1,), (1,)), ((), ())),
                                preferred_element_type=jnp.float32) + mask
            s = s - jnp.max(s, axis=-1, keepdims=True)
            pr = jnp.exp(s)
            pr = pr * pl.reciprocal(jnp.sum(pr, axis=-1, keepdims=True),
                                    approx=True)
            o_heads.append(jnp.dot(pr, vh,
                                   preferred_element_type=jnp.float32))
        o_cat = jnp.concatenate(o_heads, axis=-1)          # (BT, D)

        attn = jnp.dot(o_cat, wo, preferred_element_type=jnp.float32) + bo
        attn = a1 * jnp.tanh(attn) + be1
        x1 = x + attn                                      # residual 1

        # MLPBlock: Linear -> GELU -> Linear -> TanhGate
        h1 = jnp.dot(x1, w1, preferred_element_type=jnp.float32) + b1
        h1 = gelu_exact(h1)
        y = jnp.dot(h1, w2, preferred_element_type=jnp.float32) + b2
        y = a2 * jnp.tanh(y) + be2
        x = x1 + y                                         # residual 2

    # encoder residual + CLS extraction (one-hot selector matmul) + head
    enc = tokens + x                                       # (BT, D)
    cls = jnp.dot(sel_ref[...], enc,
                  preferred_element_type=jnp.float32)      # (B, D)
    o_ref[...] = jnp.dot(cls, wc_ref[...],
                         preferred_element_type=jnp.float32) + bc_ref[...]


# ------------------------------ wrapper --------------------------------------
@jax.jit
def forward(x, pp):
    # x: (B, CIN, IMG, IMG) NCHW, like torch.
    xr = x.reshape(B, CIN, GRID_HW, PATCH, GRID_HW, PATCH)
    patches = xr.transpose(0, 2, 4, 1, 3, 5).reshape(B, NPATCH, CPP)
    paug = jnp.concatenate([jnp.zeros((B, 1, CPP), F32), patches], axis=1)
    paug = paug.reshape(BT, CPP)

    args = (paug, pp["wp"], pp["add"], pp["g0"], pp["mask"], pp["sel"],
            pp["wqkv"], pp["bqkv"], pp["wo"], pp["gvec"],
            pp["w1"], pp["b1"], pp["w2"], pp["wc"], pp["bc"])
    in_specs = [pl.BlockSpec(memory_space=pltpu.MemorySpace.VMEM)
                for _ in args]
    return pl.pallas_call(
        fused_kernel,
        out_shape=jax.ShapeDtypeStruct((B, NCLASS), F32),
        in_specs=in_specs,
        out_specs=pl.BlockSpec(memory_space=pltpu.MemorySpace.VMEM),
    )(*args)


# ------------------------------ parameters -----------------------------------
def init_params(key):
    keys = jax.random.split(key, 8 + DEPTH)
    p = {
        "conv_w": 0.1 * jax.random.normal(keys[0], (D, CIN, PATCH, PATCH), F32),
        "conv_b": 0.1 * jax.random.normal(keys[1], (D,), F32),
        "cls":    jax.random.normal(keys[2], (1, 1, D), F32),
        "pos":    jax.random.normal(keys[3], (1, T, D), F32),
        "gate0_a": jnp.ones((D,), F32),     # TanhGate init: alpha=1, beta=0
        "gate0_b": jnp.zeros((D,), F32),
        "head_w": 0.1 * jax.random.normal(keys[4], (NCLASS, D), F32),
        "head_b": 0.1 * jax.random.normal(keys[5], (NCLASS,), F32),
    }
    blocks = []
    for d in range(DEPTH):
        bk = jax.random.split(keys[8 + d], 8)
        blocks.append({
            "w_in":  0.1 * jax.random.normal(bk[0], (3 * D, D), F32),
            "b_in":  0.1 * jax.random.normal(bk[1], (3 * D,), F32),
            "w_out": 0.1 * jax.random.normal(bk[2], (D, D), F32),
            "b_out": 0.1 * jax.random.normal(bk[3], (D,), F32),
            "attn_gate_a": jnp.ones((D,), F32),
            "attn_gate_b": jnp.zeros((D,), F32),
            "mlp_w1": 0.1 * jax.random.normal(bk[4], (MLP, D), F32),
            "mlp_b1": 0.1 * jax.random.normal(bk[5], (MLP,), F32),
            "mlp_w2": 0.1 * jax.random.normal(bk[6], (D, MLP), F32),
            "mlp_b2": 0.1 * jax.random.normal(bk[7], (D,), F32),
            "mlp_gate_a": jnp.ones((D,), F32),
            "mlp_gate_b": jnp.zeros((D,), F32),
        })
    p["blocks"] = blocks
    return p


def prepare_params(p):
    """One-time parameter transform: transposes, scale folding, packing."""
    scale = 1.0 / math.sqrt(HD)

    wp = p["conv_w"].reshape(D, CPP).T                       # (CPP, D)
    pos = p["pos"][0]                                        # (T, D)
    add_row0 = (p["cls"][0, 0] + pos[0])[None, :]            # CLS + pos[0]
    add_rest = p["conv_b"][None, :] + pos[1:]                # conv bias + pos
    add = jnp.concatenate([add_row0, add_rest], axis=0)      # (T, D)
    add = jnp.tile(add, (B, 1))                              # (BT, D)
    g0 = jnp.stack([p["gate0_a"], p["gate0_b"]], axis=0)     # (2, D)

    # block-diagonal attention mask (0 within a batch, NEG across batches)
    bidx = jnp.repeat(jnp.arange(B), T)                      # (BT,)
    mask = jnp.where(bidx[:, None] == bidx[None, :], 0.0, NEG).astype(F32)
    # one-hot selector picking each batch's CLS row
    sel = (jnp.arange(BT)[None, :] == (jnp.arange(B) * T)[:, None]).astype(F32)

    wqkv_l, bqkv_l, wo_l, gvec_l, w1_l, b1_l, w2_l = [], [], [], [], [], [], []
    for blk in p["blocks"]:
        w_in, b_in = blk["w_in"], blk["b_in"]                # (3D, D), (3D,)
        wq = w_in[:D].T * scale                              # fold 1/sqrt(HD)
        wk = w_in[D:2 * D].T
        wv = w_in[2 * D:].T
        wqkv_l.append(jnp.concatenate([wq, wk, wv], axis=1))          # (D, 3D)
        bq = b_in[:D] * scale
        bqkv_l.append(jnp.concatenate([bq, b_in[D:2 * D],
                                       b_in[2 * D:]])[None, :])       # (1, 3D)
        wo_l.append(blk["w_out"].T)                                   # (D, D)
        gvec_l.append(jnp.stack([blk["b_out"], blk["attn_gate_a"],
                                 blk["attn_gate_b"], blk["mlp_b2"],
                                 blk["mlp_gate_a"], blk["mlp_gate_b"]],
                                axis=0))                              # (6, D)
        w1_l.append(blk["mlp_w1"].T)                                  # (D, MLP)
        b1_l.append(blk["mlp_b1"][None, :])                           # (1, MLP)
        w2_l.append(blk["mlp_w2"].T)                                  # (MLP, D)

    return {
        "wp": wp, "add": add, "g0": g0, "mask": mask, "sel": sel,
        "wqkv": jnp.stack(wqkv_l), "bqkv": jnp.stack(bqkv_l),
        "wo": jnp.stack(wo_l), "gvec": jnp.stack(gvec_l),
        "w1": jnp.stack(w1_l), "b1": jnp.stack(b1_l), "w2": jnp.stack(w2_l),
        "wc": p["head_w"].T, "bc": p["head_b"][None, :],
    }


# ---------------------------- pure-JAX reference ----------------------------
def reference(x, p):
    xr = x.reshape(B, CIN, GRID_HW, PATCH, GRID_HW, PATCH)
    patches = xr.transpose(0, 2, 4, 1, 3, 5).reshape(B, NPATCH, CPP)
    emb = patches @ p["conv_w"].reshape(D, CPP).T + p["conv_b"]
    cls = jnp.broadcast_to(p["cls"], (B, 1, D))
    tokens = jnp.concatenate([cls, emb], axis=1) + p["pos"]
    tokens = p["gate0_a"] * jnp.tanh(tokens) + p["gate0_b"]
    y = tokens
    for blk in p["blocks"]:
        a1, be1 = blk["attn_gate_a"], blk["attn_gate_b"]
        nx = a1 * jnp.tanh(y) + be1
        qkv = nx @ blk["w_in"].T + blk["b_in"]
        q, k, v = jnp.split(qkv, 3, axis=-1)
        qh = q.reshape(B, T, HEADS, HD).transpose(0, 2, 1, 3)
        kh = k.reshape(B, T, HEADS, HD).transpose(0, 2, 1, 3)
        vh = v.reshape(B, T, HEADS, HD).transpose(0, 2, 1, 3)
        s = jnp.einsum("bhtd,bhsd->bhts", qh, kh) / math.sqrt(HD)
        pr = jax.nn.softmax(s, axis=-1)
        o = jnp.einsum("bhts,bhsd->bhtd", pr, vh)
        o = o.transpose(0, 2, 1, 3).reshape(B, T, D)
        o = o @ blk["w_out"].T + blk["b_out"]
        o = a1 * jnp.tanh(o) + be1
        y1 = y + o
        h = gelu_exact(y1 @ blk["mlp_w1"].T + blk["mlp_b1"])
        m = h @ blk["mlp_w2"].T + blk["mlp_b2"]
        m = blk["mlp_gate_a"] * jnp.tanh(m) + blk["mlp_gate_b"]
        y = y1 + m
    enc = tokens + y
    return enc[:, 0] @ p["head_w"].T + p["head_b"]


if __name__ == "__main__":
    key = jax.random.PRNGKey(0)
    pkey, xkey = jax.random.split(key)
    params = init_params(pkey)
    packed = prepare_params(params)
    x = jax.random.normal(xkey, (B, CIN, IMG, IMG), F32)

    out = forward(x, packed)
    out = jax.block_until_ready(out)
    assert out.shape == (B, NCLASS)

    ref = reference(x, params)
    if not jnp.allclose(out, ref, atol=5e-2, rtol=5e-2):
        raise AssertionError(f"mismatch: max abs diff {jnp.max(jnp.abs(out - ref))}")

    print("KERNEL_OK")
</pallas_src>

<mosaic_0001>
module attributes {stable_mosaic.version = 11 : i64} {
  func.func @fused_kernel(%arg0: memref<34x64xf32, #tpu.memory_space<vmem>>, %arg1: memref<64x32xf32, #tpu.memory_space<vmem>>, %arg2: memref<34x32xf32, #tpu.memory_space<vmem>>, %arg3: memref<2x32xf32, #tpu.memory_space<vmem>>, %arg4: memref<34x34xf32, #tpu.memory_space<vmem>>, %arg5: memref<2x34xf32, #tpu.memory_space<vmem>>, %arg6: memref<2x32x96xf32, #tpu.memory_space<vmem>>, %arg7: memref<2x1x96xf32, #tpu.memory_space<vmem>>, %arg8: memref<2x32x32xf32, #tpu.memory_space<vmem>>, %arg9: memref<2x6x32xf32, #tpu.memory_space<vmem>>, %arg10: memref<2x32x64xf32, #tpu.memory_space<vmem>>, %arg11: memref<2x1x64xf32, #tpu.memory_space<vmem>>, %arg12: memref<2x64x32xf32, #tpu.memory_space<vmem>>, %arg13: memref<32x8xf32, #tpu.memory_space<vmem>>, %arg14: memref<1x8xf32, #tpu.memory_space<vmem>>, %arg15: memref<2x8xf32, #tpu.memory_space<vmem>>) attributes {dimension_semantics = [], scalar_prefetch = 0 : i64, scratch_operands = 0 : i64, tpu.core_type = #tpu.core_type<tc>} {
    %c0 = arith.constant 0 : index
    %c0_0 = arith.constant 0 : index
    %0 = vector.load %arg0[%c0, %c0_0] : memref<34x64xf32, #tpu.memory_space<vmem>>, vector<34x64xf32>
    %c0_1 = arith.constant 0 : index
    %c0_2 = arith.constant 0 : index
    %1 = vector.load %arg1[%c0_1, %c0_2] : memref<64x32xf32, #tpu.memory_space<vmem>>, vector<64x32xf32>
    %cst = arith.constant dense<0.000000e+00> : vector<34x32xf32>
    %2 = tpu.matmul %0, %1, %cst {dimension_numbers = #tpu.dot_dimension_numbers<[1], [0], [0], [1], [0, 0, 1, 1], [], []>} : vector<34x64xf32>, vector<64x32xf32>, vector<34x32xf32> -> vector<34x32xf32>
    %c0_3 = arith.constant 0 : index
    %c0_4 = arith.constant 0 : index
    %3 = vector.load %arg2[%c0_3, %c0_4] : memref<34x32xf32, #tpu.memory_space<vmem>>, vector<34x32xf32>
    %4 = arith.addf %2, %3 : vector<34x32xf32>
    %c0_5 = arith.constant 0 : index
    %c0_6 = arith.constant 0 : index
    %5 = vector.load %arg3[%c0_5, %c0_6] : memref<2x32xf32, #tpu.memory_space<vmem>>, vector<1x32xf32>
    %c1 = arith.constant 1 : index
    %c0_7 = arith.constant 0 : index
    %6 = vector.load %arg3[%c1, %c0_7] : memref<2x32xf32, #tpu.memory_space<vmem>>, vector<1x32xf32>
    %7 = math.tanh %4 : vector<34x32xf32>
    %8 = vector.broadcast %5 : vector<1x32xf32> to vector<34x32xf32>
    %9 = arith.mulf %8, %7 : vector<34x32xf32>
    %10 = vector.broadcast %6 : vector<1x32xf32> to vector<34x32xf32>
    %11 = arith.addf %9, %10 : vector<34x32xf32>
    %c0_8 = arith.constant 0 : index
    %c0_9 = arith.constant 0 : index
    %12 = vector.load %arg4[%c0_8, %c0_9] : memref<34x34xf32, #tpu.memory_space<vmem>>, vector<34x34xf32>
    %c0_10 = arith.constant 0 : index
    %c0_11 = arith.constant 0 : index
    %c0_12 = arith.constant 0 : index
    %13 = vector.load %arg6[%c0_10, %c0_11, %c0_12] : memref<2x32x96xf32, #tpu.memory_space<vmem>>, vector<1x32x96xf32>
    %14 = vector.shape_cast %13 : vector<1x32x96xf32> to vector<32x96xf32>
    %c0_13 = arith.constant 0 : index
    %c0_14 = arith.constant 0 : index
    %c0_15 = arith.constant 0 : index
    %15 = vector.load %arg7[%c0_13, %c0_14, %c0_15] : memref<2x1x96xf32, #tpu.memory_space<vmem>>, vector<1x1x96xf32>
    %16 = vector.shape_cast %15 : vector<1x1x96xf32> to vector<1x96xf32>
    %c0_16 = arith.constant 0 : index
    %c0_17 = arith.constant 0 : index
    %c0_18 = arith.constant 0 : index
    %17 = vector.load %arg8[%c0_16, %c0_17, %c0_18] : memref<2x32x32xf32, #tpu.memory_space<vmem>>, vector<1x32x32xf32>
    %18 = vector.shape_cast %17 : vector<1x32x32xf32> to vector<32x32xf32>
    %c0_19 = arith.constant 0 : index
    %c0_20 = arith.constant 0 : index
    %c0_21 = arith.constant 0 : index
    %19 = vector.load %arg9[%c0_19, %c0_20, %c0_21] : memref<2x6x32xf32, #tpu.memory_space<vmem>>, vector<1x6x32xf32>
    %20 = vector.shape_cast %19 : vector<1x6x32xf32> to vector<6x32xf32>
    %21 = vector.extract_strided_slice %20 {offsets = [0, 0], sizes = [1, 32], strides = [1, 1]} : vector<6x32xf32> to vector<1x32xf32>
    %22 = vector.extract_strided_slice %20 {offsets = [1, 0], sizes = [1, 32], strides = [1, 1]} : vector<6x32xf32> to vector<1x32xf32>
    %23 = vector.extract_strided_slice %20 {offsets = [2, 0], sizes = [1, 32], strides = [1, 1]} : vector<6x32xf32> to vector<1x32xf32>
    %24 = vector.extract_strided_slice %20 {offsets = [3, 0], sizes = [1, 32], strides = [1, 1]} : vector<6x32xf32> to vector<1x32xf32>
    %25 = vector.extract_strided_slice %20 {offsets = [4, 0], sizes = [1, 32], strides = [1, 1]} : vector<6x32xf32> to vector<1x32xf32>
    %26 = vector.extract_strided_slice %20 {offsets = [5, 0], sizes = [1, 32], strides = [1, 1]} : vector<6x32xf32> to vector<1x32xf32>
    %c0_22 = arith.constant 0 : index
    %c0_23 = arith.constant 0 : index
    %c0_24 = arith.constant 0 : index
    %27 = vector.load %arg10[%c0_22, %c0_23, %c0_24] : memref<2x32x64xf32, #tpu.memory_space<vmem>>, vector<1x32x64xf32>
    %28 = vector.shape_cast %27 : vector<1x32x64xf32> to vector<32x64xf32>
    %c0_25 = arith.constant 0 : index
    %c0_26 = arith.constant 0 : index
    %c0_27 = arith.constant 0 : index
    %29 = vector.load %arg11[%c0_25, %c0_26, %c0_27] : memref<2x1x64xf32, #tpu.memory_space<vmem>>, vector<1x1x64xf32>
    %30 = vector.shape_cast %29 : vector<1x1x64xf32> to vector<1x64xf32>
    %c0_28 = arith.constant 0 : index
    %c0_29 = arith.constant 0 : index
    %c0_30 = arith.constant 0 : index
    %31 = vector.load %arg12[%c0_28, %c0_29, %c0_30] : memref<2x64x32xf32, #tpu.memory_space<vmem>>, vector<1x64x32xf32>
    %32 = vector.shape_cast %31 : vector<1x64x32xf32> to vector<64x32xf32>
    %33 = math.tanh %11 : vector<34x32xf32>
    %34 = vector.broadcast %22 : vector<1x32xf32> to vector<34x32xf32>
    %35 = arith.mulf %34, %33 : vector<34x32xf32>
    %36 = vector.broadcast %23 : vector<1x32xf32> to vector<34x32xf32>
    %37 = arith.addf %35, %36 : vector<34x32xf32>
    %cst_31 = arith.constant dense<0.000000e+00> : vector<34x96xf32>
    %38 = tpu.matmul %37, %14, %cst_31 {dimension_numbers = #tpu.dot_dimension_numbers<[1], [0], [0], [1], [0, 0, 1, 1], [], []>} : vector<34x32xf32>, vector<32x96xf32>, vector<34x96xf32> -> vector<34x96xf32>
    %39 = vector.broadcast %16 : vector<1x96xf32> to vector<34x96xf32>
    %40 = arith.addf %38, %39 : vector<34x96xf32>
    %41 = vector.extract_strided_slice %40 {offsets = [0, 0], sizes = [34, 32], strides = [1, 1]} : vector<34x96xf32> to vector<34x32xf32>
    %42 = vector.extract_strided_slice %40 {offsets = [0, 32], sizes = [34, 32], strides = [1, 1]} : vector<34x96xf32> to vector<34x32xf32>
    %43 = vector.extract_strided_slice %40 {offsets = [0, 64], sizes = [34, 32], strides = [1, 1]} : vector<34x96xf32> to vector<34x32xf32>
    %44 = vector.extract_strided_slice %41 {offsets = [0, 0], sizes = [34, 8], strides = [1, 1]} : vector<34x32xf32> to vector<34x8xf32>
    %45 = vector.extract_strided_slice %42 {offsets = [0, 0], sizes = [34, 8], strides = [1, 1]} : vector<34x32xf32> to vector<34x8xf32>
    %46 = vector.extract_strided_slice %43 {offsets = [0, 0], sizes = [34, 8], strides = [1, 1]} : vector<34x32xf32> to vector<34x8xf32>
    %cst_32 = arith.constant dense<0.000000e+00> : vector<34x34xf32>
    %47 = tpu.matmul %44, %45, %cst_32 {dimension_numbers = #tpu.dot_dimension_numbers<[1], [1], [0], [0], [0, 0, 1, 0], [], []>} : vector<34x8xf32>, vector<34x8xf32>, vector<34x34xf32> -> vector<34x34xf32>
    %48 = arith.addf %47, %12 : vector<34x34xf32>
    %cst_33 = arith.constant dense<0xFF800000> : vector<34xf32>
    %49 = vector.multi_reduction <maximumf>, %48, %cst_33 [1] : vector<34x34xf32> to vector<34xf32>
    %50 = vector.shape_cast %49 : vector<34xf32> to vector<34x1xf32>
    %51 = vector.broadcast %50 : vector<34x1xf32> to vector<34x34xf32>
    %52 = arith.subf %48, %51 : vector<34x34xf32>
    %53 = math.exp %52 : vector<34x34xf32>
    %cst_34 = arith.constant dense<0.000000e+00> : vector<34xf32>
    %54 = vector.multi_reduction <add>, %53, %cst_34 [1] : vector<34x34xf32> to vector<34xf32>
    %55 = vector.shape_cast %54 : vector<34xf32> to vector<34x1xf32>
    %56 = tpu.reciprocal %55 {approx = true} : vector<34x1xf32> -> vector<34x1xf32>
    %57 = vector.broadcast %56 : vector<34x1xf32> to vector<34x34xf32>
    %58 = arith.mulf %53, %57 : vector<34x34xf32>
    %cst_35 = arith.constant dense<0.000000e+00> : vector<34x8xf32>
    %59 = tpu.matmul %58, %46, %cst_35 {dimension_numbers = #tpu.dot_dimension_numbers<[1], [0], [0], [1], [0, 0, 1, 1], [], []>} : vector<34x34xf32>, vector<34x8xf32>, vector<34x8xf32> -> vector<34x8xf32>
    %60 = vector.extract_strided_slice %41 {offsets = [0, 8], sizes = [34, 8], strides = [1, 1]} : vector<34x32xf32> to vector<34x8xf32>
    %61 = vector.extract_strided_slice %42 {offsets = [0, 8], sizes = [34, 8], strides = [1, 1]} : vector<34x32xf32> to vector<34x8xf32>
    %62 = vector.extract_strided_slice %43 {offsets = [0, 8], sizes = [34, 8], strides = [1, 1]} : vector<34x32xf32> to vector<34x8xf32>
    %cst_36 = arith.constant dense<0.000000e+00> : vector<34x34xf32>
    %63 = tpu.matmul %60, %61, %cst_36 {dimension_numbers = #tpu.dot_dimension_numbers<[1], [1], [0], [0], [0, 0, 1, 0], [], []>} : vector<34x8xf32>, vector<34x8xf32>, vector<34x34xf32> -> vector<34x34xf32>
    %64 = arith.addf %63, %12 : vector<34x34xf32>
    %cst_37 = arith.constant dense<0xFF800000> : vector<34xf32>
    %65 = vector.multi_reduction <maximumf>, %64, %cst_37 [1] : vector<34x34xf32> to vector<34xf32>
    %66 = vector.shape_cast %65 : vector<34xf32> to vector<34x1xf32>
    %67 = vector.broadcast %66 : vector<34x1xf32> to vector<34x34xf32>
    %68 = arith.subf %64, %67 : vector<34x34xf32>
    %69 = math.exp %68 : vector<34x34xf32>
    %cst_38 = arith.constant dense<0.000000e+00> : vector<34xf32>
    %70 = vector.multi_reduction <add>, %69, %cst_38 [1] : vector<34x34xf32> to vector<34xf32>
    %71 = vector.shape_cast %70 : vector<34xf32> to vector<34x1xf32>
    %72 = tpu.reciprocal %71 {approx = true} : vector<34x1xf32> -> vector<34x1xf32>
    %73 = vector.broadcast %72 : vector<34x1xf32> to vector<34x34xf32>
    %74 = arith.mulf %69, %73 : vector<34x34xf32>
    %cst_39 = arith.constant dense<0.000000e+00> : vector<34x8xf32>
    %75 = tpu.matmul %74, %62, %cst_39 {dimension_numbers = #tpu.dot_dimension_numbers<[1], [0], [0], [1], [0, 0, 1, 1], [], []>} : vector<34x34xf32>, vector<34x8xf32>, vector<34x8xf32> -> vector<34x8xf32>
    %76 = vector.extract_strided_slice %41 {offsets = [0, 16], sizes = [34, 8], strides = [1, 1]} : vector<34x32xf32> to vector<34x8xf32>
    %77 = vector.extract_strided_slice %42 {offsets = [0, 16], sizes = [34, 8], strides = [1, 1]} : vector<34x32xf32> to vector<34x8xf32>
    %78 = vector.extract_strided_slice %43 {offsets = [0, 16], sizes = [34, 8], strides = [1, 1]} : vector<34x32xf32> to vector<34x8xf32>
    %cst_40 = arith.constant dense<0.000000e+00> : vector<34x34xf32>
    %79 = tpu.matmul %76, %77, %cst_40 {dimension_numbers = #tpu.dot_dimension_numbers<[1], [1], [0], [0], [0, 0, 1, 0], [], []>} : vector<34x8xf32>, vector<34x8xf32>, vector<34x34xf32> -> vector<34x34xf32>
    %80 = arith.addf %79, %12 : vector<34x34xf32>
    %cst_41 = arith.constant dense<0xFF800000> : vector<34xf32>
    %81 = vector.multi_reduction <maximumf>, %80, %cst_41 [1] : vector<34x34xf32> to vector<34xf32>
    %82 = vector.shape_cast %81 : vector<34xf32> to vector<34x1xf32>
    %83 = vector.broadcast %82 : vector<34x1xf32> to vector<34x34xf32>
    %84 = arith.subf %80, %83 : vector<34x34xf32>
    %85 = math.exp %84 : vector<34x34xf32>
    %cst_42 = arith.constant dense<0.000000e+00> : vector<34xf32>
    %86 = vector.multi_reduction <add>, %85, %cst_42 [1] : vector<34x34xf32> to vector<34xf32>
    %87 = vector.shape_cast %86 : vector<34xf32> to vector<34x1xf32>
    %88 = tpu.reciprocal %87 {approx = true} : vector<34x1xf32> -> vector<34x1xf32>
    %89 = vector.broadcast %88 : vector<34x1xf32> to vector<34x34xf32>
    %90 = arith.mulf %85, %89 : vector<34x34xf32>
    %cst_43 = arith.constant dense<0.000000e+00> : vector<34x8xf32>
    %91 = tpu.matmul %90, %78, %cst_43 {dimension_numbers = #tpu.dot_dimension_numbers<[1], [0], [0], [1], [0, 0, 1, 1], [], []>} : vector<34x34xf32>, vector<34x8xf32>, vector<34x8xf32> -> vector<34x8xf32>
    %92 = vector.extract_strided_slice %41 {offsets = [0, 24], sizes = [34, 8], strides = [1, 1]} : vector<34x32xf32> to vector<34x8xf32>
    %93 = vector.extract_strided_slice %42 {offsets = [0, 24], sizes = [34, 8], strides = [1, 1]} : vector<34x32xf32> to vector<34x8xf32>
    %94 = vector.extract_strided_slice %43 {offsets = [0, 24], sizes = [34, 8], strides = [1, 1]} : vector<34x32xf32> to vector<34x8xf32>
    %cst_44 = arith.constant dense<0.000000e+00> : vector<34x34xf32>
    %95 = tpu.matmul %92, %93, %cst_44 {dimension_numbers = #tpu.dot_dimension_numbers<[1], [1], [0], [0], [0, 0, 1, 0], [], []>} : vector<34x8xf32>, vector<34x8xf32>, vector<34x34xf32> -> vector<34x34xf32>
    %96 = arith.addf %95, %12 : vector<34x34xf32>
    %cst_45 = arith.constant dense<0xFF800000> : vector<34xf32>
    %97 = vector.multi_reduction <maximumf>, %96, %cst_45 [1] : vector<34x34xf32> to vector<34xf32>
    %98 = vector.shape_cast %97 : vector<34xf32> to vector<34x1xf32>
    %99 = vector.broadcast %98 : vector<34x1xf32> to vector<34x34xf32>
    %100 = arith.subf %96, %99 : vector<34x34xf32>
    %101 = math.exp %100 : vector<34x34xf32>
    %cst_46 = arith.constant dense<0.000000e+00> : vector<34xf32>
    %102 = vector.multi_reduction <add>, %101, %cst_46 [1] : vector<34x34xf32> to vector<34xf32>
    %103 = vector.shape_cast %102 : vector<34xf32> to vector<34x1xf32>
    %104 = tpu.reciprocal %103 {approx = true} : vector<34x1xf32> -> vector<34x1xf32>
    %105 = vector.broadcast %104 : vector<34x1xf32> to vector<34x34xf32>
    %106 = arith.mulf %101, %105 : vector<34x34xf32>
    %cst_47 = arith.constant dense<0.000000e+00> : vector<34x8xf32>
    %107 = tpu.matmul %106, %94, %cst_47 {dimension_numbers = #tpu.dot_dimension_numbers<[1], [0], [0], [1], [0, 0, 1, 1], [], []>} : vector<34x34xf32>, vector<34x8xf32>, vector<34x8xf32> -> vector<34x8xf32>
    %108 = tpu.concatenate %59, %75, %91, %107 in 1 : vector<34x8xf32>, vector<34x8xf32>, vector<34x8xf32>, vector<34x8xf32> -> vector<34x32xf32>
    %cst_48 = arith.constant dense<0.000000e+00> : vector<34x32xf32>
    %109 = tpu.matmul %108, %18, %cst_48 {dimension_numbers = #tpu.dot_dimension_numbers<[1], [0], [0], [1], [0, 0, 1, 1], [], []>} : vector<34x32xf32>, vector<32x32xf32>, vector<34x32xf32> -> vector<34x32xf32>
    %110 = vector.broadcast %21 : vector<1x32xf32> to vector<34x32xf32>
    %111 = arith.addf %109, %110 : vector<34x32xf32>
    %112 = math.tanh %111 : vector<34x32xf32>
    %113 = vector.broadcast %22 : vector<1x32xf32> to vector<34x32xf32>
    %114 = arith.mulf %113, %112 : vector<34x32xf32>
    %115 = vector.broadcast %23 : vector<1x32xf32> to vector<34x32xf32>
    %116 = arith.addf %114, %115 : vector<34x32xf32>
    %117 = arith.addf %11, %116 : vector<34x32xf32>
    %cst_49 = arith.constant dense<0.000000e+00> : vector<34x64xf32>
    %118 = tpu.matmul %117, %28, %cst_49 {dimension_numbers = #tpu.dot_dimension_numbers<[1], [0], [0], [1], [0, 0, 1, 1], [], []>} : vector<34x32xf32>, vector<32x64xf32>, vector<34x64xf32> -> vector<34x64xf32>
    %119 = vector.broadcast %30 : vector<1x64xf32> to vector<34x64xf32>
    %120 = arith.addf %118, %119 : vector<34x64xf32>
    %cst_50 = arith.constant 5.000000e-01 : f32
    %121 = vector.broadcast %cst_50 : f32 to vector<34x64xf32>
    %122 = arith.mulf %121, %120 : vector<34x64xf32>
    %cst_51 = arith.constant 1.41421354 : f32
    %123 = vector.broadcast %cst_51 : f32 to vector<34x64xf32>
    %124 = arith.divf %120, %123 : vector<34x64xf32>
    %125 = math.erf %124 : vector<34x64xf32>
    %cst_52 = arith.constant 1.000000e+00 : f32
    %126 = vector.broadcast %cst_52 : f32 to vector<34x64xf32>
    %127 = arith.addf %126, %125 : vector<34x64xf32>
    %128 = arith.mulf %122, %127 : vector<34x64xf32>
    %cst_53 = arith.constant dense<0.000000e+00> : vector<34x32xf32>
    %129 = tpu.matmul %128, %32, %cst_53 {dimension_numbers = #tpu.dot_dimension_numbers<[1], [0], [0], [1], [0, 0, 1, 1], [], []>} : vector<34x64xf32>, vector<64x32xf32>, vector<34x32xf32> -> vector<34x32xf32>
    %130 = vector.broadcast %24 : vector<1x32xf32> to vector<34x32xf32>
    %131 = arith.addf %129, %130 : vector<34x32xf32>
    %132 = math.tanh %131 : vector<34x32xf32>
    %133 = vector.broadcast %25 : vector<1x32xf32> to vector<34x32xf32>
    %134 = arith.mulf %133, %132 : vector<34x32xf32>
    %135 = vector.broadcast %26 : vector<1x32xf32> to vector<34x32xf32>
    %136 = arith.addf %134, %135 : vector<34x32xf32>
    %137 = arith.addf %117, %136 : vector<34x32xf32>
    %c1_54 = arith.constant 1 : index
    %c0_55 = arith.constant 0 : index
    %c0_56 = arith.constant 0 : index
    %138 = vector.load %arg6[%c1_54, %c0_55, %c0_56] : memref<2x32x96xf32, #tpu.memory_space<vmem>>, vector<1x32x96xf32>
    %139 = vector.shape_cast %138 : vector<1x32x96xf32> to vector<32x96xf32>
    %c1_57 = arith.constant 1 : index
    %c0_58 = arith.constant 0 : index
    %c0_59 = arith.constant 0 : index
    %140 = vector.load %arg7[%c1_57, %c0_58, %c0_59] : memref<2x1x96xf32, #tpu.memory_space<vmem>>, vector<1x1x96xf32>
    %141 = vector.shape_cast %140 : vector<1x1x96xf32> to vector<1x96xf32>
    %c1_60 = arith.constant 1 : index
    %c0_61 = arith.constant 0 : index
    %c0_62 = arith.constant 0 : index
    %142 = vector.load %arg8[%c1_60, %c0_61, %c0_62] : memref<2x32x32xf32, #tpu.memory_space<vmem>>, vector<1x32x32xf32>
    %143 = vector.shape_cast %142 : vector<1x32x32xf32> to vector<32x32xf32>
    %c1_63 = arith.constant 1 : index
    %c0_64 = arith.constant 0 : index
    %c0_65 = arith.constant 0 : index
    %144 = vector.load %arg9[%c1_63, %c0_64, %c0_65] : memref<2x6x32xf32, #tpu.memory_space<vmem>>, vector<1x6x32xf32>
    %145 = vector.shape_cast %144 : vector<1x6x32xf32> to vector<6x32xf32>
    %146 = vector.extract_strided_slice %145 {offsets = [0, 0], sizes = [1, 32], strides = [1, 1]} : vector<6x32xf32> to vector<1x32xf32>
    %147 = vector.extract_strided_slice %145 {offsets = [1, 0], sizes = [1, 32], strides = [1, 1]} : vector<6x32xf32> to vector<1x32xf32>
    %148 = vector.extract_strided_slice %145 {offsets = [2, 0], sizes = [1, 32], strides = [1, 1]} : vector<6x32xf32> to vector<1x32xf32>
    %149 = vector.extract_strided_slice %145 {offsets = [3, 0], sizes = [1, 32], strides = [1, 1]} : vector<6x32xf32> to vector<1x32xf32>
    %150 = vector.extract_strided_slice %145 {offsets = [4, 0], sizes = [1, 32], strides = [1, 1]} : vector<6x32xf32> to vector<1x32xf32>
    %151 = vector.extract_strided_slice %145 {offsets = [5, 0], sizes = [1, 32], strides = [1, 1]} : vector<6x32xf32> to vector<1x32xf32>
    %c1_66 = arith.constant 1 : index
    %c0_67 = arith.constant 0 : index
    %c0_68 = arith.constant 0 : index
    %152 = vector.load %arg10[%c1_66, %c0_67, %c0_68] : memref<2x32x64xf32, #tpu.memory_space<vmem>>, vector<1x32x64xf32>
    %153 = vector.shape_cast %152 : vector<1x32x64xf32> to vector<32x64xf32>
    %c1_69 = arith.constant 1 : index
    %c0_70 = arith.constant 0 : index
    %c0_71 = arith.constant 0 : index
    %154 = vector.load %arg11[%c1_69, %c0_70, %c0_71] : memref<2x1x64xf32, #tpu.memory_space<vmem>>, vector<1x1x64xf32>
    %155 = vector.shape_cast %154 : vector<1x1x64xf32> to vector<1x64xf32>
    %c1_72 = arith.constant 1 : index
    %c0_73 = arith.constant 0 : index
    %c0_74 = arith.constant 0 : index
    %156 = vector.load %arg12[%c1_72, %c0_73, %c0_74] : memref<2x64x32xf32, #tpu.memory_space<vmem>>, vector<1x64x32xf32>
    %157 = vector.shape_cast %156 : vector<1x64x32xf32> to vector<64x32xf32>
    %158 = math.tanh %137 : vector<34x32xf32>
    %159 = vector.broadcast %147 : vector<1x32xf32> to vector<34x32xf32>
    %160 = arith.mulf %159, %158 : vector<34x32xf32>
    %161 = vector.broadcast %148 : vector<1x32xf32> to vector<34x32xf32>
    %162 = arith.addf %160, %161 : vector<34x32xf32>
    %cst_75 = arith.constant dense<0.000000e+00> : vector<34x96xf32>
    %163 = tpu.matmul %162, %139, %cst_75 {dimension_numbers = #tpu.dot_dimension_numbers<[1], [0], [0], [1], [0, 0, 1, 1], [], []>} : vector<34x32xf32>, vector<32x96xf32>, vector<34x96xf32> -> vector<34x96xf32>
    %164 = vector.broadcast %141 : vector<1x96xf32> to vector<34x96xf32>
    %165 = arith.addf %163, %164 : vector<34x96xf32>
    %166 = vector.extract_strided_slice %165 {offsets = [0, 0], sizes = [34, 32], strides = [1, 1]} : vector<34x96xf32> to vector<34x32xf32>
    %167 = vector.extract_strided_slice %165 {offsets = [0, 32], sizes = [34, 32], strides = [1, 1]} : vector<34x96xf32> to vector<34x32xf32>
    %168 = vector.extract_strided_slice %165 {offsets = [0, 64], sizes = [34, 32], strides = [1, 1]} : vector<34x96xf32> to vector<34x32xf32>
    %169 = vector.extract_strided_slice %166 {offsets = [0, 0], sizes = [34, 8], strides = [1, 1]} : vector<34x32xf32> to vector<34x8xf32>
    %170 = vector.extract_strided_slice %167 {offsets = [0, 0], sizes = [34, 8], strides = [1, 1]} : vector<34x32xf32> to vector<34x8xf32>
    %171 = vector.extract_strided_slice %168 {offsets = [0, 0], sizes = [34, 8], strides = [1, 1]} : vector<34x32xf32> to vector<34x8xf32>
    %cst_76 = arith.constant dense<0.000000e+00> : vector<34x34xf32>
    %172 = tpu.matmul %169, %170, %cst_76 {dimension_numbers = #tpu.dot_dimension_numbers<[1], [1], [0], [0], [0, 0, 1, 0], [], []>} : vector<34x8xf32>, vector<34x8xf32>, vector<34x34xf32> -> vector<34x34xf32>
    %173 = arith.addf %172, %12 : vector<34x34xf32>
    %cst_77 = arith.constant dense<0xFF800000> : vector<34xf32>
    %174 = vector.multi_reduction <maximumf>, %173, %cst_77 [1] : vector<34x34xf32> to vector<34xf32>
    %175 = vector.shape_cast %174 : vector<34xf32> to vector<34x1xf32>
    %176 = vector.broadcast %175 : vector<34x1xf32> to vector<34x34xf32>
    %177 = arith.subf %173, %176 : vector<34x34xf32>
    %178 = math.exp %177 : vector<34x34xf32>
    %cst_78 = arith.constant dense<0.000000e+00> : vector<34xf32>
    %179 = vector.multi_reduction <add>, %178, %cst_78 [1] : vector<34x34xf32> to vector<34xf32>
    %180 = vector.shape_cast %179 : vector<34xf32> to vector<34x1xf32>
    %181 = tpu.reciprocal %180 {approx = true} : vector<34x1xf32> -> vector<34x1xf32>
    %182 = vector.broadcast %181 : vector<34x1xf32> to vector<34x34xf32>
    %183 = arith.mulf %178, %182 : vector<34x34xf32>
    %cst_79 = arith.constant dense<0.000000e+00> : vector<34x8xf32>
    %184 = tpu.matmul %183, %171, %cst_79 {dimension_numbers = #tpu.dot_dimension_numbers<[1], [0], [0], [1], [0, 0, 1, 1], [], []>} : vector<34x34xf32>, vector<34x8xf32>, vector<34x8xf32> -> vector<34x8xf32>
    %185 = vector.extract_strided_slice %166 {offsets = [0, 8], sizes = [34, 8], strides = [1, 1]} : vector<34x32xf32> to vector<34x8xf32>
    %186 = vector.extract_strided_slice %167 {offsets = [0, 8], sizes = [34, 8], strides = [1, 1]} : vector<34x32xf32> to vector<34x8xf32>
    %187 = vector.extract_strided_slice %168 {offsets = [0, 8], sizes = [34, 8], strides = [1, 1]} : vector<34x32xf32> to vector<34x8xf32>
    %cst_80 = arith.constant dense<0.000000e+00> : vector<34x34xf32>
    %188 = tpu.matmul %185, %186, %cst_80 {dimension_numbers = #tpu.dot_dimension_numbers<[1], [1], [0], [0], [0, 0, 1, 0], [], []>} : vector<34x8xf32>, vector<34x8xf32>, vector<34x34xf32> -> vector<34x34xf32>
    %189 = arith.addf %188, %12 : vector<34x34xf32>
    %cst_81 = arith.constant dense<0xFF800000> : vector<34xf32>
    %190 = vector.multi_reduction <maximumf>, %189, %cst_81 [1] : vector<34x34xf32> to vector<34xf32>
    %191 = vector.shape_cast %190 : vector<34xf32> to vector<34x1xf32>
    %192 = vector.broadcast %191 : vector<34x1xf32> to vector<34x34xf32>
    %193 = arith.subf %189, %192 : vector<34x34xf32>
    %194 = math.exp %193 : vector<34x34xf32>
    %cst_82 = arith.constant dense<0.000000e+00> : vector<34xf32>
    %195 = vector.multi_reduction <add>, %194, %cst_82 [1] : vector<34x34xf32> to vector<34xf32>
    %196 = vector.shape_cast %195 : vector<34xf32> to vector<34x1xf32>
    %197 = tpu.reciprocal %196 {approx = true} : vector<34x1xf32> -> vector<34x1xf32>
    %198 = vector.broadcast %197 : vector<34x1xf32> to vector<34x34xf32>
    %199 = arith.mulf %194, %198 : vector<34x34xf32>
    %cst_83 = arith.constant dense<0.000000e+00> : vector<34x8xf32>
    %200 = tpu.matmul %199, %187, %cst_83 {dimension_numbers = #tpu.dot_dimension_numbers<[1], [0], [0], [1], [0, 0, 1, 1], [], []>} : vector<34x34xf32>, vector<34x8xf32>, vector<34x8xf32> -> vector<34x8xf32>
    %201 = vector.extract_strided_slice %166 {offsets = [0, 16], sizes = [34, 8], strides = [1, 1]} : vector<34x32xf32> to vector<34x8xf32>
    %202 = vector.extract_strided_slice %167 {offsets = [0, 16], sizes = [34, 8], strides = [1, 1]} : vector<34x32xf32> to vector<34x8xf32>
    %203 = vector.extract_strided_slice %168 {offsets = [0, 16], sizes = [34, 8], strides = [1, 1]} : vector<34x32xf32> to vector<34x8xf32>
    %cst_84 = arith.constant dense<0.000000e+00> : vector<34x34xf32>
    %204 = tpu.matmul %201, %202, %cst_84 {dimension_numbers = #tpu.dot_dimension_numbers<[1], [1], [0], [0], [0, 0, 1, 0], [], []>} : vector<34x8xf32>, vector<34x8xf32>, vector<34x34xf32> -> vector<34x34xf32>
    %205 = arith.addf %204, %12 : vector<34x34xf32>
    %cst_85 = arith.constant dense<0xFF800000> : vector<34xf32>
    %206 = vector.multi_reduction <maximumf>, %205, %cst_85 [1] : vector<34x34xf32> to vector<34xf32>
    %207 = vector.shape_cast %206 : vector<34xf32> to vector<34x1xf32>
    %208 = vector.broadcast %207 : vector<34x1xf32> to vector<34x34xf32>
    %209 = arith.subf %205, %208 : vector<34x34xf32>
    %210 = math.exp %209 : vector<34x34xf32>
    %cst_86 = arith.constant dense<0.000000e+00> : vector<34xf32>
    %211 = vector.multi_reduction <add>, %210, %cst_86 [1] : vector<34x34xf32> to vector<34xf32>
    %212 = vector.shape_cast %211 : vector<34xf32> to vector<34x1xf32>
    %213 = tpu.reciprocal %212 {approx = true} : vector<34x1xf32> -> vector<34x1xf32>
    %214 = vector.broadcast %213 : vector<34x1xf32> to vector<34x34xf32>
    %215 = arith.mulf %210, %214 : vector<34x34xf32>
    %cst_87 = arith.constant dense<0.000000e+00> : vector<34x8xf32>
    %216 = tpu.matmul %215, %203, %cst_87 {dimension_numbers = #tpu.dot_dimension_numbers<[1], [0], [0], [1], [0, 0, 1, 1], [], []>} : vector<34x34xf32>, vector<34x8xf32>, vector<34x8xf32> -> vector<34x8xf32>
    %217 = vector.extract_strided_slice %166 {offsets = [0, 24], sizes = [34, 8], strides = [1, 1]} : vector<34x32xf32> to vector<34x8xf32>
    %218 = vector.extract_strided_slice %167 {offsets = [0, 24], sizes = [34, 8], strides = [1, 1]} : vector<34x32xf32> to vector<34x8xf32>
    %219 = vector.extract_strided_slice %168 {offsets = [0, 24], sizes = [34, 8], strides = [1, 1]} : vector<34x32xf32> to vector<34x8xf32>
    %cst_88 = arith.constant dense<0.000000e+00> : vector<34x34xf32>
    %220 = tpu.matmul %217, %218, %cst_88 {dimension_numbers = #tpu.dot_dimension_numbers<[1], [1], [0], [0], [0, 0, 1, 0], [], []>} : vector<34x8xf32>, vector<34x8xf32>, vector<34x34xf32> -> vector<34x34xf32>
    %221 = arith.addf %220, %12 : vector<34x34xf32>
    %cst_89 = arith.constant dense<0xFF800000> : vector<34xf32>
    %222 = vector.multi_reduction <maximumf>, %221, %cst_89 [1] : vector<34x34xf32> to vector<34xf32>
    %223 = vector.shape_cast %222 : vector<34xf32> to vector<34x1xf32>
    %224 = vector.broadcast %223 : vector<34x1xf32> to vector<34x34xf32>
    %225 = arith.subf %221, %224 : vector<34x34xf32>
    %226 = math.exp %225 : vector<34x34xf32>
    %cst_90 = arith.constant dense<0.000000e+00> : vector<34xf32>
    %227 = vector.multi_reduction <add>, %226, %cst_90 [1] : vector<34x34xf32> to vector<34xf32>
    %228 = vector.shape_cast %227 : vector<34xf32> to vector<34x1xf32>
    %229 = tpu.reciprocal %228 {approx = true} : vector<34x1xf32> -> vector<34x1xf32>
    %230 = vector.broadcast %229 : vector<34x1xf32> to vector<34x34xf32>
    %231 = arith.mulf %226, %230 : vector<34x34xf32>
    %cst_91 = arith.constant dense<0.000000e+00> : vector<34x8xf32>
    %232 = tpu.matmul %231, %219, %cst_91 {dimension_numbers = #tpu.dot_dimension_numbers<[1], [0], [0], [1], [0, 0, 1, 1], [], []>} : vector<34x34xf32>, vector<34x8xf32>, vector<34x8xf32> -> vector<34x8xf32>
    %233 = tpu.concatenate %184, %200, %216, %232 in 1 : vector<34x8xf32>, vector<34x8xf32>, vector<34x8xf32>, vector<34x8xf32> -> vector<34x32xf32>
    %cst_92 = arith.constant dense<0.000000e+00> : vector<34x32xf32>
    %234 = tpu.matmul %233, %143, %cst_92 {dimension_numbers = #tpu.dot_dimension_numbers<[1], [0], [0], [1], [0, 0, 1, 1], [], []>} : vector<34x32xf32>, vector<32x32xf32>, vector<34x32xf32> -> vector<34x32xf32>
    %235 = vector.broadcast %146 : vector<1x32xf32> to vector<34x32xf32>
    %236 = arith.addf %234, %235 : vector<34x32xf32>
    %237 = math.tanh %236 : vector<34x32xf32>
    %238 = vector.broadcast %147 : vector<1x32xf32> to vector<34x32xf32>
    %239 = arith.mulf %238, %237 : vector<34x32xf32>
    %240 = vector.broadcast %148 : vector<1x32xf32> to vector<34x32xf32>
    %241 = arith.addf %239, %240 : vector<34x32xf32>
    %242 = arith.addf %137, %241 : vector<34x32xf32>
    %cst_93 = arith.constant dense<0.000000e+00> : vector<34x64xf32>
    %243 = tpu.matmul %242, %153, %cst_93 {dimension_numbers = #tpu.dot_dimension_numbers<[1], [0], [0], [1], [0, 0, 1, 1], [], []>} : vector<34x32xf32>, vector<32x64xf32>, vector<34x64xf32> -> vector<34x64xf32>
    %244 = vector.broadcast %155 : vector<1x64xf32> to vector<34x64xf32>
    %245 = arith.addf %243, %244 : vector<34x64xf32>
    %cst_94 = arith.constant 5.000000e-01 : f32
    %246 = vector.broadcast %cst_94 : f32 to vector<34x64xf32>
    %247 = arith.mulf %246, %245 : vector<34x64xf32>
    %cst_95 = arith.constant 1.41421354 : f32
    %248 = vector.broadcast %cst_95 : f32 to vector<34x64xf32>
    %249 = arith.divf %245, %248 : vector<34x64xf32>
    %250 = math.erf %249 : vector<34x64xf32>
    %cst_96 = arith.constant 1.000000e+00 : f32
    %251 = vector.broadcast %cst_96 : f32 to vector<34x64xf32>
    %252 = arith.addf %251, %250 : vector<34x64xf32>
    %253 = arith.mulf %247, %252 : vector<34x64xf32>
    %cst_97 = arith.constant dense<0.000000e+00> : vector<34x32xf32>
    %254 = tpu.matmul %253, %157, %cst_97 {dimension_numbers = #tpu.dot_dimension_numbers<[1], [0], [0], [1], [0, 0, 1, 1], [], []>} : vector<34x64xf32>, vector<64x32xf32>, vector<34x32xf32> -> vector<34x32xf32>
    %255 = vector.broadcast %149 : vector<1x32xf32> to vector<34x32xf32>
    %256 = arith.addf %254, %255 : vector<34x32xf32>
    %257 = math.tanh %256 : vector<34x32xf32>
    %258 = vector.broadcast %150 : vector<1x32xf32> to vector<34x32xf32>
    %259 = arith.mulf %258, %257 : vector<34x32xf32>
    %260 = vector.broadcast %151 : vector<1x32xf32> to vector<34x32xf32>
    %261 = arith.addf %259, %260 : vector<34x32xf32>
    %262 = arith.addf %242, %261 : vector<34x32xf32>
    %263 = arith.addf %11, %262 : vector<34x32xf32>
    %c0_98 = arith.constant 0 : index
    %c0_99 = arith.constant 0 : index
    %264 = vector.load %arg5[%c0_98, %c0_99] : memref<2x34xf32, #tpu.memory_space<vmem>>, vector<2x34xf32>
    %cst_100 = arith.constant dense<0.000000e+00> : vector<2x32xf32>
    %265 = tpu.matmul %264, %263, %cst_100 {dimension_numbers = #tpu.dot_dimension_numbers<[1], [0], [0], [1], [0, 0, 1, 1], [], []>} : vector<2x34xf32>, vector<34x32xf32>, vector<2x32xf32> -> vector<2x32xf32>
    %c0_101 = arith.constant 0 : index
    %c0_102 = arith.constant 0 : index
    %266 = vector.load %arg13[%c0_101, %c0_102] : memref<32x8xf32, #tpu.memory_space<vmem>>, vector<32x8xf32>
    %cst_103 = arith.constant dense<0.000000e+00> : vector<2x8xf32>
    %267 = tpu.matmul %265, %266, %cst_103 {dimension_numbers = #tpu.dot_dimension_numbers<[1], [0], [0], [1], [0, 0, 1, 1], [], []>} : vector<2x32xf32>, vector<32x8xf32>, vector<2x8xf32> -> vector<2x8xf32>
    %c0_104 = arith.constant 0 : index
    %c0_105 = arith.constant 0 : index
    %268 = vector.load %arg14[%c0_104, %c0_105] : memref<1x8xf32, #tpu.memory_space<vmem>>, vector<1x8xf32>
    %269 = vector.broadcast %268 : vector<1x8xf32> to vector<2x8xf32>
    %270 = arith.addf %267, %269 : vector<2x8xf32>
    %c0_106 = arith.constant 0 : index
    %c0_107 = arith.constant 0 : index
    %271 = vector.load %arg15[%c0_106, %c0_107] : memref<2x8xf32, #tpu.memory_space<vmem>>, vector<2x8xf32>
    tpu.vector_store %arg15[%c0_106, %c0_107], %270 {strides = array<i32>} : memref<2x8xf32, #tpu.memory_space<vmem>>, vector<2x8xf32>,
    return
  }
}

</mosaic_0001>

<llo_original>
// kernel: forward.1
$region0: #{forward.1}
  #allocation0 [shape = 'u32[]', space=smem, size = 0x4, offset = 0x4, fixed_abs, tag = 'smem constant byte address 0x4 - core index']
  #allocation1 [shape = 'u32[144,128]{1,0:T(1,128)}', space=vmem, size = 0x12000, scoped, tag = 'internal scratch']
  %s0 = inlined_call_operand.vmem [shape: f32[34,64], index: 0, kind: input, shape index: {}]
  %s1 = inlined_call_operand.vmem [shape: f32[64,32], index: 1, kind: input, shape index: {}]
  %s2 = inlined_call_operand.vmem [shape: f32[34,32], index: 2, kind: input, shape index: {}]
  %s3 = inlined_call_operand.vmem [shape: f32[2,32], index: 3, kind: input, shape index: {}]
  %s4 = inlined_call_operand.vmem [shape: f32[34,34], index: 4, kind: input, shape index: {}]
  %s5 = inlined_call_operand.vmem [shape: f32[2,34], index: 5, kind: input, shape index: {}]
  %s6 = inlined_call_operand.vmem [shape: f32[2,32,96], index: 6, kind: input, shape index: {}]
  %s7 = inlined_call_operand.vmem [shape: f32[2,1,96], index: 7, kind: input, shape index: {}]
  %s8 = inlined_call_operand.vmem [shape: f32[2,32,32], index: 8, kind: input, shape index: {}]
  %s9 = inlined_call_operand.vmem [shape: f32[2,6,32], index: 9, kind: input, shape index: {}]
  %s10 = inlined_call_operand.vmem [shape: f32[2,32,64], index: 10, kind: input, shape index: {}]
  %s11 = inlined_call_operand.vmem [shape: f32[2,1,64], index: 11, kind: input, shape index: {}]
  %s12 = inlined_call_operand.vmem [shape: f32[2,64,32], index: 12, kind: input, shape index: {}]
  %s13 = inlined_call_operand.vmem [shape: f32[32,8], index: 13, kind: input, shape index: {}]
  %s14 = inlined_call_operand.vmem [shape: f32[1,8], index: 14, kind: input, shape index: {}]
  %s15 = inlined_call_operand.hbm [shape: f32[2,8], index: 15, kind: output, shape index: {}]
  %s16 = sld [smem:[#allocation0]]
  $region70: #{forward.1} parent=0
    _
  %s18 = ssub.s32 1, %s16
  %s19 = scalar_select 0, %s18, %s16
  $region1: #{forward.1} parent=0
    #allocation2 [shape = 'u8[1024]{0}', space=vmem, size = 0x400, scoped, tag = 'output window, operand 0, single buffered']
    #allocation3 [shape = 's32[1]{0}', space=sflag, size = 0x4, scoped, tag = 'scoped memory for forward.1']
    %20 = vsyncpa [#allocation3], 0
    // Predicated region
    $region2: #{forward.1} parent=1 // pred_check
      _
    $region3: #{forward.1} parent=1 // pred_check_branch
      %22 = sbr.rel (0) target = $region5
    $region4: #{forward.1} parent=1 // pred_region
      _
    $region5: #{forward.1} parent=1 // pred_fallthru
      _
    // Predicated region
    $region6: #{forward.1} parent=1 // pred_check
      _
    $region7: #{forward.1} parent=1 // pred_check_branch
      %24 = sbr.rel (0) target = $region9
    $region8: #{forward.1} parent=1 // pred_region
      _
    $region9: #{forward.1} parent=1 // pred_fallthru
      _
    // Predicated region
    $region10: #{forward.1} parent=1 // pred_check
      _
    $region11: #{forward.1} parent=1 // pred_check_branch
      %26 = sbr.rel (0) target = $region13
    $region12: #{forward.1} parent=1 // pred_region
      _
    $region13: #{forward.1} parent=1 // pred_fallthru
      _
    // Predicated region
    $region14: #{forward.1} parent=1 // pred_check
      _
    $region15: #{forward.1} parent=1 // pred_check_branch
      %28 = sbr.rel (0) target = $region17
    $region16: #{forward.1} parent=1 // pred_region
      _
    $region17: #{forward.1} parent=1 // pred_fallthru
      _
    // Predicated region
    $region18: #{forward.1} parent=1 // pred_check
      _
    $region19: #{forward.1} parent=1 // pred_check_branch
      %30 = sbr.rel (0) target = $region21
    $region20: #{forward.1} parent=1 // pred_region
      _
    $region21: #{forward.1} parent=1 // pred_fallthru
      _
    // Predicated region
    $region22: #{forward.1} parent=1 // pred_check
      _
    $region23: #{forward.1} parent=1 // pred_check_branch
      %32 = sbr.rel (0) target = $region25
    $region24: #{forward.1} parent=1 // pred_region
      _
    $region25: #{forward.1} parent=1 // pred_fallthru
      _
    // Predicated region
    $region26: #{forward.1} parent=1 // pred_check
      _
    $region27: #{forward.1} parent=1 // pred_check_branch
      %34 = sbr.rel (0) target = $region29
    $region28: #{forward.1} parent=1 // pred_region
      _
    $region29: #{forward.1} parent=1 // pred_fallthru
      _
    // Predicated region
    $region30: #{forward.1} parent=1 // pred_check
      _
    $region31: #{forward.1} parent=1 // pred_check_branch
      %36 = sbr.rel (0) target = $region33
    $region32: #{forward.1} parent=1 // pred_region
      _
    $region33: #{forward.1} parent=1 // pred_fallthru
      _
    // Predicated region
    $region34: #{forward.1} parent=1 // pred_check
      _
    $region35: #{forward.1} parent=1 // pred_check_branch
      %38 = sbr.rel (0) target = $region37
    $region36: #{forward.1} parent=1 // pred_region
      _
    $region37: #{forward.1} parent=1 // pred_fallthru
      _
    // Predicated region
    $region38: #{forward.1} parent=1 // pred_check
      _
    $region39: #{forward.1} parent=1 // pred_check_branch
      %40 = sbr.rel (0) target = $region41
    $region40: #{forward.1} parent=1 // pred_region
      _
    $region41: #{forward.1} parent=1 // pred_fallthru
      _
    // Predicated region
    $region42: #{forward.1} parent=1 // pred_check
      _
    $region43: #{forward.1} parent=1 // pred_check_branch
      %42 = sbr.rel (0) target = $region45
    $region44: #{forward.1} parent=1 // pred_region
      _
    $region45: #{forward.1} parent=1 // pred_fallthru
      _
    // Predicated region
    $region46: #{forward.1} parent=1 // pred_check
      _
    $region47: #{forward.1} parent=1 // pred_check_branch
      %44 = sbr.rel (0) target = $region49
    $region48: #{forward.1} parent=1 // pred_region
      _
    $region49: #{forward.1} parent=1 // pred_fallthru
      _
    // Predicated region
    $region50: #{forward.1} parent=1 // pred_check
      _
    $region51: #{forward.1} parent=1 // pred_check_branch
      %46 = sbr.rel (0) target = $region53
    $region52: #{forward.1} parent=1 // pred_region
      _
    $region53: #{forward.1} parent=1 // pred_fallthru
      _
    // Predicated region
    $region54: #{forward.1} parent=1 // pred_check
      _
    $region55: #{forward.1} parent=1 // pred_check_branch
      %48 = sbr.rel (0) target = $region57
    $region56: #{forward.1} parent=1 // pred_region
      _
    $region57: #{forward.1} parent=1 // pred_fallthru
      _
    // Predicated region
    $region58: #{forward.1} parent=1 // pred_check
      _
    $region59: #{forward.1} parent=1 // pred_check_branch
      %50 = sbr.rel (0) target = $region61
    $region60: #{forward.1} parent=1 // pred_region
      _
    $region61: #{forward.1} parent=1 // pred_fallthru
      _
    %v51 = vld [vmem:[%s0] sm:$0xff]
    %v52 = vld [vmem:[%s0 + $0x8] sm:$0xff]
    %v53 = vld [vmem:[%s0 + $0x10] sm:$0xff]
    %v54 = vld [vmem:[%s0 + $0x18] sm:$0xff]
    %v55 = vld [vmem:[%s0 + $0x20] sm:$0x3]
    %v56 = vld [vmem:[%s1] sm:$0xff]
    %v57 = vld [vmem:[%s1 + $0x8] sm:$0xff]
    %v58 = vld [vmem:[%s1 + $0x10] sm:$0xff]
    %v59 = vld [vmem:[%s1 + $0x18] sm:$0xff]
    %v60 = vld [vmem:[%s1 + $0x20] sm:$0xff]
    %v61 = vld [vmem:[%s1 + $0x28] sm:$0xff]
    %v62 = vld [vmem:[%s1 + $0x30] sm:$0xff]
    %v63 = vld [vmem:[%s1 + $0x38] sm:$0xff]
    %v64 = vld [vmem:[%s2] sm:$0xff]
    %v65 = vld [vmem:[%s2 + $0x8] sm:$0xff]
    %v66 = vld [vmem:[%s2 + $0x10] sm:$0xff]
    %v67 = vld [vmem:[%s2 + $0x18] sm:$0xff]
    %v68 = vld [vmem:[%s2 + $0x20] sm:$0x3]
    %vm69 = vcmask 523264
    %v71 = vsel %vm69, %v51, 0
    %v74 = vsel %vm69, %v52, 0
    %v77 = vsel %vm69, %v53, 0
    %v80 = vsel %vm69, %v54, 0
    %v83 = vsel %vm69, %v55, 0
    %85 = vmatprep.subr.mxu0 0.0
    %86 = vmatpush1.msra.mxu0 0.0
    %87 = vmatprep.subr.mxu0 0.0
    %88 = vmatpush1.msra.mxu0 0.0
    %89 = vmatprep.subr.mxu0 0.0
    %90 = vmatpush1.msra.mxu0 0.0
    %91 = vmatprep.subr.mxu0 0.0
    %92 = vmatpush1.msra.mxu0 0.0
    %93 = vmatprep.subr.mxu0 0.0
    %94 = vmatpush1.msra.mxu0 0.0
    %95 = vmatprep.subr.mxu0 0.0
    %96 = vmatpush1.msra.mxu0 0.0
    %97 = vmatprep.subr.mxu0 0.0
    %98 = vmatpush1.msra.mxu0 0.0
    %99 = vmatprep.subr.mxu0 0.0
    %100 = vmatpush1.msra.mxu0 0.0
    %101 = vmatprep.subr.mxu0 0.0
    %102 = vmatpush1.msra.mxu0 %v63
    %103 = vmatprep.subr.mxu0 0.0
    %104 = vmatpush1.msra.mxu0 %v62
    %105 = vmatprep.subr.mxu0 0.0
    %106 = vmatpush1.msra.mxu0 %v61
    %107 = vmatprep.subr.mxu0 0.0
    %108 = vmatpush1.msra.mxu0 %v60
    %109 = vmatprep.subr.mxu0 0.0
    %110 = vmatpush1.msra.mxu0 %v59
    %111 = vmatprep.subr.mxu0 0.0
    %112 = vmatpush1.msra.mxu0 %v58
    %113 = vmatprep.subr.mxu0 0.0
    %114 = vmatpush1.msra.mxu0 %v57
    %115 = vmatprep.subr.mxu0 0.0
    %116 = vmatpush1.msra.mxu0 %v56
    %117 = vmatprep.subr.mxu0 0.0
    %118 = vmatpush2.msra.mxu0 0.0
    %119 = vmatprep.subr.mxu0 0.0
    %120 = vmatpush2.msra.mxu0 0.0
    %121 = vmatprep.subr.mxu0 0.0
    %122 = vmatpush2.msra.mxu0 0.0
    %123 = vmatprep.subr.mxu0 0.0
    %124 = vmatpush2.msra.mxu0 0.0
    %125 = vmatprep.subr.mxu0 0.0
    %126 = vmatpush2.msra.mxu0 0.0
    %127 = vmatprep.subr.mxu0 0.0
    %128 = vmatpush2.msra.mxu0 0.0
    %129 = vmatprep.subr.mxu0 0.0
    %130 = vmatpush2.msra.mxu0 0.0
    %131 = vmatprep.subr.mxu0 0.0
    %132 = vmatpush2.msra.mxu0 0.0
    %133 = vmatprep.subr.mxu0 0.0
    %134 = vmatpush2.msra.mxu0 0.0
    %135 = vmatprep.subr.mxu0 0.0
    %136 = vmatpush2.msra.mxu0 0.0
    %137 = vmatprep.subr.mxu0 0.0
    %138 = vmatpush2.msra.mxu0 0.0
    %139 = vmatprep.subr.mxu0 0.0
    %140 = vmatpush2.msra.mxu0 0.0
    %141 = vmatprep.subr.mxu0 0.0
    %142 = vmatpush2.msra.mxu0 0.0
    %143 = vmatprep.subr.mxu0 0.0
    %144 = vmatpush2.msra.mxu0 0.0
    %145 = vmatprep.subr.mxu0 0.0
    %146 = vmatpush2.msra.mxu0 0.0
    %147 = vmatprep.subr.mxu0 0.0
    %148 = vmatpush2.msra.mxu0 0.0
    %149 = vmatprep.mubr.f32.mxu0 0.0
    %150 = vmatmul.mubr.f32.gmra.mxu0 %v71
    %v151 = vpop.f32.mrf.mxu0
    %v152 = vadd.f32 %v64, %v151
    %v153 = vpop.f32.mrf.mxu0
    %154 = vmatprep.mubr.f32.mxu0 0.0
    %155 = vmatmul.mubr.f32.gmra.mxu0 %v74
    %v156 = vpop.f32.mrf.mxu0
    %v157 = vadd.f32 %v65, %v156
    %v158 = vpop.f32.mrf.mxu0
    %159 = vmatprep.mubr.f32.mxu0 0.0
    %160 = vmatmul.mubr.f32.gmra.mxu0 %v77
    %v161 = vpop.f32.mrf.mxu0
    %v162 = vadd.f32 %v66, %v161
    %v163 = vpop.f32.mrf.mxu0
    %164 = vmatprep.mubr.f32.mxu0 0.0
    %165 = vmatmul.mubr.f32.gmra.mxu0 %v80
    %v166 = vpop.f32.mrf.mxu0
    %v167 = vadd.f32 %v67, %v166
    %v168 = vpop.f32.mrf.mxu0
    %169 = vmatprep.mubr.f32.mxu0 0.0
    %170 = vmatmul.mubr.f32.gmra.mxu0 %v83
    %v171 = vpop.f32.mrf.mxu0
    %v172 = vadd.f32 %v68, %v171
    %v173 = vpop.f32.mrf.mxu0
    %174 = vdwg.mxu0
    %v175 = vld [vmem:[%s3] sm:$0x1]
    %v176 = vld [vmem:[%s3 + $0x1] sm:$0x1]
    %v177 = vtanh.pop %v152
    %v178 = vtanh.pop %v157
    %v179 = vtanh.pop %v162
    %v180 = vtanh.pop %v167
    %v181 = vtanh.pop %v172
    %v182 = vlaneseq
    %v183 = vshrl.u32 %v182, 7
    %v184 = vsub.s32 0, %v183
    %v185 = vrot.slane %v175, %v184
    %v186 = vmul.f32 %v185, %v177
    %v187 = vmul.f32 %v185, %v178
    %v188 = vmul.f32 %v185, %v179
    %v189 = vmul.f32 %v185, %v180
    %v190 = vmul.f32 %v185, %v181
    %v191 = vlaneseq
    %v192 = vshrl.u32 %v191, 7
    %v193 = vsub.s32 0, %v192
    %v194 = vrot.slane %v176, %v193
    %v195 = vadd.f32 %v186, %v194
    %v196 = vadd.f32 %v187, %v194
    %v197 = vadd.f32 %v188, %v194
    %v198 = vadd.f32 %v189, %v194
    %v199 = vadd.f32 %v190, %v194
    %v200 = vld [vmem:[%s4] sm:$0xff]
    %v201 = vld [vmem:[%s4 + $0x8] sm:$0xff]
    %v202 = vld [vmem:[%s4 + $0x10] sm:$0xff]
    %v203 = vld [vmem:[%s4 + $0x18] sm:$0xff]
    %v204 = vld [vmem:[%s4 + $0x20] sm:$0x3]
    %v205 = vld [vmem:[%s6] sm:$0xff]
    %v206 = vld [vmem:[%s6 + $0x8] sm:$0xff]
    %v207 = vld [vmem:[%s6 + $0x10] sm:$0xff]
    %v208 = vld [vmem:[%s6 + $0x18] sm:$0xff]
    %v209 = vld [vmem:[%s7] sm:$0x1]
    %v210 = vld [vmem:[%s8] sm:$0xff]
    %v211 = vld [vmem:[%s8 + $0x8] sm:$0xff]
    %v212 = vld [vmem:[%s8 + $0x10] sm:$0xff]
    %v213 = vld [vmem:[%s8 + $0x18] sm:$0xff]
    %v214 = vld [vmem:[%s9] sm:$0x3f]
    %v215 = vld [vmem:[%s10] sm:$0xff]
    %v216 = vld [vmem:[%s10 + $0x8] sm:$0xff]
    %v217 = vld [vmem:[%s10 + $0x10] sm:$0xff]
    %v218 = vld [vmem:[%s10 + $0x18] sm:$0xff]
    %v219 = vld [vmem:[%s11] sm:$0x1]
    %v220 = vld [vmem:[%s12] sm:$0xff]
    %v221 = vld [vmem:[%s12 + $0x8] sm:$0xff]
    %v222 = vld [vmem:[%s12 + $0x10] sm:$0xff]
    %v223 = vld [vmem:[%s12 + $0x18] sm:$0xff]
    %v224 = vld [vmem:[%s12 + $0x20] sm:$0xff]
    %v225 = vld [vmem:[%s12 + $0x28] sm:$0xff]
    %v226 = vld [vmem:[%s12 + $0x30] sm:$0xff]
    %v227 = vld [vmem:[%s12 + $0x38] sm:$0xff]
    %v228 = vtanh.pop %v195
    %v229 = vtanh.pop %v196
    %v230 = vtanh.pop %v197
    %v231 = vtanh.pop %v198
    %v232 = vtanh.pop %v199
    %v233 = vlaneseq
    %v234 = vshrl.u32 %v233, 7
    %v235 = vsub.s32 1, %v234
    %v236 = vrot.slane %v214, %v235
    %v237 = vmul.f32 %v236, %v228
    %v238 = vmul.f32 %v236, %v229
    %v239 = vmul.f32 %v236, %v230
    %v240 = vmul.f32 %v236, %v231
    %v241 = vmul.f32 %v236, %v232
    %v242 = vlaneseq
    %v243 = vshrl.u32 %v242, 7
    %v244 = vsub.s32 2, %v243
    %v245 = vrot.slane %v214, %v244
    %v246 = vadd.f32 %v237, %v245
    %v247 = vadd.f32 %v238, %v245
    %v248 = vadd.f32 %v239, %v245
    %v249 = vadd.f32 %v240, %v245
    %v250 = vadd.f32 %v241, %v245
    %v252 = vlaneseq
    %v253 = vshrl.u32 %v252, 7
    %v254 = vsub.s32 0, %v253
    %v255 = vrot.slane %v209, %v254
    %vm257 = vcmask 261120
    %v259 = vsel %vm257, %v246, 0
    %v262 = vsel %vm257, %v247, 0
    %v265 = vsel %vm257, %v248, 0
    %v268 = vsel %vm257, %v249, 0
    %v271 = vsel %vm257, %v250, 0
    %273 = vmatprep.subr.mxu0 0.0
    %274 = vmatpush1.msra.mxu0 0.0
    %275 = vmatprep.subr.mxu0 0.0
    %276 = vmatpush1.msra.mxu0 0.0
    %277 = vmatprep.subr.mxu0 0.0
    %278 = vmatpush1.msra.mxu0 0.0
    %279 = vmatprep.subr.mxu0 0.0
    %280 = vmatpush1.msra.mxu0 0.0
    %281 = vmatprep.subr.mxu0 0.0
    %282 = vmatpush1.msra.mxu0 0.0
    %283 = vmatprep.subr.mxu0 0.0
    %284 = vmatpush1.msra.mxu0 0.0
    %285 = vmatprep.subr.mxu0 0.0
    %286 = vmatpush1.msra.mxu0 0.0
    %287 = vmatprep.subr.mxu0 0.0
    %288 = vmatpush1.msra.mxu0 0.0
    %289 = vmatprep.subr.mxu0 0.0
    %290 = vmatpush1.msra.mxu0 0.0
    %291 = vmatprep.subr.mxu0 0.0
    %292 = vmatpush1.msra.mxu0 0.0
    %293 = vmatprep.subr.mxu0 0.0
    %294 = vmatpush1.msra.mxu0 0.0
    %295 = vmatprep.subr.mxu0 0.0
    %296 = vmatpush1.msra.mxu0 0.0
    %297 = vmatprep.subr.mxu0 0.0
    %298 = vmatpush1.msra.mxu0 %v208
    %299 = vmatprep.subr.mxu0 0.0
    %300 = vmatpush1.msra.mxu0 %v207
    %301 = vmatprep.subr.mxu0 0.0
    %302 = vmatpush1.msra.mxu0 %v206
    %303 = vmatprep.subr.mxu0 0.0
    %304 = vmatpush1.msra.mxu0 %v205
    %305 = vmatprep.subr.mxu0 0.0
    %306 = vmatpush2.msra.mxu0 0.0
    %307 = vmatprep.subr.mxu0 0.0
    %308 = vmatpush2.msra.mxu0 0.0
    %309 = vmatprep.subr.mxu0 0.0
    %310 = vmatpush2.msra.mxu0 0.0
    %311 = vmatprep.subr.mxu0 0.0
    %312 = vmatpush2.msra.mxu0 0.0
    %313 = vmatprep.subr.mxu0 0.0
    %314 = vmatpush2.msra.mxu0 0.0
    %315 = vmatprep.subr.mxu0 0.0
    %316 = vmatpush2.msra.mxu0 0.0
    %317 = vmatprep.subr.mxu0 0.0
    %318 = vmatpush2.msra.mxu0 0.0
    %319 = vmatprep.subr.mxu0 0.0
    %320 = vmatpush2.msra.mxu0 0.0
    %321 = vmatprep.subr.mxu0 0.0
    %322 = vmatpush2.msra.mxu0 0.0
    %323 = vmatprep.subr.mxu0 0.0
    %324 = vmatpush2.msra.mxu0 0.0
    %325 = vmatprep.subr.mxu0 0.0
    %326 = vmatpush2.msra.mxu0 0.0
    %327 = vmatprep.subr.mxu0 0.0
    %328 = vmatpush2.msra.mxu0 0.0
    %329 = vmatprep.subr.mxu0 0.0
    %330 = vmatpush2.msra.mxu0 0.0
    %331 = vmatprep.subr.mxu0 0.0
    %332 = vmatpush2.msra.mxu0 0.0
    %333 = vmatprep.subr.mxu0 0.0
    %334 = vmatpush2.msra.mxu0 0.0
    %335 = vmatprep.subr.mxu0 0.0
    %336 = vmatpush2.msra.mxu0 0.0
    %337 = vmatprep.mubr.f32.mxu0 0.0
    %338 = vmatmul.mubr.f32.gmra.mxu0 %v259
    %v339 = vpop.f32.mrf.mxu0
    %v340 = vadd.f32 %v255, %v339
    %v341 = vpop.f32.mrf.mxu0
    %342 = vmatprep.mubr.f32.mxu0 0.0
    %343 = vmatmul.mubr.f32.gmra.mxu0 %v262
    %v344 = vpop.f32.mrf.mxu0
    %v345 = vadd.f32 %v255, %v344
    %v346 = vpop.f32.mrf.mxu0
    %347 = vmatprep.mubr.f32.mxu0 0.0
    %348 = vmatmul.mubr.f32.gmra.mxu0 %v265
    %v349 = vpop.f32.mrf.mxu0
    %v350 = vadd.f32 %v255, %v349
    %v351 = vpop.f32.mrf.mxu0
    %352 = vmatprep.mubr.f32.mxu0 0.0
    %353 = vmatmul.mubr.f32.gmra.mxu0 %v268
    %v354 = vpop.f32.mrf.mxu0
    %v355 = vadd.f32 %v255, %v354
    %v356 = vpop.f32.mrf.mxu0
    %357 = vmatprep.mubr.f32.mxu0 0.0
    %358 = vmatmul.mubr.f32.gmra.mxu0 %v271
    %v359 = vpop.f32.mrf.mxu0
    %v360 = vadd.f32 %v255, %v359
    %v361 = vpop.f32.mrf.mxu0
    %362 = vdwg.mxu0
    %368 = vrot.lane.b32.xlu0 %v340, 96
    %v369 = vpop.permute.xlu0 %368
    %370 = vrot.lane.b32.xlu0 %v345, 96
    %v371 = vpop.permute.xlu0 %370
    %372 = vrot.lane.b32.xlu0 %v350, 96
    %v373 = vpop.permute.xlu0 %372
    %374 = vrot.lane.b32.xlu0 %v355, 96
    %v375 = vpop.permute.xlu0 %374
    %376 = vrot.lane.b32.xlu0 %v360, 96
    %v377 = vpop.permute.xlu0 %376
    %vm378 = vcmask 64512
    %v379 = vsel %vm378, %v340, 0
    %v381 = vsel %vm378, %v345, 0
    %v383 = vsel %vm378, %v350, 0
    %v385 = vsel %vm378, %v355, 0
    %v387 = vsel %vm378, %v360, 0
    %v389 = vsel %vm378, %v369, 0
    %v391 = vsel %vm378, %v371, 0
    %v393 = vsel %vm378, %v373, 0
    %v395 = vsel %vm378, %v375, 0
    %v397 = vsel %vm378, %v377, 0
    %399 = vmatprep.subr.mxu0 0.0
    %400 = vmatpush1.xpose.msra.mxu0 0.0
    %401 = vmatprep.subr.mxu0 0.0
    %402 = vmatpush1.xpose.msra.mxu0 0.0
    %403 = vmatprep.subr.mxu0 0.0
    %404 = vmatpush1.xpose.msra.mxu0 0.0
    %405 = vmatprep.subr.mxu0 0.0
    %406 = vmatpush1.xpose.msra.mxu0 0.0
    %407 = vmatprep.subr.mxu0 0.0
    %408 = vmatpush1.xpose.msra.mxu0 0.0
    %409 = vmatprep.subr.mxu0 0.0
    %410 = vmatpush1.xpose.msra.mxu0 0.0
    %411 = vmatprep.subr.mxu0 0.0
    %412 = vmatpush1.xpose.msra.mxu0 0.0
    %413 = vmatprep.subr.mxu0 0.0
    %414 = vmatpush1.xpose.msra.mxu0 0.0
    %415 = vmatprep.subr.mxu0 0.0
    %416 = vmatpush1.xpose.msra.mxu0 0.0
    %417 = vmatprep.subr.mxu0 0.0
    %418 = vmatpush1.xpose.msra.mxu0 0.0
    %419 = vmatprep.subr.mxu0 0.0
    %420 = vmatpush1.xpose.msra.mxu0 0.0
    %421 = vmatprep.subr.mxu0 0.0
    %422 = vmatpush1.xpose.msra.mxu0 %v397
    %423 = vmatprep.subr.mxu0 0.0
    %424 = vmatpush1.xpose.msra.mxu0 %v395
    %425 = vmatprep.subr.mxu0 0.0
    %426 = vmatpush1.xpose.msra.mxu0 %v393
    %427 = vmatprep.subr.mxu0 0.0
    %428 = vmatpush1.xpose.msra.mxu0 %v391
    %429 = vmatprep.subr.mxu0 0.0
    %430 = vmatpush1.xpose.msra.mxu0 %v389
    %431 = vmatprep.subr.mxu0 0.0
    %432 = vmatpush2.xpose.msra.mxu0 0.0
    %433 = vmatprep.subr.mxu0 0.0
    %434 = vmatpush2.xpose.msra.mxu0 0.0
    %435 = vmatprep.subr.mxu0 0.0
    %436 = vmatpush2.xpose.msra.mxu0 0.0
    %437 = vmatprep.subr.mxu0 0.0
    %438 = vmatpush2.xpose.msra.mxu0 0.0
    %439 = vmatprep.subr.mxu0 0.0
    %440 = vmatpush2.xpose.msra.mxu0 0.0
    %441 = vmatprep.subr.mxu0 0.0
    %442 = vmatpush2.xpose.msra.mxu0 0.0
    %443 = vmatprep.subr.mxu0 0.0
    %444 = vmatpush2.xpose.msra.mxu0 0.0
    %445 = vmatprep.subr.mxu0 0.0
    %446 = vmatpush2.xpose.msra.mxu0 0.0
    %447 = vmatprep.subr.mxu0 0.0
    %448 = vmatpush2.xpose.msra.mxu0 0.0
    %449 = vmatprep.subr.mxu0 0.0
    %450 = vmatpush2.xpose.msra.mxu0 0.0
    %451 = vmatprep.subr.mxu0 0.0
    %452 = vmatpush2.xpose.msra.mxu0 0.0
    %453 = vmatprep.subr.mxu0 0.0
    %454 = vmatpush2.xpose.msra.mxu0 0.0
    %455 = vmatprep.subr.mxu0 0.0
    %456 = vmatpush2.xpose.msra.mxu0 0.0
    %457 = vmatprep.subr.mxu0 0.0
    %458 = vmatpush2.xpose.msra.mxu0 0.0
    %459 = vmatprep.subr.mxu0 0.0
    %460 = vmatpush2.xpose.msra.mxu0 0.0
    %461 = vmatprep.subr.mxu0 0.0
    %462 = vmatpush2.xpose.msra.mxu0 0.0
    %463 = vmatprep.mubr.f32.mxu0 0.0
    %464 = vmatmul.mubr.f32.gmra.mxu0 %v379
    %v465 = vpop.f32.mrf.mxu0
    %v466 = vadd.f32 %v200, %v465
    %v467 = vpop.f32.mrf.mxu0
    %468 = vmatprep.mubr.f32.mxu0 0.0
    %469 = vmatmul.mubr.f32.gmra.mxu0 %v381
    %v470 = vpop.f32.mrf.mxu0
    %v471 = vadd.f32 %v201, %v470
    %v472 = vpop.f32.mrf.mxu0
    %473 = vmatprep.mubr.f32.mxu0 0.0
    %474 = vmatmul.mubr.f32.gmra.mxu0 %v383
    %v475 = vpop.f32.mrf.mxu0
    %v476 = vadd.f32 %v202, %v475
    %v477 = vpop.f32.mrf.mxu0
    %478 = vmatprep.mubr.f32.mxu0 0.0
    %479 = vmatmul.mubr.f32.gmra.mxu0 %v385
    %v480 = vpop.f32.mrf.mxu0
    %v481 = vadd.f32 %v203, %v480
    %v482 = vpop.f32.mrf.mxu0
    %483 = vmatprep.mubr.f32.mxu0 0.0
    %484 = vmatmul.mubr.f32.gmra.mxu0 %v387
    %v485 = vpop.f32.mrf.mxu0
    %v486 = vadd.f32 %v204, %v485
    %v487 = vpop.f32.mrf.mxu0
    %488 = vdwg.mxu0
    %vm489 = vcmask 277504
    %v490 = vsel %vm489, %v466, -inf
    %491 = vmax.xlane.f32.xlu0 %v490
    %v492 = vpop.xlane.xlu0 %491
    %v493 = vsel %vm489, %v471, -inf
    %494 = vmax.xlane.f32.xlu0 %v493
    %v495 = vpop.xlane.xlu0 %494
    %v496 = vsel %vm489, %v476, -inf
    %497 = vmax.xlane.f32.xlu0 %v496
    %v498 = vpop.xlane.xlu0 %497
    %v499 = vsel %vm489, %v481, -inf
    %500 = vmax.xlane.f32.xlu0 %v499
    %v501 = vpop.xlane.xlu0 %500
    %vm502 = vcmask 271360
    %v503 = vsel %vm502, %v486, -inf
    %504 = vmax.xlane.f32.xlu0 %v503
    %v505 = vpop.xlane.xlu0 %504
    %v506 = vsub.f32 %v466, %v492
    %v507 = vsub.f32 %v471, %v495
    %v508 = vsub.f32 %v476, %v498
    %v509 = vsub.f32 %v481, %v501
    %v510 = vsub.f32 %v486, %v505
    %v511 = vmul.f32 %v506, 1.442695
    %v512 = vpow.pop %v511
    %v513 = vmul.f32 %v507, 1.442695
    %v514 = vpow.pop %v513
    %v515 = vmul.f32 %v508, 1.442695
    %v516 = vpow.pop %v515
    %v517 = vmul.f32 %v509, 1.442695
    %v518 = vpow.pop %v517
    %v519 = vmul.f32 %v510, 1.442695
    %v520 = vpow.pop %v519
    %v521 = vsel %vm489, %v512, 0.0
    %522 = vadd.xlane.f32.xlu0 %v521
    %v523 = vpop.xlane.xlu0 %522
    %v524 = vsel %vm489, %v514, 0.0
    %525 = vadd.xlane.f32.xlu0 %v524
    %v526 = vpop.xlane.xlu0 %525
    %v527 = vsel %vm489, %v516, 0.0
    %528 = vadd.xlane.f32.xlu0 %v527
    %v529 = vpop.xlane.xlu0 %528
    %v530 = vsel %vm489, %v518, 0.0
    %531 = vadd.xlane.f32.xlu0 %v530
    %v532 = vpop.xlane.xlu0 %531
    %v533 = vsel %vm502, %v520, 0.0
    %534 = vadd.xlane.f32.xlu0 %v533
    %v535 = vpop.xlane.xlu0 %534
    %v536 = vrcp.pop %v523
    %v537 = vrcp.pop %v526
    %v538 = vrcp.pop %v529
    %v539 = vrcp.pop %v532
    %v540 = vrcp.pop %v535
    %v541 = vmul.f32 %v512, %v536
    %v542 = vmul.f32 %v514, %v537
    %v543 = vmul.f32 %v516, %v538
    %v544 = vmul.f32 %v518, %v539
    %v545 = vmul.f32 %v520, %v540
    %546 = vrot.lane.b32.xlu0 %v340, 64
    %v547 = vpop.permute.xlu0 %546
    %548 = vrot.lane.b32.xlu0 %v345, 64
    %v549 = vpop.permute.xlu0 %548
    %550 = vrot.lane.b32.xlu0 %v350, 64
    %v551 = vpop.permute.xlu0 %550
    %552 = vrot.lane.b32.xlu0 %v355, 64
    %v553 = vpop.permute.xlu0 %552
    %554 = vrot.lane.b32.xlu0 %v360, 64
    %v555 = vpop.permute.xlu0 %554
    %v561 = vsel %vm489, %v541, 0
    %v564 = vsel %vm489, %v542, 0
    %v567 = vsel %vm489, %v543, 0
    %v570 = vsel %vm489, %v544, 0
    %v573 = vsel %vm489, %v545, 0
    %vm575 = vcmask 1041408
    %v576 = vsel %vm575, %v555, 0
    %578 = vmatprep.subr.mxu0 0.0
    %579 = vmatpush1.msra.mxu0 0.0
    %580 = vmatprep.subr.mxu0 0.0
    %581 = vmatpush1.msra.mxu0 0.0
    %582 = vmatprep.subr.mxu0 0.0
    %583 = vmatpush1.msra.mxu0 0.0
    %584 = vmatprep.subr.mxu0 0.0
    %585 = vmatpush1.msra.mxu0 0.0
    %586 = vmatprep.subr.mxu0 0.0
    %587 = vmatpush1.msra.mxu0 0.0
    %588 = vmatprep.subr.mxu0 0.0
    %589 = vmatpush1.msra.mxu0 0.0
    %590 = vmatprep.subr.mxu0 0.0
    %591 = vmatpush1.msra.mxu0 0.0
    %592 = vmatprep.subr.mxu0 0.0
    %593 = vmatpush1.msra.mxu0 0.0
    %594 = vmatprep.subr.mxu0 0.0
    %595 = vmatpush1.msra.mxu0 0.0
    %596 = vmatprep.subr.mxu0 0.0
    %597 = vmatpush1.msra.mxu0 0.0
    %598 = vmatprep.subr.mxu0 0.0
    %599 = vmatpush1.msra.mxu0 0.0
    %600 = vmatprep.subr.mxu0 0.0
    %601 = vmatpush1.msra.mxu0 %v576
    %602 = vmatprep.subr.mxu0 0.0
    %603 = vmatpush1.msra.mxu0 %v553
    %604 = vmatprep.subr.mxu0 0.0
    %605 = vmatpush1.msra.mxu0 %v551
    %606 = vmatprep.subr.mxu0 0.0
    %607 = vmatpush1.msra.mxu0 %v549
    %608 = vmatprep.subr.mxu0 0.0
    %609 = vmatpush1.msra.mxu0 %v547
    %610 = vmatprep.subr.mxu0 0.0
    %611 = vmatpush2.msra.mxu0 0.0
    %612 = vmatprep.subr.mxu0 0.0
    %613 = vmatpush2.msra.mxu0 0.0
    %614 = vmatprep.subr.mxu0 0.0
    %615 = vmatpush2.msra.mxu0 0.0
    %616 = vmatprep.subr.mxu0 0.0
    %617 = vmatpush2.msra.mxu0 0.0
    %618 = vmatprep.subr.mxu0 0.0
    %619 = vmatpush2.msra.mxu0 0.0
    %620 = vmatprep.subr.mxu0 0.0
    %621 = vmatpush2.msra.mxu0 0.0
    %622 = vmatprep.subr.mxu0 0.0
    %623 = vmatpush2.msra.mxu0 0.0
    %624 = vmatprep.subr.mxu0 0.0
    %625 = vmatpush2.msra.mxu0 0.0
    %626 = vmatprep.subr.mxu0 0.0
    %627 = vmatpush2.msra.mxu0 0.0
    %628 = vmatprep.subr.mxu0 0.0
    %629 = vmatpush2.msra.mxu0 0.0
    %630 = vmatprep.subr.mxu0 0.0
    %631 = vmatpush2.msra.mxu0 0.0
    %632 = vmatprep.subr.mxu0 0.0
    %633 = vmatpush2.msra.mxu0 0.0
    %634 = vmatprep.subr.mxu0 0.0
    %635 = vmatpush2.msra.mxu0 0.0
    %636 = vmatprep.subr.mxu0 0.0
    %637 = vmatpush2.msra.mxu0 0.0
    %638 = vmatprep.subr.mxu0 0.0
    %639 = vmatpush2.msra.mxu0 0.0
    %640 = vmatprep.subr.mxu0 0.0
    %641 = vmatpush2.msra.mxu0 0.0
    %642 = vmatprep.mubr.f32.mxu0 0.0
    %643 = vmatmul.mubr.f32.gmra.mxu0 %v561
    %v644 = vpop.f32.mrf.mxu0
    %v645 = vadd.f32 0.0, %v644
    %v646 = vpop.f32.mrf.mxu0
    %647 = vmatprep.mubr.f32.mxu0 0.0
    %648 = vmatmul.mubr.f32.gmra.mxu0 %v564
    %v649 = vpop.f32.mrf.mxu0
    %v650 = vadd.f32 0.0, %v649
    %v651 = vpop.f32.mrf.mxu0
    %652 = vmatprep.mubr.f32.mxu0 0.0
    %653 = vmatmul.mubr.f32.gmra.mxu0 %v567
    %v654 = vpop.f32.mrf.mxu0
    %v655 = vadd.f32 0.0, %v654
    %v656 = vpop.f32.mrf.mxu0
    %657 = vmatprep.mubr.f32.mxu0 0.0
    %658 = vmatmul.mubr.f32.gmra.mxu0 %v570
    %v659 = vpop.f32.mrf.mxu0
    %v660 = vadd.f32 0.0, %v659
    %v661 = vpop.f32.mrf.mxu0
    %662 = vmatprep.mubr.f32.mxu0 0.0
    %663 = vmatmul.mubr.f32.gmra.mxu0 %v573
    %v664 = vpop.f32.mrf.mxu0
    %v665 = vadd.f32 0.0, %v664
    %v666 = vpop.f32.mrf.mxu0
    %667 = vdwg.mxu0
    %668 = vrot.lane.b32.xlu0 %v340, 120
    %v669 = vpop.permute.xlu0 %668
    %670 = vrot.lane.b32.xlu0 %v345, 120
    %v671 = vpop.permute.xlu0 %670
    %672 = vrot.lane.b32.xlu0 %v350, 120
    %v673 = vpop.permute.xlu0 %672
    %674 = vrot.lane.b32.xlu0 %v355, 120
    %v675 = vpop.permute.xlu0 %674
    %676 = vrot.lane.b32.xlu0 %v360, 120
    %v677 = vpop.permute.xlu0 %676
    %678 = vrot.lane.b32.xlu0 %v340, 88
    %v679 = vpop.permute.xlu0 %678
    %680 = vrot.lane.b32.xlu0 %v345, 88
    %v681 = vpop.permute.xlu0 %680
    %682 = vrot.lane.b32.xlu0 %v350, 88
    %v683 = vpop.permute.xlu0 %682
    %684 = vrot.lane.b32.xlu0 %v355, 88
    %v685 = vpop.permute.xlu0 %684
    %686 = vrot.lane.b32.xlu0 %v360, 88
    %v687 = vpop.permute.xlu0 %686
    %v688 = vsel %vm378, %v669, 0
    %v690 = vsel %vm378, %v671, 0
    %v692 = vsel %vm378, %v673, 0
    %v694 = vsel %vm378, %v675, 0
    %v696 = vsel %vm378, %v677, 0
    %v698 = vsel %vm378, %v679, 0
    %v700 = vsel %vm378, %v681, 0
    %v702 = vsel %vm378, %v683, 0
    %v704 = vsel %vm378, %v685, 0
    %v706 = vsel %vm378, %v687, 0
    %708 = vmatprep.subr.mxu0 0.0
    %709 = vmatpush1.xpose.msra.mxu0 0.0
    %710 = vmatprep.subr.mxu0 0.0
    %711 = vmatpush1.xpose.msra.mxu0 0.0
    %712 = vmatprep.subr.mxu0 0.0
    %713 = vmatpush1.xpose.msra.mxu0 0.0
    %714 = vmatprep.subr.mxu0 0.0
    %715 = vmatpush1.xpose.msra.mxu0 0.0
    %716 = vmatprep.subr.mxu0 0.0
    %717 = vmatpush1.xpose.msra.mxu0 0.0
    %718 = vmatprep.subr.mxu0 0.0
    %719 = vmatpush1.xpose.msra.mxu0 0.0
    %720 = vmatprep.subr.mxu0 0.0
    %721 = vmatpush1.xpose.msra.mxu0 0.0
    %722 = vmatprep.subr.mxu0 0.0
    %723 = vmatpush1.xpose.msra.mxu0 0.0
    %724 = vmatprep.subr.mxu0 0.0
    %725 = vmatpush1.xpose.msra.mxu0 0.0
    %726 = vmatprep.subr.mxu0 0.0
    %727 = vmatpush1.xpose.msra.mxu0 0.0
    %728 = vmatprep.subr.mxu0 0.0
    %729 = vmatpush1.xpose.msra.mxu0 0.0
    %730 = vmatprep.subr.mxu0 0.0
    %731 = vmatpush1.xpose.msra.mxu0 %v706
    %732 = vmatprep.subr.mxu0 0.0
    %733 = vmatpush1.xpose.msra.mxu0 %v704
    %734 = vmatprep.subr.mxu0 0.0
    %735 = vmatpush1.xpose.msra.mxu0 %v702
    %736 = vmatprep.subr.mxu0 0.0
    %737 = vmatpush1.xpose.msra.mxu0 %v700
    %738 = vmatprep.subr.mxu0 0.0
    %739 = vmatpush1.xpose.msra.mxu0 %v698
    %740 = vmatprep.subr.mxu0 0.0
    %741 = vmatpush2.xpose.msra.mxu0 0.0
    %742 = vmatprep.subr.mxu0 0.0
    %743 = vmatpush2.xpose.msra.mxu0 0.0
    %744 = vmatprep.subr.mxu0 0.0
    %745 = vmatpush2.xpose.msra.mxu0 0.0
    %746 = vmatprep.subr.mxu0 0.0
    %747 = vmatpush2.xpose.msra.mxu0 0.0
    %748 = vmatprep.subr.mxu0 0.0
    %749 = vmatpush2.xpose.msra.mxu0 0.0
    %750 = vmatprep.subr.mxu0 0.0
    %751 = vmatpush2.xpose.msra.mxu0 0.0
    %752 = vmatprep.subr.mxu0 0.0
    %753 = vmatpush2.xpose.msra.mxu0 0.0
    %754 = vmatprep.subr.mxu0 0.0
    %755 = vmatpush2.xpose.msra.mxu0 0.0
    %756 = vmatprep.subr.mxu0 0.0
    %757 = vmatpush2.xpose.msra.mxu0 0.0
    %758 = vmatprep.subr.mxu0 0.0
    %759 = vmatpush2.xpose.msra.mxu0 0.0
    %760 = vmatprep.subr.mxu0 0.0
    %761 = vmatpush2.xpose.msra.mxu0 0.0
    %762 = vmatprep.subr.mxu0 0.0
    %763 = vmatpush2.xpose.msra.mxu0 0.0
    %764 = vmatprep.subr.mxu0 0.0
    %765 = vmatpush2.xpose.msra.mxu0 0.0
    %766 = vmatprep.subr.mxu0 0.0
    %767 = vmatpush2.xpose.msra.mxu0 0.0
    %768 = vmatprep.subr.mxu0 0.0
    %769 = vmatpush2.xpose.msra.mxu0 0.0
    %770 = vmatprep.subr.mxu0 0.0
    %771 = vmatpush2.xpose.msra.mxu0 0.0
    %772 = vmatprep.mubr.f32.mxu0 0.0
    %773 = vmatmul.mubr.f32.gmra.mxu0 %v688
    %v774 = vpop.f32.mrf.mxu0
    %v775 = vadd.f32 %v200, %v774
    %v776 = vpop.f32.mrf.mxu0
    %777 = vmatprep.mubr.f32.mxu0 0.0
    %778 = vmatmul.mubr.f32.gmra.mxu0 %v690
    %v779 = vpop.f32.mrf.mxu0
    %v780 = vadd.f32 %v201, %v779
    %v781 = vpop.f32.mrf.mxu0
    %782 = vmatprep.mubr.f32.mxu0 0.0
    %783 = vmatmul.mubr.f32.gmra.mxu0 %v692
    %v784 = vpop.f32.mrf.mxu0
    %v785 = vadd.f32 %v202, %v784
    %v786 = vpop.f32.mrf.mxu0
    %787 = vmatprep.mubr.f32.mxu0 0.0
    %788 = vmatmul.mubr.f32.gmra.mxu0 %v694
    %v789 = vpop.f32.mrf.mxu0
    %v790 = vadd.f32 %v203, %v789
    %v791 = vpop.f32.mrf.mxu0
    %792 = vmatprep.mubr.f32.mxu0 0.0
    %793 = vmatmul.mubr.f32.gmra.mxu0 %v696
    %v794 = vpop.f32.mrf.mxu0
    %v795 = vadd.f32 %v204, %v794
    %v796 = vpop.f32.mrf.mxu0
    %797 = vdwg.mxu0
    %v798 = vsel %vm489, %v775, -inf
    %799 = vmax.xlane.f32.xlu0 %v798
    %v800 = vpop.xlane.xlu0 %799
    %v801 = vsel %vm489, %v780, -inf
    %802 = vmax.xlane.f32.xlu0 %v801
    %v803 = vpop.xlane.xlu0 %802
    %v804 = vsel %vm489, %v785, -inf
    %805 = vmax.xlane.f32.xlu0 %v804
    %v806 = vpop.xlane.xlu0 %805
    %v807 = vsel %vm489, %v790, -inf
    %808 = vmax.xlane.f32.xlu0 %v807
    %v809 = vpop.xlane.xlu0 %808
    %v810 = vsel %vm502, %v795, -inf
    %811 = vmax.xlane.f32.xlu0 %v810
    %v812 = vpop.xlane.xlu0 %811
    %v813 = vsub.f32 %v775, %v800
    %v814 = vsub.f32 %v780, %v803
    %v815 = vsub.f32 %v785, %v806
    %v816 = vsub.f32 %v790, %v809
    %v817 = vsub.f32 %v795, %v812
    %v818 = vmul.f32 %v813, 1.442695
    %v819 = vpow.pop %v818
    %v820 = vmul.f32 %v814, 1.442695
    %v821 = vpow.pop %v820
    %v822 = vmul.f32 %v815, 1.442695
    %v823 = vpow.pop %v822
    %v824 = vmul.f32 %v816, 1.442695
    %v825 = vpow.pop %v824
    %v826 = vmul.f32 %v817, 1.442695
    %v827 = vpow.pop %v826
    %v828 = vsel %vm489, %v819, 0.0
    %829 = vadd.xlane.f32.xlu0 %v828
    %v830 = vpop.xlane.xlu0 %829
    %v831 = vsel %vm489, %v821, 0.0
    %832 = vadd.xlane.f32.xlu0 %v831
    %v833 = vpop.xlane.xlu0 %832
    %v834 = vsel %vm489, %v823, 0.0
    %835 = vadd.xlane.f32.xlu0 %v834
    %v836 = vpop.xlane.xlu0 %835
    %v837 = vsel %vm489, %v825, 0.0
    %838 = vadd.xlane.f32.xlu0 %v837
    %v839 = vpop.xlane.xlu0 %838
    %v840 = vsel %vm502, %v827, 0.0
    %841 = vadd.xlane.f32.xlu0 %v840
    %v842 = vpop.xlane.xlu0 %841
    %v843 = vrcp.pop %v830
    %v844 = vrcp.pop %v833
    %v845 = vrcp.pop %v836
    %v846 = vrcp.pop %v839
    %v847 = vrcp.pop %v842
    %v848 = vmul.f32 %v819, %v843
    %v849 = vmul.f32 %v821, %v844
    %v850 = vmul.f32 %v823, %v845
    %v851 = vmul.f32 %v825, %v846
    %v852 = vmul.f32 %v827, %v847
    %853 = vrot.lane.b32.xlu0 %v340, 56
    %v854 = vpop.permute.xlu0 %853
    %855 = vrot.lane.b32.xlu0 %v345, 56
    %v856 = vpop.permute.xlu0 %855
    %857 = vrot.lane.b32.xlu0 %v350, 56
    %v858 = vpop.permute.xlu0 %857
    %859 = vrot.lane.b32.xlu0 %v355, 56
    %v860 = vpop.permute.xlu0 %859
    %861 = vrot.lane.b32.xlu0 %v360, 56
    %v862 = vpop.permute.xlu0 %861
    %v868 = vsel %vm489, %v848, 0
    %v871 = vsel %vm489, %v849, 0
    %v874 = vsel %vm489, %v850, 0
    %v877 = vsel %vm489, %v851, 0
    %v880 = vsel %vm489, %v852, 0
    %v882 = vsel %vm575, %v862, 0
    %884 = vmatprep.subr.mxu0 0.0
    %885 = vmatpush1.msra.mxu0 0.0
    %886 = vmatprep.subr.mxu0 0.0
    %887 = vmatpush1.msra.mxu0 0.0
    %888 = vmatprep.subr.mxu0 0.0
    %889 = vmatpush1.msra.mxu0 0.0
    %890 = vmatprep.subr.mxu0 0.0
    %891 = vmatpush1.msra.mxu0 0.0
    %892 = vmatprep.subr.mxu0 0.0
    %893 = vmatpush1.msra.mxu0 0.0
    %894 = vmatprep.subr.mxu0 0.0
    %895 = vmatpush1.msra.mxu0 0.0
    %896 = vmatprep.subr.mxu0 0.0
    %897 = vmatpush1.msra.mxu0 0.0
    %898 = vmatprep.subr.mxu0 0.0
    %899 = vmatpush1.msra.mxu0 0.0
    %900 = vmatprep.subr.mxu0 0.0
    %901 = vmatpush1.msra.mxu0 0.0
    %902 = vmatprep.subr.mxu0 0.0
    %903 = vmatpush1.msra.mxu0 0.0
    %904 = vmatprep.subr.mxu0 0.0
    %905 = vmatpush1.msra.mxu0 0.0
    %906 = vmatprep.subr.mxu0 0.0
    %907 = vmatpush1.msra.mxu0 %v882
    %908 = vmatprep.subr.mxu0 0.0
    %909 = vmatpush1.msra.mxu0 %v860
    %910 = vmatprep.subr.mxu0 0.0
    %911 = vmatpush1.msra.mxu0 %v858
    %912 = vmatprep.subr.mxu0 0.0
    %913 = vmatpush1.msra.mxu0 %v856
    %914 = vmatprep.subr.mxu0 0.0
    %915 = vmatpush1.msra.mxu0 %v854
    %916 = vmatprep.subr.mxu0 0.0
    %917 = vmatpush2.msra.mxu0 0.0
    %918 = vmatprep.subr.mxu0 0.0
    %919 = vmatpush2.msra.mxu0 0.0
    %920 = vmatprep.subr.mxu0 0.0
    %921 = vmatpush2.msra.mxu0 0.0
    %922 = vmatprep.subr.mxu0 0.0
    %923 = vmatpush2.msra.mxu0 0.0
    %924 = vmatprep.subr.mxu0 0.0
    %925 = vmatpush2.msra.mxu0 0.0
    %926 = vmatprep.subr.mxu0 0.0
    %927 = vmatpush2.msra.mxu0 0.0
    %928 = vmatprep.subr.mxu0 0.0
    %929 = vmatpush2.msra.mxu0 0.0
    %930 = vmatprep.subr.mxu0 0.0
    %931 = vmatpush2.msra.mxu0 0.0
    %932 = vmatprep.subr.mxu0 0.0
    %933 = vmatpush2.msra.mxu0 0.0
    %934 = vmatprep.subr.mxu0 0.0
    %935 = vmatpush2.msra.mxu0 0.0
    %936 = vmatprep.subr.mxu0 0.0
    %937 = vmatpush2.msra.mxu0 0.0
    %938 = vmatprep.subr.mxu0 0.0
    %939 = vmatpush2.msra.mxu0 0.0
    %940 = vmatprep.subr.mxu0 0.0
    %941 = vmatpush2.msra.mxu0 0.0
    %942 = vmatprep.subr.mxu0 0.0
    %943 = vmatpush2.msra.mxu0 0.0
    %944 = vmatprep.subr.mxu0 0.0
    %945 = vmatpush2.msra.mxu0 0.0
    %946 = vmatprep.subr.mxu0 0.0
    %947 = vmatpush2.msra.mxu0 0.0
    %948 = vmatprep.mubr.f32.mxu0 0.0
    %949 = vmatmul.mubr.f32.gmra.mxu0 %v868
    %v950 = vpop.f32.mrf.mxu0
    %v951 = vadd.f32 0.0, %v950
    %v952 = vpop.f32.mrf.mxu0
    %953 = vmatprep.mubr.f32.mxu0 0.0
    %954 = vmatmul.mubr.f32.gmra.mxu0 %v871
    %v955 = vpop.f32.mrf.mxu0
    %v956 = vadd.f32 0.0, %v955
    %v957 = vpop.f32.mrf.mxu0
    %958 = vmatprep.mubr.f32.mxu0 0.0
    %959 = vmatmul.mubr.f32.gmra.mxu0 %v874
    %v960 = vpop.f32.mrf.mxu0
    %v961 = vadd.f32 0.0, %v960
    %v962 = vpop.f32.mrf.mxu0
    %963 = vmatprep.mubr.f32.mxu0 0.0
    %964 = vmatmul.mubr.f32.gmra.mxu0 %v877
    %v965 = vpop.f32.mrf.mxu0
    %v966 = vadd.f32 0.0, %v965
    %v967 = vpop.f32.mrf.mxu0
    %968 = vmatprep.mubr.f32.mxu0 0.0
    %969 = vmatmul.mubr.f32.gmra.mxu0 %v880
    %v970 = vpop.f32.mrf.mxu0
    %v971 = vadd.f32 0.0, %v970
    %v972 = vpop.f32.mrf.mxu0
    %973 = vdwg.mxu0
    %974 = vrot.lane.b32.xlu0 %v340, 112
    %v975 = vpop.permute.xlu0 %974
    %976 = vrot.lane.b32.xlu0 %v345, 112
    %v977 = vpop.permute.xlu0 %976
    %978 = vrot.lane.b32.xlu0 %v350, 112
    %v979 = vpop.permute.xlu0 %978
    %980 = vrot.lane.b32.xlu0 %v355, 112
    %v981 = vpop.permute.xlu0 %980
    %982 = vrot.lane.b32.xlu0 %v360, 112
    %v983 = vpop.permute.xlu0 %982
    %984 = vrot.lane.b32.xlu0 %v340, 80
    %v985 = vpop.permute.xlu0 %984
    %986 = vrot.lane.b32.xlu0 %v345, 80
    %v987 = vpop.permute.xlu0 %986
    %988 = vrot.lane.b32.xlu0 %v350, 80
    %v989 = vpop.permute.xlu0 %988
    %990 = vrot.lane.b32.xlu0 %v355, 80
    %v991 = vpop.permute.xlu0 %990
    %992 = vrot.lane.b32.xlu0 %v360, 80
    %v993 = vpop.permute.xlu0 %992
    %v994 = vsel %vm378, %v975, 0
    %v996 = vsel %vm378, %v977, 0
    %v998 = vsel %vm378, %v979, 0
    %v1000 = vsel %vm378, %v981, 0
    %v1002 = vsel %vm378, %v983, 0
    %v1004 = vsel %vm378, %v985, 0
    %v1006 = vsel %vm378, %v987, 0
    %v1008 = vsel %vm378, %v989, 0
    %v1010 = vsel %vm378, %v991, 0
    %v1012 = vsel %vm378, %v993, 0
    %1014 = vmatprep.subr.mxu0 0.0
    %1015 = vmatpush1.xpose.msra.mxu0 0.0
    %1016 = vmatprep.subr.mxu0 0.0
    %1017 = vmatpush1.xpose.msra.mxu0 0.0
    %1018 = vmatprep.subr.mxu0 0.0
    %1019 = vmatpush1.xpose.msra.mxu0 0.0
    %1020 = vmatprep.subr.mxu0 0.0
    %1021 = vmatpush1.xpose.msra.mxu0 0.0
    %1022 = vmatprep.subr.mxu0 0.0
    %1023 = vmatpush1.xpose.msra.mxu0 0.0
    %1024 = vmatprep.subr.mxu0 0.0
    %1025 = vmatpush1.xpose.msra.mxu0 0.0
    %1026 = vmatprep.subr.mxu0 0.0
    %1027 = vmatpush1.xpose.msra.mxu0 0.0
    %1028 = vmatprep.subr.mxu0 0.0
    %1029 = vmatpush1.xpose.msra.mxu0 0.0
    %1030 = vmatprep.subr.mxu0 0.0
    %1031 = vmatpush1.xpose.msra.mxu0 0.0
    %1032 = vmatprep.subr.mxu0 0.0
    %1033 = vmatpush1.xpose.msra.mxu0 0.0
    %1034 = vmatprep.subr.mxu0 0.0
    %1035 = vmatpush1.xpose.msra.mxu0 0.0
    %1036 = vmatprep.subr.mxu0 0.0
    %1037 = vmatpush1.xpose.msra.mxu0 %v1012
    %1038 = vmatprep.subr.mxu0 0.0
    %1039 = vmatpush1.xpose.msra.mxu0 %v1010
    %1040 = vmatprep.subr.mxu0 0.0
    %1041 = vmatpush1.xpose.msra.mxu0 %v1008
    %1042 = vmatprep.subr.mxu0 0.0
    %1043 = vmatpush1.xpose.msra.mxu0 %v1006
    %1044 = vmatprep.subr.mxu0 0.0
    %1045 = vmatpush1.xpose.msra.mxu0 %v1004
    %1046 = vmatprep.subr.mxu0 0.0
    %1047 = vmatpush2.xpose.msra.mxu0 0.0
    %1048 = vmatprep.subr.mxu0 0.0
    %1049 = vmatpush2.xpose.msra.mxu0 0.0
    %1050 = vmatprep.subr.mxu0 0.0
    %1051 = vmatpush2.xpose.msra.mxu0 0.0
    %1052 = vmatprep.subr.mxu0 0.0
    %1053 = vmatpush2.xpose.msra.mxu0 0.0
    %1054 = vmatprep.subr.mxu0 0.0
    %1055 = vmatpush2.xpose.msra.mxu0 0.0
    %1056 = vmatprep.subr.mxu0 0.0
    %1057 = vmatpush2.xpose.msra.mxu0 0.0
    %1058 = vmatprep.subr.mxu0 0.0
    %1059 = vmatpush2.xpose.msra.mxu0 0.0
    %1060 = vmatprep.subr.mxu0 0.0
    %1061 = vmatpush2.xpose.msra.mxu0 0.0
    %1062 = vmatprep.subr.mxu0 0.0
    %1063 = vmatpush2.xpose.msra.mxu0 0.0
    %1064 = vmatprep.subr.mxu0 0.0
    %1065 = vmatpush2.xpose.msra.mxu0 0.0
    %1066 = vmatprep.subr.mxu0 0.0
    %1067 = vmatpush2.xpose.msra.mxu0 0.0
    %1068 = vmatprep.subr.mxu0 0.0
    %1069 = vmatpush2.xpose.msra.mxu0 0.0
    %1070 = vmatprep.subr.mxu0 0.0
    %1071 = vmatpush2.xpose.msra.mxu0 0.0
    %1072 = vmatprep.subr.mxu0 0.0
    %1073 = vmatpush2.xpose.msra.mxu0 0.0
    %1074 = vmatprep.subr.mxu0 0.0
    %1075 = vmatpush2.xpose.msra.mxu0 0.0
    %1076 = vmatprep.subr.mxu0 0.0
    %1077 = vmatpush2.xpose.msra.mxu0 0.0
    %1078 = vmatprep.mubr.f32.mxu0 0.0
    %1079 = vmatmul.mubr.f32.gmra.mxu0 %v994
    %v1080 = vpop.f32.mrf.mxu0
    %v1081 = vadd.f32 %v200, %v1080
    %v1082 = vpop.f32.mrf.mxu0
    %1083 = vmatprep.mubr.f32.mxu0 0.0
    %1084 = vmatmul.mubr.f32.gmra.mxu0 %v996
    %v1085 = vpop.f32.mrf.mxu0
    %v1086 = vadd.f32 %v201, %v1085
    %v1087 = vpop.f32.mrf.mxu0
    %1088 = vmatprep.mubr.f32.mxu0 0.0
    %1089 = vmatmul.mubr.f32.gmra.mxu0 %v998
    %v1090 = vpop.f32.mrf.mxu0
    %v1091 = vadd.f32 %v202, %v1090
    %v1092 = vpop.f32.mrf.mxu0
    %1093 = vmatprep.mubr.f32.mxu0 0.0
    %1094 = vmatmul.mubr.f32.gmra.mxu0 %v1000
    %v1095 = vpop.f32.mrf.mxu0
    %v1096 = vadd.f32 %v203, %v1095
    %v1097 = vpop.f32.mrf.mxu0
    %1098 = vmatprep.mubr.f32.mxu0 0.0
    %1099 = vmatmul.mubr.f32.gmra.mxu0 %v1002
    %v1100 = vpop.f32.mrf.mxu0
    %v1101 = vadd.f32 %v204, %v1100
    %v1102 = vpop.f32.mrf.mxu0
    %1103 = vdwg.mxu0
    %v1104 = vsel %vm489, %v1081, -inf
    %1105 = vmax.xlane.f32.xlu0 %v1104
    %v1106 = vpop.xlane.xlu0 %1105
    %v1107 = vsel %vm489, %v1086, -inf
    %1108 = vmax.xlane.f32.xlu0 %v1107
    %v1109 = vpop.xlane.xlu0 %1108
    %v1110 = vsel %vm489, %v1091, -inf
    %1111 = vmax.xlane.f32.xlu0 %v1110
    %v1112 = vpop.xlane.xlu0 %1111
    %v1113 = vsel %vm489, %v1096, -inf
    %1114 = vmax.xlane.f32.xlu0 %v1113
    %v1115 = vpop.xlane.xlu0 %1114
    %v1116 = vsel %vm502, %v1101, -inf
    %1117 = vmax.xlane.f32.xlu0 %v1116
    %v1118 = vpop.xlane.xlu0 %1117
    %v1119 = vsub.f32 %v1081, %v1106
    %v1120 = vsub.f32 %v1086, %v1109
    %v1121 = vsub.f32 %v1091, %v1112
    %v1122 = vsub.f32 %v1096, %v1115
    %v1123 = vsub.f32 %v1101, %v1118
    %v1124 = vmul.f32 %v1119, 1.442695
    %v1125 = vpow.pop %v1124
    %v1126 = vmul.f32 %v1120, 1.442695
    %v1127 = vpow.pop %v1126
    %v1128 = vmul.f32 %v1121, 1.442695
    %v1129 = vpow.pop %v1128
    %v1130 = vmul.f32 %v1122, 1.442695
    %v1131 = vpow.pop %v1130
    %v1132 = vmul.f32 %v1123, 1.442695
    %v1133 = vpow.pop %v1132
    %v1134 = vsel %vm489, %v1125, 0.0
    %1135 = vadd.xlane.f32.xlu0 %v1134
    %v1136 = vpop.xlane.xlu0 %1135
    %v1137 = vsel %vm489, %v1127, 0.0
    %1138 = vadd.xlane.f32.xlu0 %v1137
    %v1139 = vpop.xlane.xlu0 %1138
    %v1140 = vsel %vm489, %v1129, 0.0
    %1141 = vadd.xlane.f32.xlu0 %v1140
    %v1142 = vpop.xlane.xlu0 %1141
    %v1143 = vsel %vm489, %v1131, 0.0
    %1144 = vadd.xlane.f32.xlu0 %v1143
    %v1145 = vpop.xlane.xlu0 %1144
    %v1146 = vsel %vm502, %v1133, 0.0
    %1147 = vadd.xlane.f32.xlu0 %v1146
    %v1148 = vpop.xlane.xlu0 %1147
    %v1149 = vrcp.pop %v1136
    %v1150 = vrcp.pop %v1139
    %v1151 = vrcp.pop %v1142
    %v1152 = vrcp.pop %v1145
    %v1153 = vrcp.pop %v1148
    %v1154 = vmul.f32 %v1125, %v1149
    %v1155 = vmul.f32 %v1127, %v1150
    %v1156 = vmul.f32 %v1129, %v1151
    %v1157 = vmul.f32 %v1131, %v1152
    %v1158 = vmul.f32 %v1133, %v1153
    %1159 = vrot.lane.b32.xlu0 %v340, 48
    %v1160 = vpop.permute.xlu0 %1159
    %1161 = vrot.lane.b32.xlu0 %v345, 48
    %v1162 = vpop.permute.xlu0 %1161
    %1163 = vrot.lane.b32.xlu0 %v350, 48
    %v1164 = vpop.permute.xlu0 %1163
    %1165 = vrot.lane.b32.xlu0 %v355, 48
    %v1166 = vpop.permute.xlu0 %1165
    %1167 = vrot.lane.b32.xlu0 %v360, 48
    %v1168 = vpop.permute.xlu0 %1167
    %v1174 = vsel %vm489, %v1154, 0
    %v1177 = vsel %vm489, %v1155, 0
    %v1180 = vsel %vm489, %v1156, 0
    %v1183 = vsel %vm489, %v1157, 0
    %v1186 = vsel %vm489, %v1158, 0
    %v1188 = vsel %vm575, %v1168, 0
    %1190 = vmatprep.subr.mxu0 0.0
    %1191 = vmatpush1.msra.mxu0 0.0
    %1192 = vmatprep.subr.mxu0 0.0
    %1193 = vmatpush1.msra.mxu0 0.0
    %1194 = vmatprep.subr.mxu0 0.0
    %1195 = vmatpush1.msra.mxu0 0.0
    %1196 = vmatprep.subr.mxu0 0.0
    %1197 = vmatpush1.msra.mxu0 0.0
    %1198 = vmatprep.subr.mxu0 0.0
    %1199 = vmatpush1.msra.mxu0 0.0
    %1200 = vmatprep.subr.mxu0 0.0
    %1201 = vmatpush1.msra.mxu0 0.0
    %1202 = vmatprep.subr.mxu0 0.0
    %1203 = vmatpush1.msra.mxu0 0.0
    %1204 = vmatprep.subr.mxu0 0.0
    %1205 = vmatpush1.msra.mxu0 0.0
    %1206 = vmatprep.subr.mxu0 0.0
    %1207 = vmatpush1.msra.mxu0 0.0
    %1208 = vmatprep.subr.mxu0 0.0
    %1209 = vmatpush1.msra.mxu0 0.0
    %1210 = vmatprep.subr.mxu0 0.0
    %1211 = vmatpush1.msra.mxu0 0.0
    %1212 = vmatprep.subr.mxu0 0.0
    %1213 = vmatpush1.msra.mxu0 %v1188
    %1214 = vmatprep.subr.mxu0 0.0
    %1215 = vmatpush1.msra.mxu0 %v1166
    %1216 = vmatprep.subr.mxu0 0.0
    %1217 = vmatpush1.msra.mxu0 %v1164
    %1218 = vmatprep.subr.mxu0 0.0
    %1219 = vmatpush1.msra.mxu0 %v1162
    %1220 = vmatprep.subr.mxu0 0.0
    %1221 = vmatpush1.msra.mxu0 %v1160
    %1222 = vmatprep.subr.mxu0 0.0
    %1223 = vmatpush2.msra.mxu0 0.0
    %1224 = vmatprep.subr.mxu0 0.0
    %1225 = vmatpush2.msra.mxu0 0.0
    %1226 = vmatprep.subr.mxu0 0.0
    %1227 = vmatpush2.msra.mxu0 0.0
    %1228 = vmatprep.subr.mxu0 0.0
    %1229 = vmatpush2.msra.mxu0 0.0
    %1230 = vmatprep.subr.mxu0 0.0
    %1231 = vmatpush2.msra.mxu0 0.0
    %1232 = vmatprep.subr.mxu0 0.0
    %1233 = vmatpush2.msra.mxu0 0.0
    %1234 = vmatprep.subr.mxu0 0.0
    %1235 = vmatpush2.msra.mxu0 0.0
    %1236 = vmatprep.subr.mxu0 0.0
    %1237 = vmatpush2.msra.mxu0 0.0
    %1238 = vmatprep.subr.mxu0 0.0
    %1239 = vmatpush2.msra.mxu0 0.0
    %1240 = vmatprep.subr.mxu0 0.0
    %1241 = vmatpush2.msra.mxu0 0.0
    %1242 = vmatprep.subr.mxu0 0.0
    %1243 = vmatpush2.msra.mxu0 0.0
    %1244 = vmatprep.subr.mxu0 0.0
    %1245 = vmatpush2.msra.mxu0 0.0
    %1246 = vmatprep.subr.mxu0 0.0
    %1247 = vmatpush2.msra.mxu0 0.0
    %1248 = vmatprep.subr.mxu0 0.0
    %1249 = vmatpush2.msra.mxu0 0.0
    %1250 = vmatprep.subr.mxu0 0.0
    %1251 = vmatpush2.msra.mxu0 0.0
    %1252 = vmatprep.subr.mxu0 0.0
    %1253 = vmatpush2.msra.mxu0 0.0
    %1254 = vmatprep.mubr.f32.mxu0 0.0
    %1255 = vmatmul.mubr.f32.gmra.mxu0 %v1174
    %v1256 = vpop.f32.mrf.mxu0
    %v1257 = vadd.f32 0.0, %v1256
    %v1258 = vpop.f32.mrf.mxu0
    %1259 = vmatprep.mubr.f32.mxu0 0.0
    %1260 = vmatmul.mubr.f32.gmra.mxu0 %v1177
    %v1261 = vpop.f32.mrf.mxu0
    %v1262 = vadd.f32 0.0, %v1261
    %v1263 = vpop.f32.mrf.mxu0
    %1264 = vmatprep.mubr.f32.mxu0 0.0
    %1265 = vmatmul.mubr.f32.gmra.mxu0 %v1180
    %v1266 = vpop.f32.mrf.mxu0
    %v1267 = vadd.f32 0.0, %v1266
    %v1268 = vpop.f32.mrf.mxu0
    %1269 = vmatprep.mubr.f32.mxu0 0.0
    %1270 = vmatmul.mubr.f32.gmra.mxu0 %v1183
    %v1271 = vpop.f32.mrf.mxu0
    %v1272 = vadd.f32 0.0, %v1271
    %v1273 = vpop.f32.mrf.mxu0
    %1274 = vmatprep.mubr.f32.mxu0 0.0
    %1275 = vmatmul.mubr.f32.gmra.mxu0 %v1186
    %v1276 = vpop.f32.mrf.mxu0
    %v1277 = vadd.f32 0.0, %v1276
    %v1278 = vpop.f32.mrf.mxu0
    %1279 = vdwg.mxu0
    %1280 = vrot.lane.b32.xlu0 %v340, 104
    %v1281 = vpop.permute.xlu0 %1280
    %1282 = vrot.lane.b32.xlu0 %v345, 104
    %v1283 = vpop.permute.xlu0 %1282
    %1284 = vrot.lane.b32.xlu0 %v350, 104
    %v1285 = vpop.permute.xlu0 %1284
    %1286 = vrot.lane.b32.xlu0 %v355, 104
    %v1287 = vpop.permute.xlu0 %1286
    %1288 = vrot.lane.b32.xlu0 %v360, 104
    %v1289 = vpop.permute.xlu0 %1288
    %1290 = vrot.lane.b32.xlu0 %v340, 72
    %v1291 = vpop.permute.xlu0 %1290
    %1292 = vrot.lane.b32.xlu0 %v345, 72
    %v1293 = vpop.permute.xlu0 %1292
    %1294 = vrot.lane.b32.xlu0 %v350, 72
    %v1295 = vpop.permute.xlu0 %1294
    %1296 = vrot.lane.b32.xlu0 %v355, 72
    %v1297 = vpop.permute.xlu0 %1296
    %1298 = vrot.lane.b32.xlu0 %v360, 72
    %v1299 = vpop.permute.xlu0 %1298
    %v1300 = vsel %vm378, %v1281, 0
    %v1302 = vsel %vm378, %v1283, 0
    %v1304 = vsel %vm378, %v1285, 0
    %v1306 = vsel %vm378, %v1287, 0
    %v1308 = vsel %vm378, %v1289, 0
    %v1310 = vsel %vm378, %v1291, 0
    %v1312 = vsel %vm378, %v1293, 0
    %v1314 = vsel %vm378, %v1295, 0
    %v1316 = vsel %vm378, %v1297, 0
    %v1318 = vsel %vm378, %v1299, 0
    %1320 = vmatprep.subr.mxu0 0.0
    %1321 = vmatpush1.xpose.msra.mxu0 0.0
    %1322 = vmatprep.subr.mxu0 0.0
    %1323 = vmatpush1.xpose.msra.mxu0 0.0
    %1324 = vmatprep.subr.mxu0 0.0
    %1325 = vmatpush1.xpose.msra.mxu0 0.0
    %1326 = vmatprep.subr.mxu0 0.0
    %1327 = vmatpush1.xpose.msra.mxu0 0.0
    %1328 = vmatprep.subr.mxu0 0.0
    %1329 = vmatpush1.xpose.msra.mxu0 0.0
    %1330 = vmatprep.subr.mxu0 0.0
    %1331 = vmatpush1.xpose.msra.mxu0 0.0
    %1332 = vmatprep.subr.mxu0 0.0
    %1333 = vmatpush1.xpose.msra.mxu0 0.0
    %1334 = vmatprep.subr.mxu0 0.0
    %1335 = vmatpush1.xpose.msra.mxu0 0.0
    %1336 = vmatprep.subr.mxu0 0.0
    %1337 = vmatpush1.xpose.msra.mxu0 0.0
    %1338 = vmatprep.subr.mxu0 0.0
    %1339 = vmatpush1.xpose.msra.mxu0 0.0
    %1340 = vmatprep.subr.mxu0 0.0
    %1341 = vmatpush1.xpose.msra.mxu0 0.0
    %1342 = vmatprep.subr.mxu0 0.0
    %1343 = vmatpush1.xpose.msra.mxu0 %v1318
    %1344 = vmatprep.subr.mxu0 0.0
    %1345 = vmatpush1.xpose.msra.mxu0 %v1316
    %1346 = vmatprep.subr.mxu0 0.0
    %1347 = vmatpush1.xpose.msra.mxu0 %v1314
    %1348 = vmatprep.subr.mxu0 0.0
    %1349 = vmatpush1.xpose.msra.mxu0 %v1312
    %1350 = vmatprep.subr.mxu0 0.0
    %1351 = vmatpush1.xpose.msra.mxu0 %v1310
    %1352 = vmatprep.subr.mxu0 0.0
    %1353 = vmatpush2.xpose.msra.mxu0 0.0
    %1354 = vmatprep.subr.mxu0 0.0
    %1355 = vmatpush2.xpose.msra.mxu0 0.0
    %1356 = vmatprep.subr.mxu0 0.0
    %1357 = vmatpush2.xpose.msra.mxu0 0.0
    %1358 = vmatprep.subr.mxu0 0.0
    %1359 = vmatpush2.xpose.msra.mxu0 0.0
    %1360 = vmatprep.subr.mxu0 0.0
    %1361 = vmatpush2.xpose.msra.mxu0 0.0
    %1362 = vmatprep.subr.mxu0 0.0
    %1363 = vmatpush2.xpose.msra.mxu0 0.0
    %1364 = vmatprep.subr.mxu0 0.0
    %1365 = vmatpush2.xpose.msra.mxu0 0.0
    %1366 = vmatprep.subr.mxu0 0.0
    %1367 = vmatpush2.xpose.msra.mxu0 0.0
    %1368 = vmatprep.subr.mxu0 0.0
    %1369 = vmatpush2.xpose.msra.mxu0 0.0
    %1370 = vmatprep.subr.mxu0 0.0
    %1371 = vmatpush2.xpose.msra.mxu0 0.0
    %1372 = vmatprep.subr.mxu0 0.0
    %1373 = vmatpush2.xpose.msra.mxu0 0.0
    %1374 = vmatprep.subr.mxu0 0.0
    %1375 = vmatpush2.xpose.msra.mxu0 0.0
    %1376 = vmatprep.subr.mxu0 0.0
    %1377 = vmatpush2.xpose.msra.mxu0 0.0
    %1378 = vmatprep.subr.mxu0 0.0
    %1379 = vmatpush2.xpose.msra.mxu0 0.0
    %1380 = vmatprep.subr.mxu0 0.0
    %1381 = vmatpush2.xpose.msra.mxu0 0.0
    %1382 = vmatprep.subr.mxu0 0.0
    %1383 = vmatpush2.xpose.msra.mxu0 0.0
    %1384 = vmatprep.mubr.f32.mxu0 0.0
    %1385 = vmatmul.mubr.f32.gmra.mxu0 %v1300
    %v1386 = vpop.f32.mrf.mxu0
    %v1387 = vadd.f32 %v200, %v1386
    %v1388 = vpop.f32.mrf.mxu0
    %1389 = vmatprep.mubr.f32.mxu0 0.0
    %1390 = vmatmul.mubr.f32.gmra.mxu0 %v1302
    %v1391 = vpop.f32.mrf.mxu0
    %v1392 = vadd.f32 %v201, %v1391
    %v1393 = vpop.f32.mrf.mxu0
    %1394 = vmatprep.mubr.f32.mxu0 0.0
    %1395 = vmatmul.mubr.f32.gmra.mxu0 %v1304
    %v1396 = vpop.f32.mrf.mxu0
    %v1397 = vadd.f32 %v202, %v1396
    %v1398 = vpop.f32.mrf.mxu0
    %1399 = vmatprep.mubr.f32.mxu0 0.0
    %1400 = vmatmul.mubr.f32.gmra.mxu0 %v1306
    %v1401 = vpop.f32.mrf.mxu0
    %v1402 = vadd.f32 %v203, %v1401
    %v1403 = vpop.f32.mrf.mxu0
    %1404 = vmatprep.mubr.f32.mxu0 0.0
    %1405 = vmatmul.mubr.f32.gmra.mxu0 %v1308
    %v1406 = vpop.f32.mrf.mxu0
    %v1407 = vadd.f32 %v204, %v1406
    %v1408 = vpop.f32.mrf.mxu0
    %1409 = vdwg.mxu0
    %v1410 = vsel %vm489, %v1387, -inf
    %1411 = vmax.xlane.f32.xlu0 %v1410
    %v1412 = vpop.xlane.xlu0 %1411
    %v1413 = vsel %vm489, %v1392, -inf
    %1414 = vmax.xlane.f32.xlu0 %v1413
    %v1415 = vpop.xlane.xlu0 %1414
    %v1416 = vsel %vm489, %v1397, -inf
    %1417 = vmax.xlane.f32.xlu0 %v1416
    %v1418 = vpop.xlane.xlu0 %1417
    %v1419 = vsel %vm489, %v1402, -inf
    %1420 = vmax.xlane.f32.xlu0 %v1419
    %v1421 = vpop.xlane.xlu0 %1420
    %v1422 = vsel %vm502, %v1407, -inf
    %1423 = vmax.xlane.f32.xlu0 %v1422
    %v1424 = vpop.xlane.xlu0 %1423
    %v1425 = vsub.f32 %v1387, %v1412
    %v1426 = vsub.f32 %v1392, %v1415
    %v1427 = vsub.f32 %v1397, %v1418
    %v1428 = vsub.f32 %v1402, %v1421
    %v1429 = vsub.f32 %v1407, %v1424
    %v1430 = vmul.f32 %v1425, 1.442695
    %v1431 = vpow.pop %v1430
    %v1432 = vmul.f32 %v1426, 1.442695
    %v1433 = vpow.pop %v1432
    %v1434 = vmul.f32 %v1427, 1.442695
    %v1435 = vpow.pop %v1434
    %v1436 = vmul.f32 %v1428, 1.442695
    %v1437 = vpow.pop %v1436
    %v1438 = vmul.f32 %v1429, 1.442695
    %v1439 = vpow.pop %v1438
    %v1440 = vsel %vm489, %v1431, 0.0
    %1441 = vadd.xlane.f32.xlu0 %v1440
    %v1442 = vpop.xlane.xlu0 %1441
    %v1443 = vsel %vm489, %v1433, 0.0
    %1444 = vadd.xlane.f32.xlu0 %v1443
    %v1445 = vpop.xlane.xlu0 %1444
    %v1446 = vsel %vm489, %v1435, 0.0
    %1447 = vadd.xlane.f32.xlu0 %v1446
    %v1448 = vpop.xlane.xlu0 %1447
    %v1449 = vsel %vm489, %v1437, 0.0
    %1450 = vadd.xlane.f32.xlu0 %v1449
    %v1451 = vpop.xlane.xlu0 %1450
    %v1452 = vsel %vm502, %v1439, 0.0
    %1453 = vadd.xlane.f32.xlu0 %v1452
    %v1454 = vpop.xlane.xlu0 %1453
    %v1455 = vrcp.pop %v1442
    %v1456 = vrcp.pop %v1445
    %v1457 = vrcp.pop %v1448
    %v1458 = vrcp.pop %v1451
    %v1459 = vrcp.pop %v1454
    %v1460 = vmul.f32 %v1431, %v1455
    %v1461 = vmul.f32 %v1433, %v1456
    %v1462 = vmul.f32 %v1435, %v1457
    %v1463 = vmul.f32 %v1437, %v1458
    %v1464 = vmul.f32 %v1439, %v1459
    %1465 = vrot.lane.b32.xlu0 %v340, 40
    %v1466 = vpop.permute.xlu0 %1465
    %1467 = vrot.lane.b32.xlu0 %v345, 40
    %v1468 = vpop.permute.xlu0 %1467
    %1469 = vrot.lane.b32.xlu0 %v350, 40
    %v1470 = vpop.permute.xlu0 %1469
    %1471 = vrot.lane.b32.xlu0 %v355, 40
    %v1472 = vpop.permute.xlu0 %1471
    %1473 = vrot.lane.b32.xlu0 %v360, 40
    %v1474 = vpop.permute.xlu0 %1473
    %v1480 = vsel %vm489, %v1460, 0
    %v1483 = vsel %vm489, %v1461, 0
    %v1486 = vsel %vm489, %v1462, 0
    %v1489 = vsel %vm489, %v1463, 0
    %v1492 = vsel %vm489, %v1464, 0
    %v1494 = vsel %vm575, %v1474, 0
    %1496 = vmatprep.subr.mxu0 0.0
    %1497 = vmatpush1.msra.mxu0 0.0
    %1498 = vmatprep.subr.mxu0 0.0
    %1499 = vmatpush1.msra.mxu0 0.0
    %1500 = vmatprep.subr.mxu0 0.0
    %1501 = vmatpush1.msra.mxu0 0.0
    %1502 = vmatprep.subr.mxu0 0.0
    %1503 = vmatpush1.msra.mxu0 0.0
    %1504 = vmatprep.subr.mxu0 0.0
    %1505 = vmatpush1.msra.mxu0 0.0
    %1506 = vmatprep.subr.mxu0 0.0
    %1507 = vmatpush1.msra.mxu0 0.0
    %1508 = vmatprep.subr.mxu0 0.0
    %1509 = vmatpush1.msra.mxu0 0.0
    %1510 = vmatprep.subr.mxu0 0.0
    %1511 = vmatpush1.msra.mxu0 0.0
    %1512 = vmatprep.subr.mxu0 0.0
    %1513 = vmatpush1.msra.mxu0 0.0
    %1514 = vmatprep.subr.mxu0 0.0
    %1515 = vmatpush1.msra.mxu0 0.0
    %1516 = vmatprep.subr.mxu0 0.0
    %1517 = vmatpush1.msra.mxu0 0.0
    %1518 = vmatprep.subr.mxu0 0.0
    %1519 = vmatpush1.msra.mxu0 %v1494
    %1520 = vmatprep.subr.mxu0 0.0
    %1521 = vmatpush1.msra.mxu0 %v1472
    %1522 = vmatprep.subr.mxu0 0.0
    %1523 = vmatpush1.msra.mxu0 %v1470
    %1524 = vmatprep.subr.mxu0 0.0
    %1525 = vmatpush1.msra.mxu0 %v1468
    %1526 = vmatprep.subr.mxu0 0.0
    %1527 = vmatpush1.msra.mxu0 %v1466
    %1528 = vmatprep.subr.mxu0 0.0
    %1529 = vmatpush2.msra.mxu0 0.0
    %1530 = vmatprep.subr.mxu0 0.0
    %1531 = vmatpush2.msra.mxu0 0.0
    %1532 = vmatprep.subr.mxu0 0.0
    %1533 = vmatpush2.msra.mxu0 0.0
    %1534 = vmatprep.subr.mxu0 0.0
    %1535 = vmatpush2.msra.mxu0 0.0
    %1536 = vmatprep.subr.mxu0 0.0
    %1537 = vmatpush2.msra.mxu0 0.0
    %1538 = vmatprep.subr.mxu0 0.0
    %1539 = vmatpush2.msra.mxu0 0.0
    %1540 = vmatprep.subr.mxu0 0.0
    %1541 = vmatpush2.msra.mxu0 0.0
    %1542 = vmatprep.subr.mxu0 0.0
    %1543 = vmatpush2.msra.mxu0 0.0
    %1544 = vmatprep.subr.mxu0 0.0
    %1545 = vmatpush2.msra.mxu0 0.0
    %1546 = vmatprep.subr.mxu0 0.0
    %1547 = vmatpush2.msra.mxu0 0.0
    %1548 = vmatprep.subr.mxu0 0.0
    %1549 = vmatpush2.msra.mxu0 0.0
    %1550 = vmatprep.subr.mxu0 0.0
    %1551 = vmatpush2.msra.mxu0 0.0
    %1552 = vmatprep.subr.mxu0 0.0
    %1553 = vmatpush2.msra.mxu0 0.0
    %1554 = vmatprep.subr.mxu0 0.0
    %1555 = vmatpush2.msra.mxu0 0.0
    %1556 = vmatprep.subr.mxu0 0.0
    %1557 = vmatpush2.msra.mxu0 0.0
    %1558 = vmatprep.subr.mxu0 0.0
    %1559 = vmatpush2.msra.mxu0 0.0
    %1560 = vmatprep.mubr.f32.mxu0 0.0
    %1561 = vmatmul.mubr.f32.gmra.mxu0 %v1480
    %v1562 = vpop.f32.mrf.mxu0
    %v1563 = vadd.f32 0.0, %v1562
    %v1564 = vpop.f32.mrf.mxu0
    %1565 = vmatprep.mubr.f32.mxu0 0.0
    %1566 = vmatmul.mubr.f32.gmra.mxu0 %v1483
    %v1567 = vpop.f32.mrf.mxu0
    %v1568 = vadd.f32 0.0, %v1567
    %v1569 = vpop.f32.mrf.mxu0
    %1570 = vmatprep.mubr.f32.mxu0 0.0
    %1571 = vmatmul.mubr.f32.gmra.mxu0 %v1486
    %v1572 = vpop.f32.mrf.mxu0
    %v1573 = vadd.f32 0.0, %v1572
    %v1574 = vpop.f32.mrf.mxu0
    %1575 = vmatprep.mubr.f32.mxu0 0.0
    %1576 = vmatmul.mubr.f32.gmra.mxu0 %v1489
    %v1577 = vpop.f32.mrf.mxu0
    %v1578 = vadd.f32 0.0, %v1577
    %v1579 = vpop.f32.mrf.mxu0
    %1580 = vmatprep.mubr.f32.mxu0 0.0
    %1581 = vmatmul.mubr.f32.gmra.mxu0 %v1492
    %v1582 = vpop.f32.mrf.mxu0
    %v1583 = vadd.f32 0.0, %v1582
    %v1584 = vpop.f32.mrf.mxu0
    %1585 = vdwg.mxu0
    %1591 = vrot.lane.b32.xlu0 %v951, 8
    %v1592 = vpop.permute.xlu0 %1591
    %1593 = vrot.lane.b32.xlu0 %v956, 8
    %v1594 = vpop.permute.xlu0 %1593
    %1595 = vrot.lane.b32.xlu0 %v961, 8
    %v1596 = vpop.permute.xlu0 %1595
    %1597 = vrot.lane.b32.xlu0 %v966, 8
    %v1598 = vpop.permute.xlu0 %1597
    %1599 = vrot.lane.b32.xlu0 %v971, 8
    %v1600 = vpop.permute.xlu0 %1599
    %1611 = vrot.lane.b32.xlu0 %v1257, 16
    %v1612 = vpop.permute.xlu0 %1611
    %1613 = vrot.lane.b32.xlu0 %v1262, 16
    %v1614 = vpop.permute.xlu0 %1613
    %1615 = vrot.lane.b32.xlu0 %v1267, 16
    %v1616 = vpop.permute.xlu0 %1615
    %1617 = vrot.lane.b32.xlu0 %v1272, 16
    %v1618 = vpop.permute.xlu0 %1617
    %1619 = vrot.lane.b32.xlu0 %v1277, 16
    %v1620 = vpop.permute.xlu0 %1619
    %1631 = vrot.lane.b32.xlu0 %v1563, 24
    %v1632 = vpop.permute.xlu0 %1631
    %1633 = vrot.lane.b32.xlu0 %v1568, 24
    %v1634 = vpop.permute.xlu0 %1633
    %1635 = vrot.lane.b32.xlu0 %v1573, 24
    %v1636 = vpop.permute.xlu0 %1635
    %1637 = vrot.lane.b32.xlu0 %v1578, 24
    %v1638 = vpop.permute.xlu0 %1637
    %1639 = vrot.lane.b32.xlu0 %v1583, 24
    %v1640 = vpop.permute.xlu0 %1639
    %v1646 = vsel %vm378, %v645, %v1592
    %v1647 = vsel %vm378, %v650, %v1594
    %v1648 = vsel %vm378, %v655, %v1596
    %v1649 = vsel %vm378, %v660, %v1598
    %v1650 = vsel %vm378, %v665, %v1600
    %vm1651 = vcmask 130048
    %v1652 = vsel %vm1651, %v1646, %v1612
    %v1653 = vsel %vm1651, %v1647, %v1614
    %v1654 = vsel %vm1651, %v1648, %v1616
    %v1655 = vsel %vm1651, %v1649, %v1618
    %v1656 = vsel %vm1651, %v1650, %v1620
    %vm1657 = vcmask 195584
    %v1658 = vsel %vm1657, %v1652, %v1632
    %v1659 = vsel %vm1657, %v1653, %v1634
    %v1660 = vsel %vm1657, %v1654, %v1636
    %v1661 = vsel %vm1657, %v1655, %v1638
    %v1662 = vsel %vm1657, %v1656, %v1640
    %v1663 = vlaneseq
    %v1664 = vshrl.u32 %v1663, 7
    %v1665 = vsub.s32 0, %v1664
    %v1666 = vrot.slane %v214, %v1665
    %v1668 = vsel %vm257, %v1658, 0
    %v1671 = vsel %vm257, %v1659, 0
    %v1674 = vsel %vm257, %v1660, 0
    %v1677 = vsel %vm257, %v1661, 0
    %v1680 = vsel %vm257, %v1662, 0
    %1682 = vmatprep.subr.mxu0 0.0
    %1683 = vmatpush1.msra.mxu0 0.0
    %1684 = vmatprep.subr.mxu0 0.0
    %1685 = vmatpush1.msra.mxu0 0.0
    %1686 = vmatprep.subr.mxu0 0.0
    %1687 = vmatpush1.msra.mxu0 0.0
    %1688 = vmatprep.subr.mxu0 0.0
    %1689 = vmatpush1.msra.mxu0 0.0
    %1690 = vmatprep.subr.mxu0 0.0
    %1691 = vmatpush1.msra.mxu0 0.0
    %1692 = vmatprep.subr.mxu0 0.0
    %1693 = vmatpush1.msra.mxu0 0.0
    %1694 = vmatprep.subr.mxu0 0.0
    %1695 = vmatpush1.msra.mxu0 0.0
    %1696 = vmatprep.subr.mxu0 0.0
    %1697 = vmatpush1.msra.mxu0 0.0
    %1698 = vmatprep.subr.mxu0 0.0
    %1699 = vmatpush1.msra.mxu0 0.0
    %1700 = vmatprep.subr.mxu0 0.0
    %1701 = vmatpush1.msra.mxu0 0.0
    %1702 = vmatprep.subr.mxu0 0.0
    %1703 = vmatpush1.msra.mxu0 0.0
    %1704 = vmatprep.subr.mxu0 0.0
    %1705 = vmatpush1.msra.mxu0 0.0
    %1706 = vmatprep.subr.mxu0 0.0
    %1707 = vmatpush1.msra.mxu0 %v213
    %1708 = vmatprep.subr.mxu0 0.0
    %1709 = vmatpush1.msra.mxu0 %v212
    %1710 = vmatprep.subr.mxu0 0.0
    %1711 = vmatpush1.msra.mxu0 %v211
    %1712 = vmatprep.subr.mxu0 0.0
    %1713 = vmatpush1.msra.mxu0 %v210
    %1714 = vmatprep.subr.mxu0 0.0
    %1715 = vmatpush2.msra.mxu0 0.0
    %1716 = vmatprep.subr.mxu0 0.0
    %1717 = vmatpush2.msra.mxu0 0.0
    %1718 = vmatprep.subr.mxu0 0.0
    %1719 = vmatpush2.msra.mxu0 0.0
    %1720 = vmatprep.subr.mxu0 0.0
    %1721 = vmatpush2.msra.mxu0 0.0
    %1722 = vmatprep.subr.mxu0 0.0
    %1723 = vmatpush2.msra.mxu0 0.0
    %1724 = vmatprep.subr.mxu0 0.0
    %1725 = vmatpush2.msra.mxu0 0.0
    %1726 = vmatprep.subr.mxu0 0.0
    %1727 = vmatpush2.msra.mxu0 0.0
    %1728 = vmatprep.subr.mxu0 0.0
    %1729 = vmatpush2.msra.mxu0 0.0
    %1730 = vmatprep.subr.mxu0 0.0
    %1731 = vmatpush2.msra.mxu0 0.0
    %1732 = vmatprep.subr.mxu0 0.0
    %1733 = vmatpush2.msra.mxu0 0.0
    %1734 = vmatprep.subr.mxu0 0.0
    %1735 = vmatpush2.msra.mxu0 0.0
    %1736 = vmatprep.subr.mxu0 0.0
    %1737 = vmatpush2.msra.mxu0 0.0
    %1738 = vmatprep.subr.mxu0 0.0
    %1739 = vmatpush2.msra.mxu0 0.0
    %1740 = vmatprep.subr.mxu0 0.0
    %1741 = vmatpush2.msra.mxu0 0.0
    %1742 = vmatprep.subr.mxu0 0.0
    %1743 = vmatpush2.msra.mxu0 0.0
    %1744 = vmatprep.subr.mxu0 0.0
    %1745 = vmatpush2.msra.mxu0 0.0
    %1746 = vmatprep.mubr.f32.mxu0 0.0
    %1747 = vmatmul.mubr.f32.gmra.mxu0 %v1668
    %v1748 = vpop.f32.mrf.mxu0
    %v1749 = vadd.f32 %v1666, %v1748
    %v1750 = vpop.f32.mrf.mxu0
    %1751 = vmatprep.mubr.f32.mxu0 0.0
    %1752 = vmatmul.mubr.f32.gmra.mxu0 %v1671
    %v1753 = vpop.f32.mrf.mxu0
    %v1754 = vadd.f32 %v1666, %v1753
    %v1755 = vpop.f32.mrf.mxu0
    %1756 = vmatprep.mubr.f32.mxu0 0.0
    %1757 = vmatmul.mubr.f32.gmra.mxu0 %v1674
    %v1758 = vpop.f32.mrf.mxu0
    %v1759 = vadd.f32 %v1666, %v1758
    %v1760 = vpop.f32.mrf.mxu0
    %1761 = vmatprep.mubr.f32.mxu0 0.0
    %1762 = vmatmul.mubr.f32.gmra.mxu0 %v1677
    %v1763 = vpop.f32.mrf.mxu0
    %v1764 = vadd.f32 %v1666, %v1763
    %v1765 = vpop.f32.mrf.mxu0
    %1766 = vmatprep.mubr.f32.mxu0 0.0
    %1767 = vmatmul.mubr.f32.gmra.mxu0 %v1680
    %v1768 = vpop.f32.mrf.mxu0
    %v1769 = vadd.f32 %v1666, %v1768
    %v1770 = vpop.f32.mrf.mxu0
    %1771 = vdwg.mxu0
    %v1772 = vtanh.pop %v1749
    %v1773 = vtanh.pop %v1754
    %v1774 = vtanh.pop %v1759
    %v1775 = vtanh.pop %v1764
    %v1776 = vtanh.pop %v1769
    %v1777 = vmul.f32 %v236, %v1772
    %v1778 = vmul.f32 %v236, %v1773
    %v1779 = vmul.f32 %v236, %v1774
    %v1780 = vmul.f32 %v236, %v1775
    %v1781 = vmul.f32 %v236, %v1776
    %v1782 = vadd.f32 %v1777, %v245
    %v1783 = vadd.f32 %v1778, %v245
    %v1784 = vadd.f32 %v1779, %v245
    %v1785 = vadd.f32 %v1780, %v245
    %v1786 = vadd.f32 %v1781, %v245
    %v1787 = vadd.f32 %v195, %v1782
    %v1788 = vadd.f32 %v196, %v1783
    %v1789 = vadd.f32 %v197, %v1784
    %v1790 = vadd.f32 %v198, %v1785
    %v1791 = vadd.f32 %v199, %v1786
    %v1793 = vlaneseq
    %v1794 = vshrl.u32 %v1793, 7
    %v1795 = vsub.s32 0, %v1794
    %v1796 = vrot.slane %v219, %v1795
    %v1799 = vsel %vm257, %v1787, 0
    %v1802 = vsel %vm257, %v1788, 0
    %v1805 = vsel %vm257, %v1789, 0
    %v1808 = vsel %vm257, %v1790, 0
    %v1811 = vsel %vm257, %v1791, 0
    %1813 = vmatprep.subr.mxu0 0.0
    %1814 = vmatpush1.msra.mxu0 0.0
    %1815 = vmatprep.subr.mxu0 0.0
    %1816 = vmatpush1.msra.mxu0 0.0
    %1817 = vmatprep.subr.mxu0 0.0
    %1818 = vmatpush1.msra.mxu0 0.0
    %1819 = vmatprep.subr.mxu0 0.0
    %1820 = vmatpush1.msra.mxu0 0.0
    %1821 = vmatprep.subr.mxu0 0.0
    %1822 = vmatpush1.msra.mxu0 0.0
    %1823 = vmatprep.subr.mxu0 0.0
    %1824 = vmatpush1.msra.mxu0 0.0
    %1825 = vmatprep.subr.mxu0 0.0
    %1826 = vmatpush1.msra.mxu0 0.0
    %1827 = vmatprep.subr.mxu0 0.0
    %1828 = vmatpush1.msra.mxu0 0.0
    %1829 = vmatprep.subr.mxu0 0.0
    %1830 = vmatpush1.msra.mxu0 0.0
    %1831 = vmatprep.subr.mxu0 0.0
    %1832 = vmatpush1.msra.mxu0 0.0
    %1833 = vmatprep.subr.mxu0 0.0
    %1834 = vmatpush1.msra.mxu0 0.0
    %1835 = vmatprep.subr.mxu0 0.0
    %1836 = vmatpush1.msra.mxu0 0.0
    %1837 = vmatprep.subr.mxu0 0.0
    %1838 = vmatpush1.msra.mxu0 %v218
    %1839 = vmatprep.subr.mxu0 0.0
    %1840 = vmatpush1.msra.mxu0 %v217
    %1841 = vmatprep.subr.mxu0 0.0
    %1842 = vmatpush1.msra.mxu0 %v216
    %1843 = vmatprep.subr.mxu0 0.0
    %1844 = vmatpush1.msra.mxu0 %v215
    %1845 = vmatprep.subr.mxu0 0.0
    %1846 = vmatpush2.msra.mxu0 0.0
    %1847 = vmatprep.subr.mxu0 0.0
    %1848 = vmatpush2.msra.mxu0 0.0
    %1849 = vmatprep.subr.mxu0 0.0
    %1850 = vmatpush2.msra.mxu0 0.0
    %1851 = vmatprep.subr.mxu0 0.0
    %1852 = vmatpush2.msra.mxu0 0.0
    %1853 = vmatprep.subr.mxu0 0.0
    %1854 = vmatpush2.msra.mxu0 0.0
    %1855 = vmatprep.subr.mxu0 0.0
    %1856 = vmatpush2.msra.mxu0 0.0
    %1857 = vmatprep.subr.mxu0 0.0
    %1858 = vmatpush2.msra.mxu0 0.0
    %1859 = vmatprep.subr.mxu0 0.0
    %1860 = vmatpush2.msra.mxu0 0.0
    %1861 = vmatprep.subr.mxu0 0.0
    %1862 = vmatpush2.msra.mxu0 0.0
    %1863 = vmatprep.subr.mxu0 0.0
    %1864 = vmatpush2.msra.mxu0 0.0
    %1865 = vmatprep.subr.mxu0 0.0
    %1866 = vmatpush2.msra.mxu0 0.0
    %1867 = vmatprep.subr.mxu0 0.0
    %1868 = vmatpush2.msra.mxu0 0.0
    %1869 = vmatprep.subr.mxu0 0.0
    %1870 = vmatpush2.msra.mxu0 0.0
    %1871 = vmatprep.subr.mxu0 0.0
    %1872 = vmatpush2.msra.mxu0 0.0
    %1873 = vmatprep.subr.mxu0 0.0
    %1874 = vmatpush2.msra.mxu0 0.0
    %1875 = vmatprep.subr.mxu0 0.0
    %1876 = vmatpush2.msra.mxu0 0.0
    %1877 = vmatprep.mubr.f32.mxu0 0.0
    %1878 = vmatmul.mubr.f32.gmra.mxu0 %v1799
    %v1879 = vpop.f32.mrf.mxu0
    %v1880 = vadd.f32 %v1796, %v1879
    %v1881 = vpop.f32.mrf.mxu0
    %1882 = vmatprep.mubr.f32.mxu0 0.0
    %1883 = vmatmul.mubr.f32.gmra.mxu0 %v1802
    %v1884 = vpop.f32.mrf.mxu0
    %v1885 = vadd.f32 %v1796, %v1884
    %v1886 = vpop.f32.mrf.mxu0
    %1887 = vmatprep.mubr.f32.mxu0 0.0
    %1888 = vmatmul.mubr.f32.gmra.mxu0 %v1805
    %v1889 = vpop.f32.mrf.mxu0
    %v1890 = vadd.f32 %v1796, %v1889
    %v1891 = vpop.f32.mrf.mxu0
    %1892 = vmatprep.mubr.f32.mxu0 0.0
    %1893 = vmatmul.mubr.f32.gmra.mxu0 %v1808
    %v1894 = vpop.f32.mrf.mxu0
    %v1895 = vadd.f32 %v1796, %v1894
    %v1896 = vpop.f32.mrf.mxu0
    %1897 = vmatprep.mubr.f32.mxu0 0.0
    %1898 = vmatmul.mubr.f32.gmra.mxu0 %v1811
    %v1899 = vpop.f32.mrf.mxu0
    %v1900 = vadd.f32 %v1796, %v1899
    %v1901 = vpop.f32.mrf.mxu0
    %1902 = vdwg.mxu0
    %v1903 = vmul.f32 %v1880, 0.5
    %v1904 = vmul.f32 %v1885, 0.5
    %v1905 = vmul.f32 %v1890, 0.5
    %v1906 = vmul.f32 %v1895, 0.5
    %v1907 = vmul.f32 %v1900, 0.5
    %v1908 = vrcp.pop 1.4142135
    %v1909 = vmul.f32 %v1880, %v1908
    %v1910 = vmul.f32 %v1885, %v1908
    %v1911 = vmul.f32 %v1890, %v1908
    %v1912 = vmul.f32 %v1895, %v1908
    %v1913 = vmul.f32 %v1900, %v1908
    %v1914 = verf.f32.pop %v1909
    %v1915 = verf.f32.pop %v1910
    %v1916 = verf.f32.pop %v1911
    %v1917 = verf.f32.pop %v1912
    %v1918 = verf.f32.pop %v1913
    %v1919 = vadd.f32 %v1914, 1.0
    %v1920 = vadd.f32 %v1915, 1.0
    %v1921 = vadd.f32 %v1916, 1.0
    %v1922 = vadd.f32 %v1917, 1.0
    %v1923 = vadd.f32 %v1918, 1.0
    %v1924 = vmul.f32 %v1903, %v1919
    %v1925 = vmul.f32 %v1904, %v1920
    %v1926 = vmul.f32 %v1905, %v1921
    %v1927 = vmul.f32 %v1906, %v1922
    %v1928 = vmul.f32 %v1907, %v1923
    %v1929 = vlaneseq
    %v1930 = vshrl.u32 %v1929, 7
    %v1931 = vsub.s32 3, %v1930
    %v1932 = vrot.slane %v214, %v1931
    %v1934 = vsel %vm69, %v1924, 0
    %v1937 = vsel %vm69, %v1925, 0
    %v1940 = vsel %vm69, %v1926, 0
    %v1943 = vsel %vm69, %v1927, 0
    %v1946 = vsel %vm69, %v1928, 0
    %1948 = vmatprep.subr.mxu0 0.0
    %1949 = vmatpush1.msra.mxu0 0.0
    %1950 = vmatprep.subr.mxu0 0.0
    %1951 = vmatpush1.msra.mxu0 0.0
    %1952 = vmatprep.subr.mxu0 0.0
    %1953 = vmatpush1.msra.mxu0 0.0
    %1954 = vmatprep.subr.mxu0 0.0
    %1955 = vmatpush1.msra.mxu0 0.0
    %1956 = vmatprep.subr.mxu0 0.0
    %1957 = vmatpush1.msra.mxu0 0.0
    %1958 = vmatprep.subr.mxu0 0.0
    %1959 = vmatpush1.msra.mxu0 0.0
    %1960 = vmatprep.subr.mxu0 0.0
    %1961 = vmatpush1.msra.mxu0 0.0
    %1962 = vmatprep.subr.mxu0 0.0
    %1963 = vmatpush1.msra.mxu0 0.0
    %1964 = vmatprep.subr.mxu0 0.0
    %1965 = vmatpush1.msra.mxu0 %v227
    %1966 = vmatprep.subr.mxu0 0.0
    %1967 = vmatpush1.msra.mxu0 %v226
    %1968 = vmatprep.subr.mxu0 0.0
    %1969 = vmatpush1.msra.mxu0 %v225
    %1970 = vmatprep.subr.mxu0 0.0
    %1971 = vmatpush1.msra.mxu0 %v224
    %1972 = vmatprep.subr.mxu0 0.0
    %1973 = vmatpush1.msra.mxu0 %v223
    %1974 = vmatprep.subr.mxu0 0.0
    %1975 = vmatpush1.msra.mxu0 %v222
    %1976 = vmatprep.subr.mxu0 0.0
    %1977 = vmatpush1.msra.mxu0 %v221
    %1978 = vmatprep.subr.mxu0 0.0
    %1979 = vmatpush1.msra.mxu0 %v220
    %1980 = vmatprep.subr.mxu0 0.0
    %1981 = vmatpush2.msra.mxu0 0.0
    %1982 = vmatprep.subr.mxu0 0.0
    %1983 = vmatpush2.msra.mxu0 0.0
    %1984 = vmatprep.subr.mxu0 0.0
    %1985 = vmatpush2.msra.mxu0 0.0
    %1986 = vmatprep.subr.mxu0 0.0
    %1987 = vmatpush2.msra.mxu0 0.0
    %1988 = vmatprep.subr.mxu0 0.0
    %1989 = vmatpush2.msra.mxu0 0.0
    %1990 = vmatprep.subr.mxu0 0.0
    %1991 = vmatpush2.msra.mxu0 0.0
    %1992 = vmatprep.subr.mxu0 0.0
    %1993 = vmatpush2.msra.mxu0 0.0
    %1994 = vmatprep.subr.mxu0 0.0
    %1995 = vmatpush2.msra.mxu0 0.0
    %1996 = vmatprep.subr.mxu0 0.0
    %1997 = vmatpush2.msra.mxu0 0.0
    %1998 = vmatprep.subr.mxu0 0.0
    %1999 = vmatpush2.msra.mxu0 0.0
    %2000 = vmatprep.subr.mxu0 0.0
    %2001 = vmatpush2.msra.mxu0 0.0
    %2002 = vmatprep.subr.mxu0 0.0
    %2003 = vmatpush2.msra.mxu0 0.0
    %2004 = vmatprep.subr.mxu0 0.0
    %2005 = vmatpush2.msra.mxu0 0.0
    %2006 = vmatprep.subr.mxu0 0.0
    %2007 = vmatpush2.msra.mxu0 0.0
    %2008 = vmatprep.subr.mxu0 0.0
    %2009 = vmatpush2.msra.mxu0 0.0
    %2010 = vmatprep.subr.mxu0 0.0
    %2011 = vmatpush2.msra.mxu0 0.0
    %2012 = vmatprep.mubr.f32.mxu0 0.0
    %2013 = vmatmul.mubr.f32.gmra.mxu0 %v1934
    %v2014 = vpop.f32.mrf.mxu0
    %v2015 = vadd.f32 %v1932, %v2014
    %v2016 = vpop.f32.mrf.mxu0
    %2017 = vmatprep.mubr.f32.mxu0 0.0
    %2018 = vmatmul.mubr.f32.gmra.mxu0 %v1937
    %v2019 = vpop.f32.mrf.mxu0
    %v2020 = vadd.f32 %v1932, %v2019
    %v2021 = vpop.f32.mrf.mxu0
    %2022 = vmatprep.mubr.f32.mxu0 0.0
    %2023 = vmatmul.mubr.f32.gmra.mxu0 %v1940
    %v2024 = vpop.f32.mrf.mxu0
    %v2025 = vadd.f32 %v1932, %v2024
    %v2026 = vpop.f32.mrf.mxu0
    %2027 = vmatprep.mubr.f32.mxu0 0.0
    %2028 = vmatmul.mubr.f32.gmra.mxu0 %v1943
    %v2029 = vpop.f32.mrf.mxu0
    %v2030 = vadd.f32 %v1932, %v2029
    %v2031 = vpop.f32.mrf.mxu0
    %2032 = vmatprep.mubr.f32.mxu0 0.0
    %2033 = vmatmul.mubr.f32.gmra.mxu0 %v1946
    %v2034 = vpop.f32.mrf.mxu0
    %v2035 = vadd.f32 %v1932, %v2034
    %v2036 = vpop.f32.mrf.mxu0
    %2037 = vdwg.mxu0
    %v2038 = vtanh.pop %v2015
    %v2039 = vtanh.pop %v2020
    %v2040 = vtanh.pop %v2025
    %v2041 = vtanh.pop %v2030
    %v2042 = vtanh.pop %v2035
    %v2043 = vlaneseq
    %v2044 = vshrl.u32 %v2043, 7
    %v2045 = vsub.s32 4, %v2044
    %v2046 = vrot.slane %v214, %v2045
    %v2047 = vmul.f32 %v2046, %v2038
    %v2048 = vmul.f32 %v2046, %v2039
    %v2049 = vmul.f32 %v2046, %v2040
    %v2050 = vmul.f32 %v2046, %v2041
    %v2051 = vmul.f32 %v2046, %v2042
    %v2052 = vlaneseq
    %v2053 = vshrl.u32 %v2052, 7
    %v2054 = vsub.s32 5, %v2053
    %v2055 = vrot.slane %v214, %v2054
    %v2056 = vadd.f32 %v2047, %v2055
    %v2057 = vadd.f32 %v2048, %v2055
    %v2058 = vadd.f32 %v2049, %v2055
    %v2059 = vadd.f32 %v2050, %v2055
    %v2060 = vadd.f32 %v2051, %v2055
    %v2061 = vadd.f32 %v1787, %v2056
    %v2062 = vadd.f32 %v1788, %v2057
    %v2063 = vadd.f32 %v1789, %v2058
    %v2064 = vadd.f32 %v1790, %v2059
    %v2065 = vadd.f32 %v1791, %v2060
    %s2066 = scalar_lea.vmem %s6, 32
    %v2067 = vld [vmem:[%s2066] sm:$0xff]
    %v2068 = vld [vmem:[%s2066 + $0x8] sm:$0xff]
    %v2069 = vld [vmem:[%s2066 + $0x10] sm:$0xff]
    %v2070 = vld [vmem:[%s2066 + $0x18] sm:$0xff]
    %s2071 = scalar_lea.vmem %s7, 1
    %v2072 = vld [vmem:[%s2071] sm:$0x1]
    %s2073 = scalar_lea.vmem %s8, 32
    %v2074 = vld [vmem:[%s2073] sm:$0xff]
    %v2075 = vld [vmem:[%s2073 + $0x8] sm:$0xff]
    %v2076 = vld [vmem:[%s2073 + $0x10] sm:$0xff]
    %v2077 = vld [vmem:[%s2073 + $0x18] sm:$0xff]
    %s2078 = scalar_lea.vmem %s9, 8
    %v2079 = vld [vmem:[%s2078] sm:$0x3f]
    %s2080 = scalar_lea.vmem %s10, 32
    %v2081 = vld [vmem:[%s2080] sm:$0xff]
    %v2082 = vld [vmem:[%s2080 + $0x8] sm:$0xff]
    %v2083 = vld [vmem:[%s2080 + $0x10] sm:$0xff]
    %v2084 = vld [vmem:[%s2080 + $0x18] sm:$0xff]
    %s2085 = scalar_lea.vmem %s11, 1
    %v2086 = vld [vmem:[%s2085] sm:$0x1]
    %s2087 = scalar_lea.vmem %s12, 64
    %v2088 = vld [vmem:[%s2087] sm:$0xff]
    %v2089 = vld [vmem:[%s2087 + $0x8] sm:$0xff]
    %v2090 = vld [vmem:[%s2087 + $0x10] sm:$0xff]
    %v2091 = vld [vmem:[%s2087 + $0x18] sm:$0xff]
    %v2092 = vld [vmem:[%s2087 + $0x20] sm:$0xff]
    %v2093 = vld [vmem:[%s2087 + $0x28] sm:$0xff]
    %v2094 = vld [vmem:[%s2087 + $0x30] sm:$0xff]
    %v2095 = vld [vmem:[%s2087 + $0x38] sm:$0xff]
    %v2096 = vtanh.pop %v2061
    %v2097 = vtanh.pop %v2062
    %v2098 = vtanh.pop %v2063
    %v2099 = vtanh.pop %v2064
    %v2100 = vtanh.pop %v2065
    %v2101 = vlaneseq
    %v2102 = vshrl.u32 %v2101, 7
    %v2103 = vsub.s32 1, %v2102
    %v2104 = vrot.slane %v2079, %v2103
    %v2105 = vmul.f32 %v2104, %v2096
    %v2106 = vmul.f32 %v2104, %v2097
    %v2107 = vmul.f32 %v2104, %v2098
    %v2108 = vmul.f32 %v2104, %v2099
    %v2109 = vmul.f32 %v2104, %v2100
    %v2110 = vlaneseq
    %v2111 = vshrl.u32 %v2110, 7
    %v2112 = vsub.s32 2, %v2111
    %v2113 = vrot.slane %v2079, %v2112
    %v2114 = vadd.f32 %v2105, %v2113
    %v2115 = vadd.f32 %v2106, %v2113
    %v2116 = vadd.f32 %v2107, %v2113
    %v2117 = vadd.f32 %v2108, %v2113
    %v2118 = vadd.f32 %v2109, %v2113
    %v2120 = vlaneseq
    %v2121 = vshrl.u32 %v2120, 7
    %v2122 = vsub.s32 0, %v2121
    %v2123 = vrot.slane %v2072, %v2122
    %v2126 = vsel %vm257, %v2114, 0
    %v2129 = vsel %vm257, %v2115, 0
    %v2132 = vsel %vm257, %v2116, 0
    %v2135 = vsel %vm257, %v2117, 0
    %v2138 = vsel %vm257, %v2118, 0
    %2140 = vmatprep.subr.mxu0 0.0
    %2141 = vmatpush1.msra.mxu0 0.0
    %2142 = vmatprep.subr.mxu0 0.0
    %2143 = vmatpush1.msra.mxu0 0.0
    %2144 = vmatprep.subr.mxu0 0.0
    %2145 = vmatpush1.msra.mxu0 0.0
    %2146 = vmatprep.subr.mxu0 0.0
    %2147 = vmatpush1.msra.mxu0 0.0
    %2148 = vmatprep.subr.mxu0 0.0
    %2149 = vmatpush1.msra.mxu0 0.0
    %2150 = vmatprep.subr.mxu0 0.0
    %2151 = vmatpush1.msra.mxu0 0.0
    %2152 = vmatprep.subr.mxu0 0.0
    %2153 = vmatpush1.msra.mxu0 0.0
    %2154 = vmatprep.subr.mxu0 0.0
    %2155 = vmatpush1.msra.mxu0 0.0
    %2156 = vmatprep.subr.mxu0 0.0
    %2157 = vmatpush1.msra.mxu0 0.0
    %2158 = vmatprep.subr.mxu0 0.0
    %2159 = vmatpush1.msra.mxu0 0.0
    %2160 = vmatprep.subr.mxu0 0.0
    %2161 = vmatpush1.msra.mxu0 0.0
    %2162 = vmatprep.subr.mxu0 0.0
    %2163 = vmatpush1.msra.mxu0 0.0
    %2164 = vmatprep.subr.mxu0 0.0
    %2165 = vmatpush1.msra.mxu0 %v2070
    %2166 = vmatprep.subr.mxu0 0.0
    %2167 = vmatpush1.msra.mxu0 %v2069
    %2168 = vmatprep.subr.mxu0 0.0
    %2169 = vmatpush1.msra.mxu0 %v2068
    %2170 = vmatprep.subr.mxu0 0.0
    %2171 = vmatpush1.msra.mxu0 %v2067
    %2172 = vmatprep.subr.mxu0 0.0
    %2173 = vmatpush2.msra.mxu0 0.0
    %2174 = vmatprep.subr.mxu0 0.0
    %2175 = vmatpush2.msra.mxu0 0.0
    %2176 = vmatprep.subr.mxu0 0.0
    %2177 = vmatpush2.msra.mxu0 0.0
    %2178 = vmatprep.subr.mxu0 0.0
    %2179 = vmatpush2.msra.mxu0 0.0
    %2180 = vmatprep.subr.mxu0 0.0
    %2181 = vmatpush2.msra.mxu0 0.0
    %2182 = vmatprep.subr.mxu0 0.0
    %2183 = vmatpush2.msra.mxu0 0.0
    %2184 = vmatprep.subr.mxu0 0.0
    %2185 = vmatpush2.msra.mxu0 0.0
    %2186 = vmatprep.subr.mxu0 0.0
    %2187 = vmatpush2.msra.mxu0 0.0
    %2188 = vmatprep.subr.mxu0 0.0
    %2189 = vmatpush2.msra.mxu0 0.0
    %2190 = vmatprep.subr.mxu0 0.0
    %2191 = vmatpush2.msra.mxu0 0.0
    %2192 = vmatprep.subr.mxu0 0.0
    %2193 = vmatpush2.msra.mxu0 0.0
    %2194 = vmatprep.subr.mxu0 0.0
    %2195 = vmatpush2.msra.mxu0 0.0
    %2196 = vmatprep.subr.mxu0 0.0
    %2197 = vmatpush2.msra.mxu0 0.0
    %2198 = vmatprep.subr.mxu0 0.0
    %2199 = vmatpush2.msra.mxu0 0.0
    %2200 = vmatprep.subr.mxu0 0.0
    %2201 = vmatpush2.msra.mxu0 0.0
    %2202 = vmatprep.subr.mxu0 0.0
    %2203 = vmatpush2.msra.mxu0 0.0
    %2204 = vmatprep.mubr.f32.mxu0 0.0
    %2205 = vmatmul.mubr.f32.gmra.mxu0 %v2126
    %v2206 = vpop.f32.mrf.mxu0
    %v2207 = vadd.f32 %v2123, %v2206
    %v2208 = vpop.f32.mrf.mxu0
    %2209 = vmatprep.mubr.f32.mxu0 0.0
    %2210 = vmatmul.mubr.f32.gmra.mxu0 %v2129
    %v2211 = vpop.f32.mrf.mxu0
    %v2212 = vadd.f32 %v2123, %v2211
    %v2213 = vpop.f32.mrf.mxu0
    %2214 = vmatprep.mubr.f32.mxu0 0.0
    %2215 = vmatmul.mubr.f32.gmra.mxu0 %v2132
    %v2216 = vpop.f32.mrf.mxu0
    %v2217 = vadd.f32 %v2123, %v2216
    %v2218 = vpop.f32.mrf.mxu0
    %2219 = vmatprep.mubr.f32.mxu0 0.0
    %2220 = vmatmul.mubr.f32.gmra.mxu0 %v2135
    %v2221 = vpop.f32.mrf.mxu0
    %v2222 = vadd.f32 %v2123, %v2221
    %v2223 = vpop.f32.mrf.mxu0
    %2224 = vmatprep.mubr.f32.mxu0 0.0
    %2225 = vmatmul.mubr.f32.gmra.mxu0 %v2138
    %v2226 = vpop.f32.mrf.mxu0
    %v2227 = vadd.f32 %v2123, %v2226
    %v2228 = vpop.f32.mrf.mxu0
    %2229 = vdwg.mxu0
    %2235 = vrot.lane.b32.xlu0 %v2207, 96
    %v2236 = vpop.permute.xlu0 %2235
    %2237 = vrot.lane.b32.xlu0 %v2212, 96
    %v2238 = vpop.permute.xlu0 %2237
    %2239 = vrot.lane.b32.xlu0 %v2217, 96
    %v2240 = vpop.permute.xlu0 %2239
    %2241 = vrot.lane.b32.xlu0 %v2222, 96
    %v2242 = vpop.permute.xlu0 %2241
    %2243 = vrot.lane.b32.xlu0 %v2227, 96
    %v2244 = vpop.permute.xlu0 %2243
    %v2245 = vsel %vm378, %v2207, 0
    %v2247 = vsel %vm378, %v2212, 0
    %v2249 = vsel %vm378, %v2217, 0
    %v2251 = vsel %vm378, %v2222, 0
    %v2253 = vsel %vm378, %v2227, 0
    %v2255 = vsel %vm378, %v2236, 0
    %v2257 = vsel %vm378, %v2238, 0
    %v2259 = vsel %vm378, %v2240, 0
    %v2261 = vsel %vm378, %v2242, 0
    %v2263 = vsel %vm378, %v2244, 0
    %2265 = vmatprep.subr.mxu0 0.0
    %2266 = vmatpush1.xpose.msra.mxu0 0.0
    %2267 = vmatprep.subr.mxu0 0.0
    %2268 = vmatpush1.xpose.msra.mxu0 0.0
    %2269 = vmatprep.subr.mxu0 0.0
    %2270 = vmatpush1.xpose.msra.mxu0 0.0
    %2271 = vmatprep.subr.mxu0 0.0
    %2272 = vmatpush1.xpose.msra.mxu0 0.0
    %2273 = vmatprep.subr.mxu0 0.0
    %2274 = vmatpush1.xpose.msra.mxu0 0.0
    %2275 = vmatprep.subr.mxu0 0.0
    %2276 = vmatpush1.xpose.msra.mxu0 0.0
    %2277 = vmatprep.subr.mxu0 0.0
    %2278 = vmatpush1.xpose.msra.mxu0 0.0
    %2279 = vmatprep.subr.mxu0 0.0
    %2280 = vmatpush1.xpose.msra.mxu0 0.0
    %2281 = vmatprep.subr.mxu0 0.0
    %2282 = vmatpush1.xpose.msra.mxu0 0.0
    %2283 = vmatprep.subr.mxu0 0.0
    %2284 = vmatpush1.xpose.msra.mxu0 0.0
    %2285 = vmatprep.subr.mxu0 0.0
    %2286 = vmatpush1.xpose.msra.mxu0 0.0
    %2287 = vmatprep.subr.mxu0 0.0
    %2288 = vmatpush1.xpose.msra.mxu0 %v2263
    %2289 = vmatprep.subr.mxu0 0.0
    %2290 = vmatpush1.xpose.msra.mxu0 %v2261
    %2291 = vmatprep.subr.mxu0 0.0
    %2292 = vmatpush1.xpose.msra.mxu0 %v2259
    %2293 = vmatprep.subr.mxu0 0.0
    %2294 = vmatpush1.xpose.msra.mxu0 %v2257
    %2295 = vmatprep.subr.mxu0 0.0
    %2296 = vmatpush1.xpose.msra.mxu0 %v2255
    %2297 = vmatprep.subr.mxu0 0.0
    %2298 = vmatpush2.xpose.msra.mxu0 0.0
    %2299 = vmatprep.subr.mxu0 0.0
    %2300 = vmatpush2.xpose.msra.mxu0 0.0
    %2301 = vmatprep.subr.mxu0 0.0
    %2302 = vmatpush2.xpose.msra.mxu0 0.0
    %2303 = vmatprep.subr.mxu0 0.0
    %2304 = vmatpush2.xpose.msra.mxu0 0.0
    %2305 = vmatprep.subr.mxu0 0.0
    %2306 = vmatpush2.xpose.msra.mxu0 0.0
    %2307 = vmatprep.subr.mxu0 0.0
    %2308 = vmatpush2.xpose.msra.mxu0 0.0
    %2309 = vmatprep.subr.mxu0 0.0
    %2310 = vmatpush2.xpose.msra.mxu0 0.0
    %2311 = vmatprep.subr.mxu0 0.0
    %2312 = vmatpush2.xpose.msra.mxu0 0.0
    %2313 = vmatprep.subr.mxu0 0.0
    %2314 = vmatpush2.xpose.msra.mxu0 0.0
    %2315 = vmatprep.subr.mxu0 0.0
    %2316 = vmatpush2.xpose.msra.mxu0 0.0
    %2317 = vmatprep.subr.mxu0 0.0
    %2318 = vmatpush2.xpose.msra.mxu0 0.0
    %2319 = vmatprep.subr.mxu0 0.0
    %2320 = vmatpush2.xpose.msra.mxu0 0.0
    %2321 = vmatprep.subr.mxu0 0.0
    %2322 = vmatpush2.xpose.msra.mxu0 0.0
    %2323 = vmatprep.subr.mxu0 0.0
    %2324 = vmatpush2.xpose.msra.mxu0 0.0
    %2325 = vmatprep.subr.mxu0 0.0
    %2326 = vmatpush2.xpose.msra.mxu0 0.0
    %2327 = vmatprep.subr.mxu0 0.0
    %2328 = vmatpush2.xpose.msra.mxu0 0.0
    %2329 = vmatprep.mubr.f32.mxu0 0.0
    %2330 = vmatmul.mubr.f32.gmra.mxu0 %v2245
    %v2331 = vpop.f32.mrf.mxu0
    %v2332 = vadd.f32 %v200, %v2331
    %v2333 = vpop.f32.mrf.mxu0
    %2334 = vmatprep.mubr.f32.mxu0 0.0
    %2335 = vmatmul.mubr.f32.gmra.mxu0 %v2247
    %v2336 = vpop.f32.mrf.mxu0
    %v2337 = vadd.f32 %v201, %v2336
    %v2338 = vpop.f32.mrf.mxu0
    %2339 = vmatprep.mubr.f32.mxu0 0.0
    %2340 = vmatmul.mubr.f32.gmra.mxu0 %v2249
    %v2341 = vpop.f32.mrf.mxu0
    %v2342 = vadd.f32 %v202, %v2341
    %v2343 = vpop.f32.mrf.mxu0
    %2344 = vmatprep.mubr.f32.mxu0 0.0
    %2345 = vmatmul.mubr.f32.gmra.mxu0 %v2251
    %v2346 = vpop.f32.mrf.mxu0
    %v2347 = vadd.f32 %v203, %v2346
    %v2348 = vpop.f32.mrf.mxu0
    %2349 = vmatprep.mubr.f32.mxu0 0.0
    %2350 = vmatmul.mubr.f32.gmra.mxu0 %v2253
    %v2351 = vpop.f32.mrf.mxu0
    %v2352 = vadd.f32 %v204, %v2351
    %v2353 = vpop.f32.mrf.mxu0
    %2354 = vdwg.mxu0
    %v2355 = vsel %vm489, %v2332, -inf
    %2356 = vmax.xlane.f32.xlu0 %v2355
    %v2357 = vpop.xlane.xlu0 %2356
    %v2358 = vsel %vm489, %v2337, -inf
    %2359 = vmax.xlane.f32.xlu0 %v2358
    %v2360 = vpop.xlane.xlu0 %2359
    %v2361 = vsel %vm489, %v2342, -inf
    %2362 = vmax.xlane.f32.xlu0 %v2361
    %v2363 = vpop.xlane.xlu0 %2362
    %v2364 = vsel %vm489, %v2347, -inf
    %2365 = vmax.xlane.f32.xlu0 %v2364
    %v2366 = vpop.xlane.xlu0 %2365
    %v2367 = vsel %vm502, %v2352, -inf
    %2368 = vmax.xlane.f32.xlu0 %v2367
    %v2369 = vpop.xlane.xlu0 %2368
    %v2370 = vsub.f32 %v2332, %v2357
    %v2371 = vsub.f32 %v2337, %v2360
    %v2372 = vsub.f32 %v2342, %v2363
    %v2373 = vsub.f32 %v2347, %v2366
    %v2374 = vsub.f32 %v2352, %v2369
    %v2375 = vmul.f32 %v2370, 1.442695
    %v2376 = vpow.pop %v2375
    %v2377 = vmul.f32 %v2371, 1.442695
    %v2378 = vpow.pop %v2377
    %v2379 = vmul.f32 %v2372, 1.442695
    %v2380 = vpow.pop %v2379
    %v2381 = vmul.f32 %v2373, 1.442695
    %v2382 = vpow.pop %v2381
    %v2383 = vmul.f32 %v2374, 1.442695
    %v2384 = vpow.pop %v2383
    %v2385 = vsel %vm489, %v2376, 0.0
    %2386 = vadd.xlane.f32.xlu0 %v2385
    %v2387 = vpop.xlane.xlu0 %2386
    %v2388 = vsel %vm489, %v2378, 0.0
    %2389 = vadd.xlane.f32.xlu0 %v2388
    %v2390 = vpop.xlane.xlu0 %2389
    %v2391 = vsel %vm489, %v2380, 0.0
    %2392 = vadd.xlane.f32.xlu0 %v2391
    %v2393 = vpop.xlane.xlu0 %2392
    %v2394 = vsel %vm489, %v2382, 0.0
    %2395 = vadd.xlane.f32.xlu0 %v2394
    %v2396 = vpop.xlane.xlu0 %2395
    %v2397 = vsel %vm502, %v2384, 0.0
    %2398 = vadd.xlane.f32.xlu0 %v2397
    %v2399 = vpop.xlane.xlu0 %2398
    %v2400 = vrcp.pop %v2387
    %v2401 = vrcp.pop %v2390
    %v2402 = vrcp.pop %v2393
    %v2403 = vrcp.pop %v2396
    %v2404 = vrcp.pop %v2399
    %v2405 = vmul.f32 %v2376, %v2400
    %v2406 = vmul.f32 %v2378, %v2401
    %v2407 = vmul.f32 %v2380, %v2402
    %v2408 = vmul.f32 %v2382, %v2403
    %v2409 = vmul.f32 %v2384, %v2404
    %2410 = vrot.lane.b32.xlu0 %v2207, 64
    %v2411 = vpop.permute.xlu0 %2410
    %2412 = vrot.lane.b32.xlu0 %v2212, 64
    %v2413 = vpop.permute.xlu0 %2412
    %2414 = vrot.lane.b32.xlu0 %v2217, 64
    %v2415 = vpop.permute.xlu0 %2414
    %2416 = vrot.lane.b32.xlu0 %v2222, 64
    %v2417 = vpop.permute.xlu0 %2416
    %2418 = vrot.lane.b32.xlu0 %v2227, 64
    %v2419 = vpop.permute.xlu0 %2418
    %v2425 = vsel %vm489, %v2405, 0
    %v2428 = vsel %vm489, %v2406, 0
    %v2431 = vsel %vm489, %v2407, 0
    %v2434 = vsel %vm489, %v2408, 0
    %v2437 = vsel %vm489, %v2409, 0
    %v2439 = vsel %vm575, %v2419, 0
    %2441 = vmatprep.subr.mxu0 0.0
    %2442 = vmatpush1.msra.mxu0 0.0
    %2443 = vmatprep.subr.mxu0 0.0
    %2444 = vmatpush1.msra.mxu0 0.0
    %2445 = vmatprep.subr.mxu0 0.0
    %2446 = vmatpush1.msra.mxu0 0.0
    %2447 = vmatprep.subr.mxu0 0.0
    %2448 = vmatpush1.msra.mxu0 0.0
    %2449 = vmatprep.subr.mxu0 0.0
    %2450 = vmatpush1.msra.mxu0 0.0
    %2451 = vmatprep.subr.mxu0 0.0
    %2452 = vmatpush1.msra.mxu0 0.0
    %2453 = vmatprep.subr.mxu0 0.0
    %2454 = vmatpush1.msra.mxu0 0.0
    %2455 = vmatprep.subr.mxu0 0.0
    %2456 = vmatpush1.msra.mxu0 0.0
    %2457 = vmatprep.subr.mxu0 0.0
    %2458 = vmatpush1.msra.mxu0 0.0
    %2459 = vmatprep.subr.mxu0 0.0
    %2460 = vmatpush1.msra.mxu0 0.0
    %2461 = vmatprep.subr.mxu0 0.0
    %2462 = vmatpush1.msra.mxu0 0.0
    %2463 = vmatprep.subr.mxu0 0.0
    %2464 = vmatpush1.msra.mxu0 %v2439
    %2465 = vmatprep.subr.mxu0 0.0
    %2466 = vmatpush1.msra.mxu0 %v2417
    %2467 = vmatprep.subr.mxu0 0.0
    %2468 = vmatpush1.msra.mxu0 %v2415
    %2469 = vmatprep.subr.mxu0 0.0
    %2470 = vmatpush1.msra.mxu0 %v2413
    %2471 = vmatprep.subr.mxu0 0.0
    %2472 = vmatpush1.msra.mxu0 %v2411
    %2473 = vmatprep.subr.mxu0 0.0
    %2474 = vmatpush2.msra.mxu0 0.0
    %2475 = vmatprep.subr.mxu0 0.0
    %2476 = vmatpush2.msra.mxu0 0.0
    %2477 = vmatprep.subr.mxu0 0.0
    %2478 = vmatpush2.msra.mxu0 0.0
    %2479 = vmatprep.subr.mxu0 0.0
    %2480 = vmatpush2.msra.mxu0 0.0
    %2481 = vmatprep.subr.mxu0 0.0
    %2482 = vmatpush2.msra.mxu0 0.0
    %2483 = vmatprep.subr.mxu0 0.0
    %2484 = vmatpush2.msra.mxu0 0.0
    %2485 = vmatprep.subr.mxu0 0.0
    %2486 = vmatpush2.msra.mxu0 0.0
    %2487 = vmatprep.subr.mxu0 0.0
    %2488 = vmatpush2.msra.mxu0 0.0
    %2489 = vmatprep.subr.mxu0 0.0
    %2490 = vmatpush2.msra.mxu0 0.0
    %2491 = vmatprep.subr.mxu0 0.0
    %2492 = vmatpush2.msra.mxu0 0.0
    %2493 = vmatprep.subr.mxu0 0.0
    %2494 = vmatpush2.msra.mxu0 0.0
    %2495 = vmatprep.subr.mxu0 0.0
    %2496 = vmatpush2.msra.mxu0 0.0
    %2497 = vmatprep.subr.mxu0 0.0
    %2498 = vmatpush2.msra.mxu0 0.0
    %2499 = vmatprep.subr.mxu0 0.0
    %2500 = vmatpush2.msra.mxu0 0.0
    %2501 = vmatprep.subr.mxu0 0.0
    %2502 = vmatpush2.msra.mxu0 0.0
    %2503 = vmatprep.subr.mxu0 0.0
    %2504 = vmatpush2.msra.mxu0 0.0
    %2505 = vmatprep.mubr.f32.mxu0 0.0
    %2506 = vmatmul.mubr.f32.gmra.mxu0 %v2425
    %v2507 = vpop.f32.mrf.mxu0
    %v2508 = vadd.f32 0.0, %v2507
    %v2509 = vpop.f32.mrf.mxu0
    %2510 = vmatprep.mubr.f32.mxu0 0.0
    %2511 = vmatmul.mubr.f32.gmra.mxu0 %v2428
    %v2512 = vpop.f32.mrf.mxu0
    %v2513 = vadd.f32 0.0, %v2512
    %v2514 = vpop.f32.mrf.mxu0
    %2515 = vmatprep.mubr.f32.mxu0 0.0
    %2516 = vmatmul.mubr.f32.gmra.mxu0 %v2431
    %v2517 = vpop.f32.mrf.mxu0
    %v2518 = vadd.f32 0.0, %v2517
    %v2519 = vpop.f32.mrf.mxu0
    %2520 = vmatprep.mubr.f32.mxu0 0.0
    %2521 = vmatmul.mubr.f32.gmra.mxu0 %v2434
    %v2522 = vpop.f32.mrf.mxu0
    %v2523 = vadd.f32 0.0, %v2522
    %v2524 = vpop.f32.mrf.mxu0
    %2525 = vmatprep.mubr.f32.mxu0 0.0
    %2526 = vmatmul.mubr.f32.gmra.mxu0 %v2437
    %v2527 = vpop.f32.mrf.mxu0
    %v2528 = vadd.f32 0.0, %v2527
    %v2529 = vpop.f32.mrf.mxu0
    %2530 = vdwg.mxu0
    %2531 = vrot.lane.b32.xlu0 %v2207, 120
    %v2532 = vpop.permute.xlu0 %2531
    %2533 = vrot.lane.b32.xlu0 %v2212, 120
    %v2534 = vpop.permute.xlu0 %2533
    %2535 = vrot.lane.b32.xlu0 %v2217, 120
    %v2536 = vpop.permute.xlu0 %2535
    %2537 = vrot.lane.b32.xlu0 %v2222, 120
    %v2538 = vpop.permute.xlu0 %2537
    %2539 = vrot.lane.b32.xlu0 %v2227, 120
    %v2540 = vpop.permute.xlu0 %2539
    %2541 = vrot.lane.b32.xlu0 %v2207, 88
    %v2542 = vpop.permute.xlu0 %2541
    %2543 = vrot.lane.b32.xlu0 %v2212, 88
    %v2544 = vpop.permute.xlu0 %2543
    %2545 = vrot.lane.b32.xlu0 %v2217, 88
    %v2546 = vpop.permute.xlu0 %2545
    %2547 = vrot.lane.b32.xlu0 %v2222, 88
    %v2548 = vpop.permute.xlu0 %2547
    %2549 = vrot.lane.b32.xlu0 %v2227, 88
    %v2550 = vpop.permute.xlu0 %2549
    %v2551 = vsel %vm378, %v2532, 0
    %v2553 = vsel %vm378, %v2534, 0
    %v2555 = vsel %vm378, %v2536, 0
    %v2557 = vsel %vm378, %v2538, 0
    %v2559 = vsel %vm378, %v2540, 0
    %v2561 = vsel %vm378, %v2542, 0
    %v2563 = vsel %vm378, %v2544, 0
    %v2565 = vsel %vm378, %v2546, 0
    %v2567 = vsel %vm378, %v2548, 0
    %v2569 = vsel %vm378, %v2550, 0
    %2571 = vmatprep.subr.mxu0 0.0
    %2572 = vmatpush1.xpose.msra.mxu0 0.0
    %2573 = vmatprep.subr.mxu0 0.0
    %2574 = vmatpush1.xpose.msra.mxu0 0.0
    %2575 = vmatprep.subr.mxu0 0.0
    %2576 = vmatpush1.xpose.msra.mxu0 0.0
    %2577 = vmatprep.subr.mxu0 0.0
    %2578 = vmatpush1.xpose.msra.mxu0 0.0
    %2579 = vmatprep.subr.mxu0 0.0
    %2580 = vmatpush1.xpose.msra.mxu0 0.0
    %2581 = vmatprep.subr.mxu0 0.0
    %2582 = vmatpush1.xpose.msra.mxu0 0.0
    %2583 = vmatprep.subr.mxu0 0.0
    %2584 = vmatpush1.xpose.msra.mxu0 0.0
    %2585 = vmatprep.subr.mxu0 0.0
    %2586 = vmatpush1.xpose.msra.mxu0 0.0
    %2587 = vmatprep.subr.mxu0 0.0
    %2588 = vmatpush1.xpose.msra.mxu0 0.0
    %2589 = vmatprep.subr.mxu0 0.0
    %2590 = vmatpush1.xpose.msra.mxu0 0.0
    %2591 = vmatprep.subr.mxu0 0.0
    %2592 = vmatpush1.xpose.msra.mxu0 0.0
    %2593 = vmatprep.subr.mxu0 0.0
    %2594 = vmatpush1.xpose.msra.mxu0 %v2569
    %2595 = vmatprep.subr.mxu0 0.0
    %2596 = vmatpush1.xpose.msra.mxu0 %v2567
    %2597 = vmatprep.subr.mxu0 0.0
    %2598 = vmatpush1.xpose.msra.mxu0 %v2565
    %2599 = vmatprep.subr.mxu0 0.0
    %2600 = vmatpush1.xpose.msra.mxu0 %v2563
    %2601 = vmatprep.subr.mxu0 0.0
    %2602 = vmatpush1.xpose.msra.mxu0 %v2561
    %2603 = vmatprep.subr.mxu0 0.0
    %2604 = vmatpush2.xpose.msra.mxu0 0.0
    %2605 = vmatprep.subr.mxu0 0.0
    %2606 = vmatpush2.xpose.msra.mxu0 0.0
    %2607 = vmatprep.subr.mxu0 0.0
    %2608 = vmatpush2.xpose.msra.mxu0 0.0
    %2609 = vmatprep.subr.mxu0 0.0
    %2610 = vmatpush2.xpose.msra.mxu0 0.0
    %2611 = vmatprep.subr.mxu0 0.0
    %2612 = vmatpush2.xpose.msra.mxu0 0.0
    %2613 = vmatprep.subr.mxu0 0.0
    %2614 = vmatpush2.xpose.msra.mxu0 0.0
    %2615 = vmatprep.subr.mxu0 0.0
    %2616 = vmatpush2.xpose.msra.mxu0 0.0
    %2617 = vmatprep.subr.mxu0 0.0
    %2618 = vmatpush2.xpose.msra.mxu0 0.0
    %2619 = vmatprep.subr.mxu0 0.0
    %2620 = vmatpush2.xpose.msra.mxu0 0.0
    %2621 = vmatprep.subr.mxu0 0.0
    %2622 = vmatpush2.xpose.msra.mxu0 0.0
    %2623 = vmatprep.subr.mxu0 0.0
    %2624 = vmatpush2.xpose.msra.mxu0 0.0
    %2625 = vmatprep.subr.mxu0 0.0
    %2626 = vmatpush2.xpose.msra.mxu0 0.0
    %2627 = vmatprep.subr.mxu0 0.0
    %2628 = vmatpush2.xpose.msra.mxu0 0.0
    %2629 = vmatprep.subr.mxu0 0.0
    %2630 = vmatpush2.xpose.msra.mxu0 0.0
    %2631 = vmatprep.subr.mxu0 0.0
    %2632 = vmatpush2.xpose.msra.mxu0 0.0
    %2633 = vmatprep.subr.mxu0 0.0
    %2634 = vmatpush2.xpose.msra.mxu0 0.0
    %2635 = vmatprep.mubr.f32.mxu0 0.0
    %2636 = vmatmul.mubr.f32.gmra.mxu0 %v2551
    %v2637 = vpop.f32.mrf.mxu0
    %v2638 = vadd.f32 %v200, %v2637
    %v2639 = vpop.f32.mrf.mxu0
    %2640 = vmatprep.mubr.f32.mxu0 0.0
    %2641 = vmatmul.mubr.f32.gmra.mxu0 %v2553
    %v2642 = vpop.f32.mrf.mxu0
    %v2643 = vadd.f32 %v201, %v2642
    %v2644 = vpop.f32.mrf.mxu0
    %2645 = vmatprep.mubr.f32.mxu0 0.0
    %2646 = vmatmul.mubr.f32.gmra.mxu0 %v2555
    %v2647 = vpop.f32.mrf.mxu0
    %v2648 = vadd.f32 %v202, %v2647
    %v2649 = vpop.f32.mrf.mxu0
    %2650 = vmatprep.mubr.f32.mxu0 0.0
    %2651 = vmatmul.mubr.f32.gmra.mxu0 %v2557
    %v2652 = vpop.f32.mrf.mxu0
    %v2653 = vadd.f32 %v203, %v2652
    %v2654 = vpop.f32.mrf.mxu0
    %2655 = vmatprep.mubr.f32.mxu0 0.0
    %2656 = vmatmul.mubr.f32.gmra.mxu0 %v2559
    %v2657 = vpop.f32.mrf.mxu0
    %v2658 = vadd.f32 %v204, %v2657
    %v2659 = vpop.f32.mrf.mxu0
    %2660 = vdwg.mxu0
    %v2661 = vsel %vm489, %v2638, -inf
    %2662 = vmax.xlane.f32.xlu0 %v2661
    %v2663 = vpop.xlane.xlu0 %2662
    %v2664 = vsel %vm489, %v2643, -inf
    %2665 = vmax.xlane.f32.xlu0 %v2664
    %v2666 = vpop.xlane.xlu0 %2665
    %v2667 = vsel %vm489, %v2648, -inf
    %2668 = vmax.xlane.f32.xlu0 %v2667
    %v2669 = vpop.xlane.xlu0 %2668
    %v2670 = vsel %vm489, %v2653, -inf
    %2671 = vmax.xlane.f32.xlu0 %v2670
    %v2672 = vpop.xlane.xlu0 %2671
    %v2673 = vsel %vm502, %v2658, -inf
    %2674 = vmax.xlane.f32.xlu0 %v2673
    %v2675 = vpop.xlane.xlu0 %2674
    %v2676 = vsub.f32 %v2638, %v2663
    %v2677 = vsub.f32 %v2643, %v2666
    %v2678 = vsub.f32 %v2648, %v2669
    %v2679 = vsub.f32 %v2653, %v2672
    %v2680 = vsub.f32 %v2658, %v2675
    %v2681 = vmul.f32 %v2676, 1.442695
    %v2682 = vpow.pop %v2681
    %v2683 = vmul.f32 %v2677, 1.442695
    %v2684 = vpow.pop %v2683
    %v2685 = vmul.f32 %v2678, 1.442695
    %v2686 = vpow.pop %v2685
    %v2687 = vmul.f32 %v2679, 1.442695
    %v2688 = vpow.pop %v2687
    %v2689 = vmul.f32 %v2680, 1.442695
    %v2690 = vpow.pop %v2689
    %v2691 = vsel %vm489, %v2682, 0.0
    %2692 = vadd.xlane.f32.xlu0 %v2691
    %v2693 = vpop.xlane.xlu0 %2692
    %v2694 = vsel %vm489, %v2684, 0.0
    %2695 = vadd.xlane.f32.xlu0 %v2694
    %v2696 = vpop.xlane.xlu0 %2695
    %v2697 = vsel %vm489, %v2686, 0.0
    %2698 = vadd.xlane.f32.xlu0 %v2697
    %v2699 = vpop.xlane.xlu0 %2698
    %v2700 = vsel %vm489, %v2688, 0.0
    %2701 = vadd.xlane.f32.xlu0 %v2700
    %v2702 = vpop.xlane.xlu0 %2701
    %v2703 = vsel %vm502, %v2690, 0.0
    %2704 = vadd.xlane.f32.xlu0 %v2703
    %v2705 = vpop.xlane.xlu0 %2704
    %v2706 = vrcp.pop %v2693
    %v2707 = vrcp.pop %v2696
    %v2708 = vrcp.pop %v2699
    %v2709 = vrcp.pop %v2702
    %v2710 = vrcp.pop %v2705
    %v2711 = vmul.f32 %v2682, %v2706
    %v2712 = vmul.f32 %v2684, %v2707
    %v2713 = vmul.f32 %v2686, %v2708
    %v2714 = vmul.f32 %v2688, %v2709
    %v2715 = vmul.f32 %v2690, %v2710
    %2716 = vrot.lane.b32.xlu0 %v2207, 56
    %v2717 = vpop.permute.xlu0 %2716
    %2718 = vrot.lane.b32.xlu0 %v2212, 56
    %v2719 = vpop.permute.xlu0 %2718
    %2720 = vrot.lane.b32.xlu0 %v2217, 56
    %v2721 = vpop.permute.xlu0 %2720
    %2722 = vrot.lane.b32.xlu0 %v2222, 56
    %v2723 = vpop.permute.xlu0 %2722
    %2724 = vrot.lane.b32.xlu0 %v2227, 56
    %v2725 = vpop.permute.xlu0 %2724
    %v2731 = vsel %vm489, %v2711, 0
    %v2734 = vsel %vm489, %v2712, 0
    %v2737 = vsel %vm489, %v2713, 0
    %v2740 = vsel %vm489, %v2714, 0
    %v2743 = vsel %vm489, %v2715, 0
    %v2745 = vsel %vm575, %v2725, 0
    %2747 = vmatprep.subr.mxu0 0.0
    %2748 = vmatpush1.msra.mxu0 0.0
    %2749 = vmatprep.subr.mxu0 0.0
    %2750 = vmatpush1.msra.mxu0 0.0
    %2751 = vmatprep.subr.mxu0 0.0
    %2752 = vmatpush1.msra.mxu0 0.0
    %2753 = vmatprep.subr.mxu0 0.0
    %2754 = vmatpush1.msra.mxu0 0.0
    %2755 = vmatprep.subr.mxu0 0.0
    %2756 = vmatpush1.msra.mxu0 0.0
    %2757 = vmatprep.subr.mxu0 0.0
    %2758 = vmatpush1.msra.mxu0 0.0
    %2759 = vmatprep.subr.mxu0 0.0
    %2760 = vmatpush1.msra.mxu0 0.0
    %2761 = vmatprep.subr.mxu0 0.0
    %2762 = vmatpush1.msra.mxu0 0.0
    %2763 = vmatprep.subr.mxu0 0.0
    %2764 = vmatpush1.msra.mxu0 0.0
    %2765 = vmatprep.subr.mxu0 0.0
    %2766 = vmatpush1.msra.mxu0 0.0
    %2767 = vmatprep.subr.mxu0 0.0
    %2768 = vmatpush1.msra.mxu0 0.0
    %2769 = vmatprep.subr.mxu0 0.0
    %2770 = vmatpush1.msra.mxu0 %v2745
    %2771 = vmatprep.subr.mxu0 0.0
    %2772 = vmatpush1.msra.mxu0 %v2723
    %2773 = vmatprep.subr.mxu0 0.0
    %2774 = vmatpush1.msra.mxu0 %v2721
    %2775 = vmatprep.subr.mxu0 0.0
    %2776 = vmatpush1.msra.mxu0 %v2719
    %2777 = vmatprep.subr.mxu0 0.0
    %2778 = vmatpush1.msra.mxu0 %v2717
    %2779 = vmatprep.subr.mxu0 0.0
    %2780 = vmatpush2.msra.mxu0 0.0
    %2781 = vmatprep.subr.mxu0 0.0
    %2782 = vmatpush2.msra.mxu0 0.0
    %2783 = vmatprep.subr.mxu0 0.0
    %2784 = vmatpush2.msra.mxu0 0.0
    %2785 = vmatprep.subr.mxu0 0.0
    %2786 = vmatpush2.msra.mxu0 0.0
    %2787 = vmatprep.subr.mxu0 0.0
    %2788 = vmatpush2.msra.mxu0 0.0
    %2789 = vmatprep.subr.mxu0 0.0
    %2790 = vmatpush2.msra.mxu0 0.0
    %2791 = vmatprep.subr.mxu0 0.0
    %2792 = vmatpush2.msra.mxu0 0.0
    %2793 = vmatprep.subr.mxu0 0.0
    %2794 = vmatpush2.msra.mxu0 0.0
    %2795 = vmatprep.subr.mxu0 0.0
    %2796 = vmatpush2.msra.mxu0 0.0
    %2797 = vmatprep.subr.mxu0 0.0
    %2798 = vmatpush2.msra.mxu0 0.0
    %2799 = vmatprep.subr.mxu0 0.0
    %2800 = vmatpush2.msra.mxu0 0.0
    %2801 = vmatprep.subr.mxu0 0.0
    %2802 = vmatpush2.msra.mxu0 0.0
    %2803 = vmatprep.subr.mxu0 0.0
    %2804 = vmatpush2.msra.mxu0 0.0
    %2805 = vmatprep.subr.mxu0 0.0
    %2806 = vmatpush2.msra.mxu0 0.0
    %2807 = vmatprep.subr.mxu0 0.0
    %2808 = vmatpush2.msra.mxu0 0.0
    %2809 = vmatprep.subr.mxu0 0.0
    %2810 = vmatpush2.msra.mxu0 0.0
    %2811 = vmatprep.mubr.f32.mxu0 0.0
    %2812 = vmatmul.mubr.f32.gmra.mxu0 %v2731
    %v2813 = vpop.f32.mrf.mxu0
    %v2814 = vadd.f32 0.0, %v2813
    %v2815 = vpop.f32.mrf.mxu0
    %2816 = vmatprep.mubr.f32.mxu0 0.0
    %2817 = vmatmul.mubr.f32.gmra.mxu0 %v2734
    %v2818 = vpop.f32.mrf.mxu0
    %v2819 = vadd.f32 0.0, %v2818
    %v2820 = vpop.f32.mrf.mxu0
    %2821 = vmatprep.mubr.f32.mxu0 0.0
    %2822 = vmatmul.mubr.f32.gmra.mxu0 %v2737
    %v2823 = vpop.f32.mrf.mxu0
    %v2824 = vadd.f32 0.0, %v2823
    %v2825 = vpop.f32.mrf.mxu0
    %2826 = vmatprep.mubr.f32.mxu0 0.0
    %2827 = vmatmul.mubr.f32.gmra.mxu0 %v2740
    %v2828 = vpop.f32.mrf.mxu0
    %v2829 = vadd.f32 0.0, %v2828
    %v2830 = vpop.f32.mrf.mxu0
    %2831 = vmatprep.mubr.f32.mxu0 0.0
    %2832 = vmatmul.mubr.f32.gmra.mxu0 %v2743
    %v2833 = vpop.f32.mrf.mxu0
    %v2834 = vadd.f32 0.0, %v2833
    %v2835 = vpop.f32.mrf.mxu0
    %2836 = vdwg.mxu0
    %2837 = vrot.lane.b32.xlu0 %v2207, 112
    %v2838 = vpop.permute.xlu0 %2837
    %2839 = vrot.lane.b32.xlu0 %v2212, 112
    %v2840 = vpop.permute.xlu0 %2839
    %2841 = vrot.lane.b32.xlu0 %v2217, 112
    %v2842 = vpop.permute.xlu0 %2841
    %2843 = vrot.lane.b32.xlu0 %v2222, 112
    %v2844 = vpop.permute.xlu0 %2843
    %2845 = vrot.lane.b32.xlu0 %v2227, 112
    %v2846 = vpop.permute.xlu0 %2845
    %2847 = vrot.lane.b32.xlu0 %v2207, 80
    %v2848 = vpop.permute.xlu0 %2847
    %2849 = vrot.lane.b32.xlu0 %v2212, 80
    %v2850 = vpop.permute.xlu0 %2849
    %2851 = vrot.lane.b32.xlu0 %v2217, 80
    %v2852 = vpop.permute.xlu0 %2851
    %2853 = vrot.lane.b32.xlu0 %v2222, 80
    %v2854 = vpop.permute.xlu0 %2853
    %2855 = vrot.lane.b32.xlu0 %v2227, 80
    %v2856 = vpop.permute.xlu0 %2855
    %v2857 = vsel %vm378, %v2838, 0
    %v2859 = vsel %vm378, %v2840, 0
    %v2861 = vsel %vm378, %v2842, 0
    %v2863 = vsel %vm378, %v2844, 0
    %v2865 = vsel %vm378, %v2846, 0
    %v2867 = vsel %vm378, %v2848, 0
    %v2869 = vsel %vm378, %v2850, 0
    %v2871 = vsel %vm378, %v2852, 0
    %v2873 = vsel %vm378, %v2854, 0
    %v2875 = vsel %vm378, %v2856, 0
    %2877 = vmatprep.subr.mxu0 0.0
    %2878 = vmatpush1.xpose.msra.mxu0 0.0
    %2879 = vmatprep.subr.mxu0 0.0
    %2880 = vmatpush1.xpose.msra.mxu0 0.0
    %2881 = vmatprep.subr.mxu0 0.0
    %2882 = vmatpush1.xpose.msra.mxu0 0.0
    %2883 = vmatprep.subr.mxu0 0.0
    %2884 = vmatpush1.xpose.msra.mxu0 0.0
    %2885 = vmatprep.subr.mxu0 0.0
    %2886 = vmatpush1.xpose.msra.mxu0 0.0
    %2887 = vmatprep.subr.mxu0 0.0
    %2888 = vmatpush1.xpose.msra.mxu0 0.0
    %2889 = vmatprep.subr.mxu0 0.0
    %2890 = vmatpush1.xpose.msra.mxu0 0.0
    %2891 = vmatprep.subr.mxu0 0.0
    %2892 = vmatpush1.xpose.msra.mxu0 0.0
    %2893 = vmatprep.subr.mxu0 0.0
    %2894 = vmatpush1.xpose.msra.mxu0 0.0
    %2895 = vmatprep.subr.mxu0 0.0
    %2896 = vmatpush1.xpose.msra.mxu0 0.0
    %2897 = vmatprep.subr.mxu0 0.0
    %2898 = vmatpush1.xpose.msra.mxu0 0.0
    %2899 = vmatprep.subr.mxu0 0.0
    %2900 = vmatpush1.xpose.msra.mxu0 %v2875
    %2901 = vmatprep.subr.mxu0 0.0
    %2902 = vmatpush1.xpose.msra.mxu0 %v2873
    %2903 = vmatprep.subr.mxu0 0.0
    %2904 = vmatpush1.xpose.msra.mxu0 %v2871
    %2905 = vmatprep.subr.mxu0 0.0
    %2906 = vmatpush1.xpose.msra.mxu0 %v2869
    %2907 = vmatprep.subr.mxu0 0.0
    %2908 = vmatpush1.xpose.msra.mxu0 %v2867
    %2909 = vmatprep.subr.mxu0 0.0
    %2910 = vmatpush2.xpose.msra.mxu0 0.0
    %2911 = vmatprep.subr.mxu0 0.0
    %2912 = vmatpush2.xpose.msra.mxu0 0.0
    %2913 = vmatprep.subr.mxu0 0.0
    %2914 = vmatpush2.xpose.msra.mxu0 0.0
    %2915 = vmatprep.subr.mxu0 0.0
    %2916 = vmatpush2.xpose.msra.mxu0 0.0
    %2917 = vmatprep.subr.mxu0 0.0
    %2918 = vmatpush2.xpose.msra.mxu0 0.0
    %2919 = vmatprep.subr.mxu0 0.0
    %2920 = vmatpush2.xpose.msra.mxu0 0.0
    %2921 = vmatprep.subr.mxu0 0.0
    %2922 = vmatpush2.xpose.msra.mxu0 0.0
    %2923 = vmatprep.subr.mxu0 0.0
    %2924 = vmatpush2.xpose.msra.mxu0 0.0
    %2925 = vmatprep.subr.mxu0 0.0
    %2926 = vmatpush2.xpose.msra.mxu0 0.0
    %2927 = vmatprep.subr.mxu0 0.0
    %2928 = vmatpush2.xpose.msra.mxu0 0.0
    %2929 = vmatprep.subr.mxu0 0.0
    %2930 = vmatpush2.xpose.msra.mxu0 0.0
    %2931 = vmatprep.subr.mxu0 0.0
    %2932 = vmatpush2.xpose.msra.mxu0 0.0
    %2933 = vmatprep.subr.mxu0 0.0
    %2934 = vmatpush2.xpose.msra.mxu0 0.0
    %2935 = vmatprep.subr.mxu0 0.0
    %2936 = vmatpush2.xpose.msra.mxu0 0.0
    %2937 = vmatprep.subr.mxu0 0.0
    %2938 = vmatpush2.xpose.msra.mxu0 0.0
    %2939 = vmatprep.subr.mxu0 0.0
    %2940 = vmatpush2.xpose.msra.mxu0 0.0
    %2941 = vmatprep.mubr.f32.mxu0 0.0
    %2942 = vmatmul.mubr.f32.gmra.mxu0 %v2857
    %v2943 = vpop.f32.mrf.mxu0
    %v2944 = vadd.f32 %v200, %v2943
    %v2945 = vpop.f32.mrf.mxu0
    %2946 = vmatprep.mubr.f32.mxu0 0.0
    %2947 = vmatmul.mubr.f32.gmra.mxu0 %v2859
    %v2948 = vpop.f32.mrf.mxu0
    %v2949 = vadd.f32 %v201, %v2948
    %v2950 = vpop.f32.mrf.mxu0
    %2951 = vmatprep.mubr.f32.mxu0 0.0
    %2952 = vmatmul.mubr.f32.gmra.mxu0 %v2861
    %v2953 = vpop.f32.mrf.mxu0
    %v2954 = vadd.f32 %v202, %v2953
    %v2955 = vpop.f32.mrf.mxu0
    %2956 = vmatprep.mubr.f32.mxu0 0.0
    %2957 = vmatmul.mubr.f32.gmra.mxu0 %v2863
    %v2958 = vpop.f32.mrf.mxu0
    %v2959 = vadd.f32 %v203, %v2958
    %v2960 = vpop.f32.mrf.mxu0
    %2961 = vmatprep.mubr.f32.mxu0 0.0
    %2962 = vmatmul.mubr.f32.gmra.mxu0 %v2865
    %v2963 = vpop.f32.mrf.mxu0
    %v2964 = vadd.f32 %v204, %v2963
    %v2965 = vpop.f32.mrf.mxu0
    %2966 = vdwg.mxu0
    %v2967 = vsel %vm489, %v2944, -inf
    %2968 = vmax.xlane.f32.xlu0 %v2967
    %v2969 = vpop.xlane.xlu0 %2968
    %v2970 = vsel %vm489, %v2949, -inf
    %2971 = vmax.xlane.f32.xlu0 %v2970
    %v2972 = vpop.xlane.xlu0 %2971
    %v2973 = vsel %vm489, %v2954, -inf
    %2974 = vmax.xlane.f32.xlu0 %v2973
    %v2975 = vpop.xlane.xlu0 %2974
    %v2976 = vsel %vm489, %v2959, -inf
    %2977 = vmax.xlane.f32.xlu0 %v2976
    %v2978 = vpop.xlane.xlu0 %2977
    %v2979 = vsel %vm502, %v2964, -inf
    %2980 = vmax.xlane.f32.xlu0 %v2979
    %v2981 = vpop.xlane.xlu0 %2980
    %v2982 = vsub.f32 %v2944, %v2969
    %v2983 = vsub.f32 %v2949, %v2972
    %v2984 = vsub.f32 %v2954, %v2975
    %v2985 = vsub.f32 %v2959, %v2978
    %v2986 = vsub.f32 %v2964, %v2981
    %v2987 = vmul.f32 %v2982, 1.442695
    %v2988 = vpow.pop %v2987
    %v2989 = vmul.f32 %v2983, 1.442695
    %v2990 = vpow.pop %v2989
    %v2991 = vmul.f32 %v2984, 1.442695
    %v2992 = vpow.pop %v2991
    %v2993 = vmul.f32 %v2985, 1.442695
    %v2994 = vpow.pop %v2993
    %v2995 = vmul.f32 %v2986, 1.442695
    %v2996 = vpow.pop %v2995
    %v2997 = vsel %vm489, %v2988, 0.0
    %2998 = vadd.xlane.f32.xlu0 %v2997
    %v2999 = vpop.xlane.xlu0 %2998
    %v3000 = vsel %vm489, %v2990, 0.0
    %3001 = vadd.xlane.f32.xlu0 %v3000
    %v3002 = vpop.xlane.xlu0 %3001
    %v3003 = vsel %vm489, %v2992, 0.0
    %3004 = vadd.xlane.f32.xlu0 %v3003
    %v3005 = vpop.xlane.xlu0 %3004
    %v3006 = vsel %vm489, %v2994, 0.0
    %3007 = vadd.xlane.f32.xlu0 %v3006
    %v3008 = vpop.xlane.xlu0 %3007
    %v3009 = vsel %vm502, %v2996, 0.0
    %3010 = vadd.xlane.f32.xlu0 %v3009
    %v3011 = vpop.xlane.xlu0 %3010
    %v3012 = vrcp.pop %v2999
    %v3013 = vrcp.pop %v3002
    %v3014 = vrcp.pop %v3005
    %v3015 = vrcp.pop %v3008
    %v3016 = vrcp.pop %v3011
    %v3017 = vmul.f32 %v2988, %v3012
    %v3018 = vmul.f32 %v2990, %v3013
    %v3019 = vmul.f32 %v2992, %v3014
    %v3020 = vmul.f32 %v2994, %v3015
    %v3021 = vmul.f32 %v2996, %v3016
    %3022 = vrot.lane.b32.xlu0 %v2207, 48
    %v3023 = vpop.permute.xlu0 %3022
    %3024 = vrot.lane.b32.xlu0 %v2212, 48
    %v3025 = vpop.permute.xlu0 %3024
    %3026 = vrot.lane.b32.xlu0 %v2217, 48
    %v3027 = vpop.permute.xlu0 %3026
    %3028 = vrot.lane.b32.xlu0 %v2222, 48
    %v3029 = vpop.permute.xlu0 %3028
    %3030 = vrot.lane.b32.xlu0 %v2227, 48
    %v3031 = vpop.permute.xlu0 %3030
    %v3037 = vsel %vm489, %v3017, 0
    %v3040 = vsel %vm489, %v3018, 0
    %v3043 = vsel %vm489, %v3019, 0
    %v3046 = vsel %vm489, %v3020, 0
    %v3049 = vsel %vm489, %v3021, 0
    %v3051 = vsel %vm575, %v3031, 0
    %3053 = vmatprep.subr.mxu0 0.0
    %3054 = vmatpush1.msra.mxu0 0.0
    %3055 = vmatprep.subr.mxu0 0.0
    %3056 = vmatpush1.msra.mxu0 0.0
    %3057 = vmatprep.subr.mxu0 0.0
    %3058 = vmatpush1.msra.mxu0 0.0
    %3059 = vmatprep.subr.mxu0 0.0
    %3060 = vmatpush1.msra.mxu0 0.0
    %3061 = vmatprep.subr.mxu0 0.0
    %3062 = vmatpush1.msra.mxu0 0.0
    %3063 = vmatprep.subr.mxu0 0.0
    %3064 = vmatpush1.msra.mxu0 0.0
    %3065 = vmatprep.subr.mxu0 0.0
    %3066 = vmatpush1.msra.mxu0 0.0
    %3067 = vmatprep.subr.mxu0 0.0
    %3068 = vmatpush1.msra.mxu0 0.0
    %3069 = vmatprep.subr.mxu0 0.0
    %3070 = vmatpush1.msra.mxu0 0.0
    %3071 = vmatprep.subr.mxu0 0.0
    %3072 = vmatpush1.msra.mxu0 0.0
    %3073 = vmatprep.subr.mxu0 0.0
    %3074 = vmatpush1.msra.mxu0 0.0
    %3075 = vmatprep.subr.mxu0 0.0
    %3076 = vmatpush1.msra.mxu0 %v3051
    %3077 = vmatprep.subr.mxu0 0.0
    %3078 = vmatpush1.msra.mxu0 %v3029
    %3079 = vmatprep.subr.mxu0 0.0
    %3080 = vmatpush1.msra.mxu0 %v3027
    %3081 = vmatprep.subr.mxu0 0.0
    %3082 = vmatpush1.msra.mxu0 %v3025
    %3083 = vmatprep.subr.mxu0 0.0
    %3084 = vmatpush1.msra.mxu0 %v3023
    %3085 = vmatprep.subr.mxu0 0.0
    %3086 = vmatpush2.msra.mxu0 0.0
    %3087 = vmatprep.subr.mxu0 0.0
    %3088 = vmatpush2.msra.mxu0 0.0
    %3089 = vmatprep.subr.mxu0 0.0
    %3090 = vmatpush2.msra.mxu0 0.0
    %3091 = vmatprep.subr.mxu0 0.0
    %3092 = vmatpush2.msra.mxu0 0.0
    %3093 = vmatprep.subr.mxu0 0.0
    %3094 = vmatpush2.msra.mxu0 0.0
    %3095 = vmatprep.subr.mxu0 0.0
    %3096 = vmatpush2.msra.mxu0 0.0
    %3097 = vmatprep.subr.mxu0 0.0
    %3098 = vmatpush2.msra.mxu0 0.0
    %3099 = vmatprep.subr.mxu0 0.0
    %3100 = vmatpush2.msra.mxu0 0.0
    %3101 = vmatprep.subr.mxu0 0.0
    %3102 = vmatpush2.msra.mxu0 0.0
    %3103 = vmatprep.subr.mxu0 0.0
    %3104 = vmatpush2.msra.mxu0 0.0
    %3105 = vmatprep.subr.mxu0 0.0
    %3106 = vmatpush2.msra.mxu0 0.0
    %3107 = vmatprep.subr.mxu0 0.0
    %3108 = vmatpush2.msra.mxu0 0.0
    %3109 = vmatprep.subr.mxu0 0.0
    %3110 = vmatpush2.msra.mxu0 0.0
    %3111 = vmatprep.subr.mxu0 0.0
    %3112 = vmatpush2.msra.mxu0 0.0
    %3113 = vmatprep.subr.mxu0 0.0
    %3114 = vmatpush2.msra.mxu0 0.0
    %3115 = vmatprep.subr.mxu0 0.0
    %3116 = vmatpush2.msra.mxu0 0.0
    %3117 = vmatprep.mubr.f32.mxu0 0.0
    %3118 = vmatmul.mubr.f32.gmra.mxu0 %v3037
    %v3119 = vpop.f32.mrf.mxu0
    %v3120 = vadd.f32 0.0, %v3119
    %v3121 = vpop.f32.mrf.mxu0
    %3122 = vmatprep.mubr.f32.mxu0 0.0
    %3123 = vmatmul.mubr.f32.gmra.mxu0 %v3040
    %v3124 = vpop.f32.mrf.mxu0
    %v3125 = vadd.f32 0.0, %v3124
    %v3126 = vpop.f32.mrf.mxu0
    %3127 = vmatprep.mubr.f32.mxu0 0.0
    %3128 = vmatmul.mubr.f32.gmra.mxu0 %v3043
    %v3129 = vpop.f32.mrf.mxu0
    %v3130 = vadd.f32 0.0, %v3129
    %v3131 = vpop.f32.mrf.mxu0
    %3132 = vmatprep.mubr.f32.mxu0 0.0
    %3133 = vmatmul.mubr.f32.gmra.mxu0 %v3046
    %v3134 = vpop.f32.mrf.mxu0
    %v3135 = vadd.f32 0.0, %v3134
    %v3136 = vpop.f32.mrf.mxu0
    %3137 = vmatprep.mubr.f32.mxu0 0.0
    %3138 = vmatmul.mubr.f32.gmra.mxu0 %v3049
    %v3139 = vpop.f32.mrf.mxu0
    %v3140 = vadd.f32 0.0, %v3139
    %v3141 = vpop.f32.mrf.mxu0
    %3142 = vdwg.mxu0
    %3143 = vrot.lane.b32.xlu0 %v2207, 104
    %v3144 = vpop.permute.xlu0 %3143
    %3145 = vrot.lane.b32.xlu0 %v2212, 104
    %v3146 = vpop.permute.xlu0 %3145
    %3147 = vrot.lane.b32.xlu0 %v2217, 104
    %v3148 = vpop.permute.xlu0 %3147
    %3149 = vrot.lane.b32.xlu0 %v2222, 104
    %v3150 = vpop.permute.xlu0 %3149
    %3151 = vrot.lane.b32.xlu0 %v2227, 104
    %v3152 = vpop.permute.xlu0 %3151
    %3153 = vrot.lane.b32.xlu0 %v2207, 72
    %v3154 = vpop.permute.xlu0 %3153
    %3155 = vrot.lane.b32.xlu0 %v2212, 72
    %v3156 = vpop.permute.xlu0 %3155
    %3157 = vrot.lane.b32.xlu0 %v2217, 72
    %v3158 = vpop.permute.xlu0 %3157
    %3159 = vrot.lane.b32.xlu0 %v2222, 72
    %v3160 = vpop.permute.xlu0 %3159
    %3161 = vrot.lane.b32.xlu0 %v2227, 72
    %v3162 = vpop.permute.xlu0 %3161
    %v3163 = vsel %vm378, %v3144, 0
    %v3165 = vsel %vm378, %v3146, 0
    %v3167 = vsel %vm378, %v3148, 0
    %v3169 = vsel %vm378, %v3150, 0
    %v3171 = vsel %vm378, %v3152, 0
    %v3173 = vsel %vm378, %v3154, 0
    %v3175 = vsel %vm378, %v3156, 0
    %v3177 = vsel %vm378, %v3158, 0
    %v3179 = vsel %vm378, %v3160, 0
    %v3181 = vsel %vm378, %v3162, 0
    %3183 = vmatprep.subr.mxu0 0.0
    %3184 = vmatpush1.xpose.msra.mxu0 0.0
    %3185 = vmatprep.subr.mxu0 0.0
    %3186 = vmatpush1.xpose.msra.mxu0 0.0
    %3187 = vmatprep.subr.mxu0 0.0
    %3188 = vmatpush1.xpose.msra.mxu0 0.0
    %3189 = vmatprep.subr.mxu0 0.0
    %3190 = vmatpush1.xpose.msra.mxu0 0.0
    %3191 = vmatprep.subr.mxu0 0.0
    %3192 = vmatpush1.xpose.msra.mxu0 0.0
    %3193 = vmatprep.subr.mxu0 0.0
    %3194 = vmatpush1.xpose.msra.mxu0 0.0
    %3195 = vmatprep.subr.mxu0 0.0
    %3196 = vmatpush1.xpose.msra.mxu0 0.0
    %3197 = vmatprep.subr.mxu0 0.0
    %3198 = vmatpush1.xpose.msra.mxu0 0.0
    %3199 = vmatprep.subr.mxu0 0.0
    %3200 = vmatpush1.xpose.msra.mxu0 0.0
    %3201 = vmatprep.subr.mxu0 0.0
    %3202 = vmatpush1.xpose.msra.mxu0 0.0
    %3203 = vmatprep.subr.mxu0 0.0
    %3204 = vmatpush1.xpose.msra.mxu0 0.0
    %3205 = vmatprep.subr.mxu0 0.0
    %3206 = vmatpush1.xpose.msra.mxu0 %v3181
    %3207 = vmatprep.subr.mxu0 0.0
    %3208 = vmatpush1.xpose.msra.mxu0 %v3179
    %3209 = vmatprep.subr.mxu0 0.0
    %3210 = vmatpush1.xpose.msra.mxu0 %v3177
    %3211 = vmatprep.subr.mxu0 0.0
    %3212 = vmatpush1.xpose.msra.mxu0 %v3175
    %3213 = vmatprep.subr.mxu0 0.0
    %3214 = vmatpush1.xpose.msra.mxu0 %v3173
    %3215 = vmatprep.subr.mxu0 0.0
    %3216 = vmatpush2.xpose.msra.mxu0 0.0
    %3217 = vmatprep.subr.mxu0 0.0
    %3218 = vmatpush2.xpose.msra.mxu0 0.0
    %3219 = vmatprep.subr.mxu0 0.0
    %3220 = vmatpush2.xpose.msra.mxu0 0.0
    %3221 = vmatprep.subr.mxu0 0.0
    %3222 = vmatpush2.xpose.msra.mxu0 0.0
    %3223 = vmatprep.subr.mxu0 0.0
    %3224 = vmatpush2.xpose.msra.mxu0 0.0
    %3225 = vmatprep.subr.mxu0 0.0
    %3226 = vmatpush2.xpose.msra.mxu0 0.0
    %3227 = vmatprep.subr.mxu0 0.0
    %3228 = vmatpush2.xpose.msra.mxu0 0.0
    %3229 = vmatprep.subr.mxu0 0.0
    %3230 = vmatpush2.xpose.msra.mxu0 0.0
    %3231 = vmatprep.subr.mxu0 0.0
    %3232 = vmatpush2.xpose.msra.mxu0 0.0
    %3233 = vmatprep.subr.mxu0 0.0
    %3234 = vmatpush2.xpose.msra.mxu0 0.0
    %3235 = vmatprep.subr.mxu0 0.0
    %3236 = vmatpush2.xpose.msra.mxu0 0.0
    %3237 = vmatprep.subr.mxu0 0.0
    %3238 = vmatpush2.xpose.msra.mxu0 0.0
    %3239 = vmatprep.subr.mxu0 0.0
    %3240 = vmatpush2.xpose.msra.mxu0 0.0
    %3241 = vmatprep.subr.mxu0 0.0
    %3242 = vmatpush2.xpose.msra.mxu0 0.0
    %3243 = vmatprep.subr.mxu0 0.0
    %3244 = vmatpush2.xpose.msra.mxu0 0.0
    %3245 = vmatprep.subr.mxu0 0.0
    %3246 = vmatpush2.xpose.msra.mxu0 0.0
    %3247 = vmatprep.mubr.f32.mxu0 0.0
    %3248 = vmatmul.mubr.f32.gmra.mxu0 %v3163
    %v3249 = vpop.f32.mrf.mxu0
    %v3250 = vadd.f32 %v200, %v3249
    %v3251 = vpop.f32.mrf.mxu0
    %3252 = vmatprep.mubr.f32.mxu0 0.0
    %3253 = vmatmul.mubr.f32.gmra.mxu0 %v3165
    %v3254 = vpop.f32.mrf.mxu0
    %v3255 = vadd.f32 %v201, %v3254
    %v3256 = vpop.f32.mrf.mxu0
    %3257 = vmatprep.mubr.f32.mxu0 0.0
    %3258 = vmatmul.mubr.f32.gmra.mxu0 %v3167
    %v3259 = vpop.f32.mrf.mxu0
    %v3260 = vadd.f32 %v202, %v3259
    %v3261 = vpop.f32.mrf.mxu0
    %3262 = vmatprep.mubr.f32.mxu0 0.0
    %3263 = vmatmul.mubr.f32.gmra.mxu0 %v3169
    %v3264 = vpop.f32.mrf.mxu0
    %v3265 = vadd.f32 %v203, %v3264
    %v3266 = vpop.f32.mrf.mxu0
    %3267 = vmatprep.mubr.f32.mxu0 0.0
    %3268 = vmatmul.mubr.f32.gmra.mxu0 %v3171
    %v3269 = vpop.f32.mrf.mxu0
    %v3270 = vadd.f32 %v204, %v3269
    %v3271 = vpop.f32.mrf.mxu0
    %3272 = vdwg.mxu0
    %v3273 = vsel %vm489, %v3250, -inf
    %3274 = vmax.xlane.f32.xlu0 %v3273
    %v3275 = vpop.xlane.xlu0 %3274
    %v3276 = vsel %vm489, %v3255, -inf
    %3277 = vmax.xlane.f32.xlu0 %v3276
    %v3278 = vpop.xlane.xlu0 %3277
    %v3279 = vsel %vm489, %v3260, -inf
    %3280 = vmax.xlane.f32.xlu0 %v3279
    %v3281 = vpop.xlane.xlu0 %3280
    %v3282 = vsel %vm489, %v3265, -inf
    %3283 = vmax.xlane.f32.xlu0 %v3282
    %v3284 = vpop.xlane.xlu0 %3283
    %v3285 = vsel %vm502, %v3270, -inf
    %3286 = vmax.xlane.f32.xlu0 %v3285
    %v3287 = vpop.xlane.xlu0 %3286
    %v3288 = vsub.f32 %v3250, %v3275
    %v3289 = vsub.f32 %v3255, %v3278
    %v3290 = vsub.f32 %v3260, %v3281
    %v3291 = vsub.f32 %v3265, %v3284
    %v3292 = vsub.f32 %v3270, %v3287
    %v3293 = vmul.f32 %v3288, 1.442695
    %v3294 = vpow.pop %v3293
    %v3295 = vmul.f32 %v3289, 1.442695
    %v3296 = vpow.pop %v3295
    %v3297 = vmul.f32 %v3290, 1.442695
    %v3298 = vpow.pop %v3297
    %v3299 = vmul.f32 %v3291, 1.442695
    %v3300 = vpow.pop %v3299
    %v3301 = vmul.f32 %v3292, 1.442695
    %v3302 = vpow.pop %v3301
    %v3303 = vsel %vm489, %v3294, 0.0
    %3304 = vadd.xlane.f32.xlu0 %v3303
    %v3305 = vpop.xlane.xlu0 %3304
    %v3306 = vsel %vm489, %v3296, 0.0
    %3307 = vadd.xlane.f32.xlu0 %v3306
    %v3308 = vpop.xlane.xlu0 %3307
    %v3309 = vsel %vm489, %v3298, 0.0
    %3310 = vadd.xlane.f32.xlu0 %v3309
    %v3311 = vpop.xlane.xlu0 %3310
    %v3312 = vsel %vm489, %v3300, 0.0
    %3313 = vadd.xlane.f32.xlu0 %v3312
    %v3314 = vpop.xlane.xlu0 %3313
    %v3315 = vsel %vm502, %v3302, 0.0
    %3316 = vadd.xlane.f32.xlu0 %v3315
    %v3317 = vpop.xlane.xlu0 %3316
    %v3318 = vrcp.pop %v3305
    %v3319 = vrcp.pop %v3308
    %v3320 = vrcp.pop %v3311
    %v3321 = vrcp.pop %v3314
    %v3322 = vrcp.pop %v3317
    %v3323 = vmul.f32 %v3294, %v3318
    %v3324 = vmul.f32 %v3296, %v3319
    %v3325 = vmul.f32 %v3298, %v3320
    %v3326 = vmul.f32 %v3300, %v3321
    %v3327 = vmul.f32 %v3302, %v3322
    %3328 = vrot.lane.b32.xlu0 %v2207, 40
    %v3329 = vpop.permute.xlu0 %3328
    %3330 = vrot.lane.b32.xlu0 %v2212, 40
    %v3331 = vpop.permute.xlu0 %3330
    %3332 = vrot.lane.b32.xlu0 %v2217, 40
    %v3333 = vpop.permute.xlu0 %3332
    %3334 = vrot.lane.b32.xlu0 %v2222, 40
    %v3335 = vpop.permute.xlu0 %3334
    %3336 = vrot.lane.b32.xlu0 %v2227, 40
    %v3337 = vpop.permute.xlu0 %3336
    %v3343 = vsel %vm489, %v3323, 0
    %v3346 = vsel %vm489, %v3324, 0
    %v3349 = vsel %vm489, %v3325, 0
    %v3352 = vsel %vm489, %v3326, 0
    %v3355 = vsel %vm489, %v3327, 0
    %v3357 = vsel %vm575, %v3337, 0
    %3359 = vmatprep.subr.mxu0 0.0
    %3360 = vmatpush1.msra.mxu0 0.0
    %3361 = vmatprep.subr.mxu0 0.0
    %3362 = vmatpush1.msra.mxu0 0.0
    %3363 = vmatprep.subr.mxu0 0.0
    %3364 = vmatpush1.msra.mxu0 0.0
    %3365 = vmatprep.subr.mxu0 0.0
    %3366 = vmatpush1.msra.mxu0 0.0
    %3367 = vmatprep.subr.mxu0 0.0
    %3368 = vmatpush1.msra.mxu0 0.0
    %3369 = vmatprep.subr.mxu0 0.0
    %3370 = vmatpush1.msra.mxu0 0.0
    %3371 = vmatprep.subr.mxu0 0.0
    %3372 = vmatpush1.msra.mxu0 0.0
    %3373 = vmatprep.subr.mxu0 0.0
    %3374 = vmatpush1.msra.mxu0 0.0
    %3375 = vmatprep.subr.mxu0 0.0
    %3376 = vmatpush1.msra.mxu0 0.0
    %3377 = vmatprep.subr.mxu0 0.0
    %3378 = vmatpush1.msra.mxu0 0.0
    %3379 = vmatprep.subr.mxu0 0.0
    %3380 = vmatpush1.msra.mxu0 0.0
    %3381 = vmatprep.subr.mxu0 0.0
    %3382 = vmatpush1.msra.mxu0 %v3357
    %3383 = vmatprep.subr.mxu0 0.0
    %3384 = vmatpush1.msra.mxu0 %v3335
    %3385 = vmatprep.subr.mxu0 0.0
    %3386 = vmatpush1.msra.mxu0 %v3333
    %3387 = vmatprep.subr.mxu0 0.0
    %3388 = vmatpush1.msra.mxu0 %v3331
    %3389 = vmatprep.subr.mxu0 0.0
    %3390 = vmatpush1.msra.mxu0 %v3329
    %3391 = vmatprep.subr.mxu0 0.0
    %3392 = vmatpush2.msra.mxu0 0.0
    %3393 = vmatprep.subr.mxu0 0.0
    %3394 = vmatpush2.msra.mxu0 0.0
    %3395 = vmatprep.subr.mxu0 0.0
    %3396 = vmatpush2.msra.mxu0 0.0
    %3397 = vmatprep.subr.mxu0 0.0
    %3398 = vmatpush2.msra.mxu0 0.0
    %3399 = vmatprep.subr.mxu0 0.0
    %3400 = vmatpush2.msra.mxu0 0.0
    %3401 = vmatprep.subr.mxu0 0.0
    %3402 = vmatpush2.msra.mxu0 0.0
    %3403 = vmatprep.subr.mxu0 0.0
    %3404 = vmatpush2.msra.mxu0 0.0
    %3405 = vmatprep.subr.mxu0 0.0
    %3406 = vmatpush2.msra.mxu0 0.0
    %3407 = vmatprep.subr.mxu0 0.0
    %3408 = vmatpush2.msra.mxu0 0.0
    %3409 = vmatprep.subr.mxu0 0.0
    %3410 = vmatpush2.msra.mxu0 0.0
    %3411 = vmatprep.subr.mxu0 0.0
    %3412 = vmatpush2.msra.mxu0 0.0
    %3413 = vmatprep.subr.mxu0 0.0
    %3414 = vmatpush2.msra.mxu0 0.0
    %3415 = vmatprep.subr.mxu0 0.0
    %3416 = vmatpush2.msra.mxu0 0.0
    %3417 = vmatprep.subr.mxu0 0.0
    %3418 = vmatpush2.msra.mxu0 0.0
    %3419 = vmatprep.subr.mxu0 0.0
    %3420 = vmatpush2.msra.mxu0 0.0
    %3421 = vmatprep.subr.mxu0 0.0
    %3422 = vmatpush2.msra.mxu0 0.0
    %3423 = vmatprep.mubr.f32.mxu0 0.0
    %3424 = vmatmul.mubr.f32.gmra.mxu0 %v3343
    %v3425 = vpop.f32.mrf.mxu0
    %v3426 = vadd.f32 0.0, %v3425
    %v3427 = vpop.f32.mrf.mxu0
    %3428 = vmatprep.mubr.f32.mxu0 0.0
    %3429 = vmatmul.mubr.f32.gmra.mxu0 %v3346
    %v3430 = vpop.f32.mrf.mxu0
    %v3431 = vadd.f32 0.0, %v3430
    %v3432 = vpop.f32.mrf.mxu0
    %3433 = vmatprep.mubr.f32.mxu0 0.0
    %3434 = vmatmul.mubr.f32.gmra.mxu0 %v3349
    %v3435 = vpop.f32.mrf.mxu0
    %v3436 = vadd.f32 0.0, %v3435
    %v3437 = vpop.f32.mrf.mxu0
    %3438 = vmatprep.mubr.f32.mxu0 0.0
    %3439 = vmatmul.mubr.f32.gmra.mxu0 %v3352
    %v3440 = vpop.f32.mrf.mxu0
    %v3441 = vadd.f32 0.0, %v3440
    %v3442 = vpop.f32.mrf.mxu0
    %3443 = vmatprep.mubr.f32.mxu0 0.0
    %3444 = vmatmul.mubr.f32.gmra.mxu0 %v3355
    %v3445 = vpop.f32.mrf.mxu0
    %v3446 = vadd.f32 0.0, %v3445
    %v3447 = vpop.f32.mrf.mxu0
    %3448 = vdwg.mxu0
    %3454 = vrot.lane.b32.xlu0 %v2814, 8
    %v3455 = vpop.permute.xlu0 %3454
    %3456 = vrot.lane.b32.xlu0 %v2819, 8
    %v3457 = vpop.permute.xlu0 %3456
    %3458 = vrot.lane.b32.xlu0 %v2824, 8
    %v3459 = vpop.permute.xlu0 %3458
    %3460 = vrot.lane.b32.xlu0 %v2829, 8
    %v3461 = vpop.permute.xlu0 %3460
    %3462 = vrot.lane.b32.xlu0 %v2834, 8
    %v3463 = vpop.permute.xlu0 %3462
    %3474 = vrot.lane.b32.xlu0 %v3120, 16
    %v3475 = vpop.permute.xlu0 %3474
    %3476 = vrot.lane.b32.xlu0 %v3125, 16
    %v3477 = vpop.permute.xlu0 %3476
    %3478 = vrot.lane.b32.xlu0 %v3130, 16
    %v3479 = vpop.permute.xlu0 %3478
    %3480 = vrot.lane.b32.xlu0 %v3135, 16
    %v3481 = vpop.permute.xlu0 %3480
    %3482 = vrot.lane.b32.xlu0 %v3140, 16
    %v3483 = vpop.permute.xlu0 %3482
    %3494 = vrot.lane.b32.xlu0 %v3426, 24
    %v3495 = vpop.permute.xlu0 %3494
    %3496 = vrot.lane.b32.xlu0 %v3431, 24
    %v3497 = vpop.permute.xlu0 %3496
    %3498 = vrot.lane.b32.xlu0 %v3436, 24
    %v3499 = vpop.permute.xlu0 %3498
    %3500 = vrot.lane.b32.xlu0 %v3441, 24
    %v3501 = vpop.permute.xlu0 %3500
    %3502 = vrot.lane.b32.xlu0 %v3446, 24
    %v3503 = vpop.permute.xlu0 %3502
    %v3509 = vsel %vm378, %v2508, %v3455
    %v3510 = vsel %vm378, %v2513, %v3457
    %v3511 = vsel %vm378, %v2518, %v3459
    %v3512 = vsel %vm378, %v2523, %v3461
    %v3513 = vsel %vm378, %v2528, %v3463
    %v3514 = vsel %vm1651, %v3509, %v3475
    %v3515 = vsel %vm1651, %v3510, %v3477
    %v3516 = vsel %vm1651, %v3511, %v3479
    %v3517 = vsel %vm1651, %v3512, %v3481
    %v3518 = vsel %vm1651, %v3513, %v3483
    %v3519 = vsel %vm1657, %v3514, %v3495
    %v3520 = vsel %vm1657, %v3515, %v3497
    %v3521 = vsel %vm1657, %v3516, %v3499
    %v3522 = vsel %vm1657, %v3517, %v3501
    %v3523 = vsel %vm1657, %v3518, %v3503
    %v3524 = vlaneseq
    %v3525 = vshrl.u32 %v3524, 7
    %v3526 = vsub.s32 0, %v3525
    %v3527 = vrot.slane %v2079, %v3526
    %v3529 = vsel %vm257, %v3519, 0
    %v3532 = vsel %vm257, %v3520, 0
    %v3535 = vsel %vm257, %v3521, 0
    %v3538 = vsel %vm257, %v3522, 0
    %v3541 = vsel %vm257, %v3523, 0
    %3543 = vmatprep.subr.mxu0 0.0
    %3544 = vmatpush1.msra.mxu0 0.0
    %3545 = vmatprep.subr.mxu0 0.0
    %3546 = vmatpush1.msra.mxu0 0.0
    %3547 = vmatprep.subr.mxu0 0.0
    %3548 = vmatpush1.msra.mxu0 0.0
    %3549 = vmatprep.subr.mxu0 0.0
    %3550 = vmatpush1.msra.mxu0 0.0
    %3551 = vmatprep.subr.mxu0 0.0
    %3552 = vmatpush1.msra.mxu0 0.0
    %3553 = vmatprep.subr.mxu0 0.0
    %3554 = vmatpush1.msra.mxu0 0.0
    %3555 = vmatprep.subr.mxu0 0.0
    %3556 = vmatpush1.msra.mxu0 0.0
    %3557 = vmatprep.subr.mxu0 0.0
    %3558 = vmatpush1.msra.mxu0 0.0
    %3559 = vmatprep.subr.mxu0 0.0
    %3560 = vmatpush1.msra.mxu0 0.0
    %3561 = vmatprep.subr.mxu0 0.0
    %3562 = vmatpush1.msra.mxu0 0.0
    %3563 = vmatprep.subr.mxu0 0.0
    %3564 = vmatpush1.msra.mxu0 0.0
    %3565 = vmatprep.subr.mxu0 0.0
    %3566 = vmatpush1.msra.mxu0 0.0
    %3567 = vmatprep.subr.mxu0 0.0
    %3568 = vmatpush1.msra.mxu0 %v2077
    %3569 = vmatprep.subr.mxu0 0.0
    %3570 = vmatpush1.msra.mxu0 %v2076
    %3571 = vmatprep.subr.mxu0 0.0
    %3572 = vmatpush1.msra.mxu0 %v2075
    %3573 = vmatprep.subr.mxu0 0.0
    %3574 = vmatpush1.msra.mxu0 %v2074
    %3575 = vmatprep.subr.mxu0 0.0
    %3576 = vmatpush2.msra.mxu0 0.0
    %3577 = vmatprep.subr.mxu0 0.0
    %3578 = vmatpush2.msra.mxu0 0.0
    %3579 = vmatprep.subr.mxu0 0.0
    %3580 = vmatpush2.msra.mxu0 0.0
    %3581 = vmatprep.subr.mxu0 0.0
    %3582 = vmatpush2.msra.mxu0 0.0
    %3583 = vmatprep.subr.mxu0 0.0
    %3584 = vmatpush2.msra.mxu0 0.0
    %3585 = vmatprep.subr.mxu0 0.0
    %3586 = vmatpush2.msra.mxu0 0.0
    %3587 = vmatprep.subr.mxu0 0.0
    %3588 = vmatpush2.msra.mxu0 0.0
    %3589 = vmatprep.subr.mxu0 0.0
    %3590 = vmatpush2.msra.mxu0 0.0
    %3591 = vmatprep.subr.mxu0 0.0
    %3592 = vmatpush2.msra.mxu0 0.0
    %3593 = vmatprep.subr.mxu0 0.0
    %3594 = vmatpush2.msra.mxu0 0.0
    %3595 = vmatprep.subr.mxu0 0.0
    %3596 = vmatpush2.msra.mxu0 0.0
    %3597 = vmatprep.subr.mxu0 0.0
    %3598 = vmatpush2.msra.mxu0 0.0
    %3599 = vmatprep.subr.mxu0 0.0
    %3600 = vmatpush2.msra.mxu0 0.0
    %3601 = vmatprep.subr.mxu0 0.0
    %3602 = vmatpush2.msra.mxu0 0.0
    %3603 = vmatprep.subr.mxu0 0.0
    %3604 = vmatpush2.msra.mxu0 0.0
    %3605 = vmatprep.subr.mxu0 0.0
    %3606 = vmatpush2.msra.mxu0 0.0
    %3607 = vmatprep.mubr.f32.mxu0 0.0
    %3608 = vmatmul.mubr.f32.gmra.mxu0 %v3529
    %v3609 = vpop.f32.mrf.mxu0
    %v3610 = vadd.f32 %v3527, %v3609
    %v3611 = vpop.f32.mrf.mxu0
    %3612 = vmatprep.mubr.f32.mxu0 0.0
    %3613 = vmatmul.mubr.f32.gmra.mxu0 %v3532
    %v3614 = vpop.f32.mrf.mxu0
    %v3615 = vadd.f32 %v3527, %v3614
    %v3616 = vpop.f32.mrf.mxu0
    %3617 = vmatprep.mubr.f32.mxu0 0.0
    %3618 = vmatmul.mubr.f32.gmra.mxu0 %v3535
    %v3619 = vpop.f32.mrf.mxu0
    %v3620 = vadd.f32 %v3527, %v3619
    %v3621 = vpop.f32.mrf.mxu0
    %3622 = vmatprep.mubr.f32.mxu0 0.0
    %3623 = vmatmul.mubr.f32.gmra.mxu0 %v3538
    %v3624 = vpop.f32.mrf.mxu0
    %v3625 = vadd.f32 %v3527, %v3624
    %v3626 = vpop.f32.mrf.mxu0
    %3627 = vmatprep.mubr.f32.mxu0 0.0
    %3628 = vmatmul.mubr.f32.gmra.mxu0 %v3541
    %v3629 = vpop.f32.mrf.mxu0
    %v3630 = vadd.f32 %v3527, %v3629
    %v3631 = vpop.f32.mrf.mxu0
    %3632 = vdwg.mxu0
    %v3633 = vtanh.pop %v3610
    %v3634 = vtanh.pop %v3615
    %v3635 = vtanh.pop %v3620
    %v3636 = vtanh.pop %v3625
    %v3637 = vtanh.pop %v3630
    %v3638 = vmul.f32 %v2104, %v3633
    %v3639 = vmul.f32 %v2104, %v3634
    %v3640 = vmul.f32 %v2104, %v3635
    %v3641 = vmul.f32 %v2104, %v3636
    %v3642 = vmul.f32 %v2104, %v3637
    %v3643 = vadd.f32 %v3638, %v2113
    %v3644 = vadd.f32 %v3639, %v2113
    %v3645 = vadd.f32 %v3640, %v2113
    %v3646 = vadd.f32 %v3641, %v2113
    %v3647 = vadd.f32 %v3642, %v2113
    %v3648 = vadd.f32 %v2061, %v3643
    %v3649 = vadd.f32 %v2062, %v3644
    %v3650 = vadd.f32 %v2063, %v3645
    %v3651 = vadd.f32 %v2064, %v3646
    %v3652 = vadd.f32 %v2065, %v3647
    %v3654 = vlaneseq
    %v3655 = vshrl.u32 %v3654, 7
    %v3656 = vsub.s32 0, %v3655
    %v3657 = vrot.slane %v2086, %v3656
    %v3660 = vsel %vm257, %v3648, 0
    %v3663 = vsel %vm257, %v3649, 0
    %v3666 = vsel %vm257, %v3650, 0
    %v3669 = vsel %vm257, %v3651, 0
    %v3672 = vsel %vm257, %v3652, 0
    %3674 = vmatprep.subr.mxu0 0.0
    %3675 = vmatpush1.msra.mxu0 0.0
    %3676 = vmatprep.subr.mxu0 0.0
    %3677 = vmatpush1.msra.mxu0 0.0
    %3678 = vmatprep.subr.mxu0 0.0
    %3679 = vmatpush1.msra.mxu0 0.0
    %3680 = vmatprep.subr.mxu0 0.0
    %3681 = vmatpush1.msra.mxu0 0.0
    %3682 = vmatprep.subr.mxu0 0.0
    %3683 = vmatpush1.msra.mxu0 0.0
    %3684 = vmatprep.subr.mxu0 0.0
    %3685 = vmatpush1.msra.mxu0 0.0
    %3686 = vmatprep.subr.mxu0 0.0
    %3687 = vmatpush1.msra.mxu0 0.0
    %3688 = vmatprep.subr.mxu0 0.0
    %3689 = vmatpush1.msra.mxu0 0.0
    %3690 = vmatprep.subr.mxu0 0.0
    %3691 = vmatpush1.msra.mxu0 0.0
    %3692 = vmatprep.subr.mxu0 0.0
    %3693 = vmatpush1.msra.mxu0 0.0
    %3694 = vmatprep.subr.mxu0 0.0
    %3695 = vmatpush1.msra.mxu0 0.0
    %3696 = vmatprep.subr.mxu0 0.0
    %3697 = vmatpush1.msra.mxu0 0.0
    %3698 = vmatprep.subr.mxu0 0.0
    %3699 = vmatpush1.msra.mxu0 %v2084
    %3700 = vmatprep.subr.mxu0 0.0
    %3701 = vmatpush1.msra.mxu0 %v2083
    %3702 = vmatprep.subr.mxu0 0.0
    %3703 = vmatpush1.msra.mxu0 %v2082
    %3704 = vmatprep.subr.mxu0 0.0
    %3705 = vmatpush1.msra.mxu0 %v2081
    %3706 = vmatprep.subr.mxu0 0.0
    %3707 = vmatpush2.msra.mxu0 0.0
    %3708 = vmatprep.subr.mxu0 0.0
    %3709 = vmatpush2.msra.mxu0 0.0
    %3710 = vmatprep.subr.mxu0 0.0
    %3711 = vmatpush2.msra.mxu0 0.0
    %3712 = vmatprep.subr.mxu0 0.0
    %3713 = vmatpush2.msra.mxu0 0.0
    %3714 = vmatprep.subr.mxu0 0.0
    %3715 = vmatpush2.msra.mxu0 0.0
    %3716 = vmatprep.subr.mxu0 0.0
    %3717 = vmatpush2.msra.mxu0 0.0
    %3718 = vmatprep.subr.mxu0 0.0
    %3719 = vmatpush2.msra.mxu0 0.0
    %3720 = vmatprep.subr.mxu0 0.0
    %3721 = vmatpush2.msra.mxu0 0.0
    %3722 = vmatprep.subr.mxu0 0.0
    %3723 = vmatpush2.msra.mxu0 0.0
    %3724 = vmatprep.subr.mxu0 0.0
    %3725 = vmatpush2.msra.mxu0 0.0
    %3726 = vmatprep.subr.mxu0 0.0
    %3727 = vmatpush2.msra.mxu0 0.0
    %3728 = vmatprep.subr.mxu0 0.0
    %3729 = vmatpush2.msra.mxu0 0.0
    %3730 = vmatprep.subr.mxu0 0.0
    %3731 = vmatpush2.msra.mxu0 0.0
    %3732 = vmatprep.subr.mxu0 0.0
    %3733 = vmatpush2.msra.mxu0 0.0
    %3734 = vmatprep.subr.mxu0 0.0
    %3735 = vmatpush2.msra.mxu0 0.0
    %3736 = vmatprep.subr.mxu0 0.0
    %3737 = vmatpush2.msra.mxu0 0.0
    %3738 = vmatprep.mubr.f32.mxu0 0.0
    %3739 = vmatmul.mubr.f32.gmra.mxu0 %v3660
    %v3740 = vpop.f32.mrf.mxu0
    %v3741 = vadd.f32 %v3657, %v3740
    %v3742 = vpop.f32.mrf.mxu0
    %3743 = vmatprep.mubr.f32.mxu0 0.0
    %3744 = vmatmul.mubr.f32.gmra.mxu0 %v3663
    %v3745 = vpop.f32.mrf.mxu0
    %v3746 = vadd.f32 %v3657, %v3745
    %v3747 = vpop.f32.mrf.mxu0
    %3748 = vmatprep.mubr.f32.mxu0 0.0
    %3749 = vmatmul.mubr.f32.gmra.mxu0 %v3666
    %v3750 = vpop.f32.mrf.mxu0
    %v3751 = vadd.f32 %v3657, %v3750
    %v3752 = vpop.f32.mrf.mxu0
    %3753 = vmatprep.mubr.f32.mxu0 0.0
    %3754 = vmatmul.mubr.f32.gmra.mxu0 %v3669
    %v3755 = vpop.f32.mrf.mxu0
    %v3756 = vadd.f32 %v3657, %v3755
    %v3757 = vpop.f32.mrf.mxu0
    %3758 = vmatprep.mubr.f32.mxu0 0.0
    %3759 = vmatmul.mubr.f32.gmra.mxu0 %v3672
    %v3760 = vpop.f32.mrf.mxu0
    %v3761 = vadd.f32 %v3657, %v3760
    %v3762 = vpop.f32.mrf.mxu0
    %3763 = vdwg.mxu0
    %v3764 = vmul.f32 %v3741, 0.5
    %v3765 = vmul.f32 %v3746, 0.5
    %v3766 = vmul.f32 %v3751, 0.5
    %v3767 = vmul.f32 %v3756, 0.5
    %v3768 = vmul.f32 %v3761, 0.5
    %v3769 = vmul.f32 %v3741, %v1908
    %v3770 = vmul.f32 %v3746, %v1908
    %v3771 = vmul.f32 %v3751, %v1908
    %v3772 = vmul.f32 %v3756, %v1908
    %v3773 = vmul.f32 %v3761, %v1908
    %v3774 = verf.f32.pop %v3769
    %v3775 = verf.f32.pop %v3770
    %v3776 = verf.f32.pop %v3771
    %v3777 = verf.f32.pop %v3772
    %v3778 = verf.f32.pop %v3773
    %v3779 = vadd.f32 %v3774, 1.0
    %v3780 = vadd.f32 %v3775, 1.0
    %v3781 = vadd.f32 %v3776, 1.0
    %v3782 = vadd.f32 %v3777, 1.0
    %v3783 = vadd.f32 %v3778, 1.0
    %v3784 = vmul.f32 %v3764, %v3779
    %v3785 = vmul.f32 %v3765, %v3780
    %v3786 = vmul.f32 %v3766, %v3781
    %v3787 = vmul.f32 %v3767, %v3782
    %v3788 = vmul.f32 %v3768, %v3783
    %v3789 = vlaneseq
    %v3790 = vshrl.u32 %v3789, 7
    %v3791 = vsub.s32 3, %v3790
    %v3792 = vrot.slane %v2079, %v3791
    %v3794 = vsel %vm69, %v3784, 0
    %v3797 = vsel %vm69, %v3785, 0
    %v3800 = vsel %vm69, %v3786, 0
    %v3803 = vsel %vm69, %v3787, 0
    %v3806 = vsel %vm69, %v3788, 0
    %3808 = vmatprep.subr.mxu0 0.0
    %3809 = vmatpush1.msra.mxu0 0.0
    %3810 = vmatprep.subr.mxu0 0.0
    %3811 = vmatpush1.msra.mxu0 0.0
    %3812 = vmatprep.subr.mxu0 0.0
    %3813 = vmatpush1.msra.mxu0 0.0
    %3814 = vmatprep.subr.mxu0 0.0
    %3815 = vmatpush1.msra.mxu0 0.0
    %3816 = vmatprep.subr.mxu0 0.0
    %3817 = vmatpush1.msra.mxu0 0.0
    %3818 = vmatprep.subr.mxu0 0.0
    %3819 = vmatpush1.msra.mxu0 0.0
    %3820 = vmatprep.subr.mxu0 0.0
    %3821 = vmatpush1.msra.mxu0 0.0
    %3822 = vmatprep.subr.mxu0 0.0
    %3823 = vmatpush1.msra.mxu0 0.0
    %3824 = vmatprep.subr.mxu0 0.0
    %3825 = vmatpush1.msra.mxu0 %v2095
    %3826 = vmatprep.subr.mxu0 0.0
    %3827 = vmatpush1.msra.mxu0 %v2094
    %3828 = vmatprep.subr.mxu0 0.0
    %3829 = vmatpush1.msra.mxu0 %v2093
    %3830 = vmatprep.subr.mxu0 0.0
    %3831 = vmatpush1.msra.mxu0 %v2092
    %3832 = vmatprep.subr.mxu0 0.0
    %3833 = vmatpush1.msra.mxu0 %v2091
    %3834 = vmatprep.subr.mxu0 0.0
    %3835 = vmatpush1.msra.mxu0 %v2090
    %3836 = vmatprep.subr.mxu0 0.0
    %3837 = vmatpush1.msra.mxu0 %v2089
    %3838 = vmatprep.subr.mxu0 0.0
    %3839 = vmatpush1.msra.mxu0 %v2088
    %3840 = vmatprep.subr.mxu0 0.0
    %3841 = vmatpush2.msra.mxu0 0.0
    %3842 = vmatprep.subr.mxu0 0.0
    %3843 = vmatpush2.msra.mxu0 0.0
    %3844 = vmatprep.subr.mxu0 0.0
    %3845 = vmatpush2.msra.mxu0 0.0
    %3846 = vmatprep.subr.mxu0 0.0
    %3847 = vmatpush2.msra.mxu0 0.0
    %3848 = vmatprep.subr.mxu0 0.0
    %3849 = vmatpush2.msra.mxu0 0.0
    %3850 = vmatprep.subr.mxu0 0.0
    %3851 = vmatpush2.msra.mxu0 0.0
    %3852 = vmatprep.subr.mxu0 0.0
    %3853 = vmatpush2.msra.mxu0 0.0
    %3854 = vmatprep.subr.mxu0 0.0
    %3855 = vmatpush2.msra.mxu0 0.0
    %3856 = vmatprep.subr.mxu0 0.0
    %3857 = vmatpush2.msra.mxu0 0.0
    %3858 = vmatprep.subr.mxu0 0.0
    %3859 = vmatpush2.msra.mxu0 0.0
    %3860 = vmatprep.subr.mxu0 0.0
    %3861 = vmatpush2.msra.mxu0 0.0
    %3862 = vmatprep.subr.mxu0 0.0
    %3863 = vmatpush2.msra.mxu0 0.0
    %3864 = vmatprep.subr.mxu0 0.0
    %3865 = vmatpush2.msra.mxu0 0.0
    %3866 = vmatprep.subr.mxu0 0.0
    %3867 = vmatpush2.msra.mxu0 0.0
    %3868 = vmatprep.subr.mxu0 0.0
    %3869 = vmatpush2.msra.mxu0 0.0
    %3870 = vmatprep.subr.mxu0 0.0
    %3871 = vmatpush2.msra.mxu0 0.0
    %3872 = vmatprep.mubr.f32.mxu0 0.0
    %3873 = vmatmul.mubr.f32.gmra.mxu0 %v3794
    %v3874 = vpop.f32.mrf.mxu0
    %v3875 = vadd.f32 %v3792, %v3874
    %v3876 = vpop.f32.mrf.mxu0
    %3877 = vmatprep.mubr.f32.mxu0 0.0
    %3878 = vmatmul.mubr.f32.gmra.mxu0 %v3797
    %v3879 = vpop.f32.mrf.mxu0
    %v3880 = vadd.f32 %v3792, %v3879
    %v3881 = vpop.f32.mrf.mxu0
    %3882 = vmatprep.mubr.f32.mxu0 0.0
    %3883 = vmatmul.mubr.f32.gmra.mxu0 %v3800
    %v3884 = vpop.f32.mrf.mxu0
    %v3885 = vadd.f32 %v3792, %v3884
    %v3886 = vpop.f32.mrf.mxu0
    %3887 = vmatprep.mubr.f32.mxu0 0.0
    %3888 = vmatmul.mubr.f32.gmra.mxu0 %v3803
    %v3889 = vpop.f32.mrf.mxu0
    %v3890 = vadd.f32 %v3792, %v3889
    %v3891 = vpop.f32.mrf.mxu0
    %3892 = vmatprep.mubr.f32.mxu0 0.0
    %3893 = vmatmul.mubr.f32.gmra.mxu0 %v3806
    %v3894 = vpop.f32.mrf.mxu0
    %v3895 = vadd.f32 %v3792, %v3894
    %v3896 = vpop.f32.mrf.mxu0
    %3897 = vdwg.mxu0
    %v3898 = vtanh.pop %v3875
    %v3899 = vtanh.pop %v3880
    %v3900 = vtanh.pop %v3885
    %v3901 = vtanh.pop %v3890
    %v3902 = vtanh.pop %v3895
    %v3903 = vlaneseq
    %v3904 = vshrl.u32 %v3903, 7
    %v3905 = vsub.s32 4, %v3904
    %v3906 = vrot.slane %v2079, %v3905
    %v3907 = vmul.f32 %v3906, %v3898
    %v3908 = vmul.f32 %v3906, %v3899
    %v3909 = vmul.f32 %v3906, %v3900
    %v3910 = vmul.f32 %v3906, %v3901
    %v3911 = vmul.f32 %v3906, %v3902
    %v3912 = vlaneseq
    %v3913 = vshrl.u32 %v3912, 7
    %v3914 = vsub.s32 5, %v3913
    %v3915 = vrot.slane %v2079, %v3914
    %v3916 = vadd.f32 %v3907, %v3915
    %v3917 = vadd.f32 %v3908, %v3915
    %v3918 = vadd.f32 %v3909, %v3915
    %v3919 = vadd.f32 %v3910, %v3915
    %v3920 = vadd.f32 %v3911, %v3915
    %v3921 = vadd.f32 %v3648, %v3916
    %v3922 = vadd.f32 %v3649, %v3917
    %v3923 = vadd.f32 %v3650, %v3918
    %v3924 = vadd.f32 %v3651, %v3919
    %v3925 = vadd.f32 %v3652, %v3920
    %v3926 = vadd.f32 %v195, %v3921
    %v3927 = vadd.f32 %v196, %v3922
    %v3928 = vadd.f32 %v197, %v3923
    %v3929 = vadd.f32 %v198, %v3924
    %v3930 = vadd.f32 %v199, %v3925
    %v3931 = vld [vmem:[%s5] sm:$0x3]
    %v3933 = vsel %vm489, %v3931, 0
    %v3936 = vsel %vm575, %v3930, 0
    %3938 = vmatprep.subr.mxu0 0.0
    %3939 = vmatpush1.msra.mxu0 0.0
    %3940 = vmatprep.subr.mxu0 0.0
    %3941 = vmatpush1.msra.mxu0 0.0
    %3942 = vmatprep.subr.mxu0 0.0
    %3943 = vmatpush1.msra.mxu0 0.0
    %3944 = vmatprep.subr.mxu0 0.0
    %3945 = vmatpush1.msra.mxu0 0.0
    %3946 = vmatprep.subr.mxu0 0.0
    %3947 = vmatpush1.msra.mxu0 0.0
    %3948 = vmatprep.subr.mxu0 0.0
    %3949 = vmatpush1.msra.mxu0 0.0
    %3950 = vmatprep.subr.mxu0 0.0
    %3951 = vmatpush1.msra.mxu0 0.0
    %3952 = vmatprep.subr.mxu0 0.0
    %3953 = vmatpush1.msra.mxu0 0.0
    %3954 = vmatprep.subr.mxu0 0.0
    %3955 = vmatpush1.msra.mxu0 0.0
    %3956 = vmatprep.subr.mxu0 0.0
    %3957 = vmatpush1.msra.mxu0 0.0
    %3958 = vmatprep.subr.mxu0 0.0
    %3959 = vmatpush1.msra.mxu0 0.0
    %3960 = vmatprep.subr.mxu0 0.0
    %3961 = vmatpush1.msra.mxu0 %v3936
    %3962 = vmatprep.subr.mxu0 0.0
    %3963 = vmatpush1.msra.mxu0 %v3929
    %3964 = vmatprep.subr.mxu0 0.0
    %3965 = vmatpush1.msra.mxu0 %v3928
    %3966 = vmatprep.subr.mxu0 0.0
    %3967 = vmatpush1.msra.mxu0 %v3927
    %3968 = vmatprep.subr.mxu0 0.0
    %3969 = vmatpush1.msra.mxu0 %v3926
    %3970 = vmatprep.subr.mxu0 0.0
    %3971 = vmatpush2.msra.mxu0 0.0
    %3972 = vmatprep.subr.mxu0 0.0
    %3973 = vmatpush2.msra.mxu0 0.0
    %3974 = vmatprep.subr.mxu0 0.0
    %3975 = vmatpush2.msra.mxu0 0.0
    %3976 = vmatprep.subr.mxu0 0.0
    %3977 = vmatpush2.msra.mxu0 0.0
    %3978 = vmatprep.subr.mxu0 0.0
    %3979 = vmatpush2.msra.mxu0 0.0
    %3980 = vmatprep.subr.mxu0 0.0
    %3981 = vmatpush2.msra.mxu0 0.0
    %3982 = vmatprep.subr.mxu0 0.0
    %3983 = vmatpush2.msra.mxu0 0.0
    %3984 = vmatprep.subr.mxu0 0.0
    %3985 = vmatpush2.msra.mxu0 0.0
    %3986 = vmatprep.subr.mxu0 0.0
    %3987 = vmatpush2.msra.mxu0 0.0
    %3988 = vmatprep.subr.mxu0 0.0
    %3989 = vmatpush2.msra.mxu0 0.0
    %3990 = vmatprep.subr.mxu0 0.0
    %3991 = vmatpush2.msra.mxu0 0.0
    %3992 = vmatprep.subr.mxu0 0.0
    %3993 = vmatpush2.msra.mxu0 0.0
    %3994 = vmatprep.subr.mxu0 0.0
    %3995 = vmatpush2.msra.mxu0 0.0
    %3996 = vmatprep.subr.mxu0 0.0
    %3997 = vmatpush2.msra.mxu0 0.0
    %3998 = vmatprep.subr.mxu0 0.0
    %3999 = vmatpush2.msra.mxu0 0.0
    %4000 = vmatprep.subr.mxu0 0.0
    %4001 = vmatpush2.msra.mxu0 0.0
    %4002 = vmatprep.mubr.f32.mxu0 0.0
    %4003 = vmatmul.mubr.f32.gmra.mxu0 %v3933
    %v4004 = vpop.f32.mrf.mxu0
    %v4005 = vadd.f32 0.0, %v4004
    %v4006 = vpop.f32.mrf.mxu0
    %4007 = vdwg.mxu0
    %v4008 = vld [vmem:[%s13] sm:$0xff]
    %v4009 = vld [vmem:[%s13 + $0x8] sm:$0xff]
    %v4010 = vld [vmem:[%s13 + $0x10] sm:$0xff]
    %v4011 = vld [vmem:[%s13 + $0x18] sm:$0xff]
    %v4012 = vld [vmem:[%s14] sm:$0x1]
    %v4014 = vlaneseq
    %v4015 = vshrl.u32 %v4014, 7
    %v4016 = vsub.s32 0, %v4015
    %v4017 = vrot.slane %v4012, %v4016
    %v4020 = vsel %vm257, %v4005, 0
    %4022 = vmatprep.subr.mxu0 0.0
    %4023 = vmatpush1.msra.mxu0 0.0
    %4024 = vmatprep.subr.mxu0 0.0
    %4025 = vmatpush1.msra.mxu0 0.0
    %4026 = vmatprep.subr.mxu0 0.0
    %4027 = vmatpush1.msra.mxu0 0.0
    %4028 = vmatprep.subr.mxu0 0.0
    %4029 = vmatpush1.msra.mxu0 0.0
    %4030 = vmatprep.subr.mxu0 0.0
    %4031 = vmatpush1.msra.mxu0 0.0
    %4032 = vmatprep.subr.mxu0 0.0
    %4033 = vmatpush1.msra.mxu0 0.0
    %4034 = vmatprep.subr.mxu0 0.0
    %4035 = vmatpush1.msra.mxu0 0.0
    %4036 = vmatprep.subr.mxu0 0.0
    %4037 = vmatpush1.msra.mxu0 0.0
    %4038 = vmatprep.subr.mxu0 0.0
    %4039 = vmatpush1.msra.mxu0 0.0
    %4040 = vmatprep.subr.mxu0 0.0
    %4041 = vmatpush1.msra.mxu0 0.0
    %4042 = vmatprep.subr.mxu0 0.0
    %4043 = vmatpush1.msra.mxu0 0.0
    %4044 = vmatprep.subr.mxu0 0.0
    %4045 = vmatpush1.msra.mxu0 0.0
    %4046 = vmatprep.subr.mxu0 0.0
    %4047 = vmatpush1.msra.mxu0 %v4011
    %4048 = vmatprep.subr.mxu0 0.0
    %4049 = vmatpush1.msra.mxu0 %v4010
    %4050 = vmatprep.subr.mxu0 0.0
    %4051 = vmatpush1.msra.mxu0 %v4009
    %4052 = vmatprep.subr.mxu0 0.0
    %4053 = vmatpush1.msra.mxu0 %v4008
    %4054 = vmatprep.subr.mxu0 0.0
    %4055 = vmatpush2.msra.mxu0 0.0
    %4056 = vmatprep.subr.mxu0 0.0
    %4057 = vmatpush2.msra.mxu0 0.0
    %4058 = vmatprep.subr.mxu0 0.0
    %4059 = vmatpush2.msra.mxu0 0.0
    %4060 = vmatprep.subr.mxu0 0.0
    %4061 = vmatpush2.msra.mxu0 0.0
    %4062 = vmatprep.subr.mxu0 0.0
    %4063 = vmatpush2.msra.mxu0 0.0
    %4064 = vmatprep.subr.mxu0 0.0
    %4065 = vmatpush2.msra.mxu0 0.0
    %4066 = vmatprep.subr.mxu0 0.0
    %4067 = vmatpush2.msra.mxu0 0.0
    %4068 = vmatprep.subr.mxu0 0.0
    %4069 = vmatpush2.msra.mxu0 0.0
    %4070 = vmatprep.subr.mxu0 0.0
    %4071 = vmatpush2.msra.mxu0 0.0
    %4072 = vmatprep.subr.mxu0 0.0
    %4073 = vmatpush2.msra.mxu0 0.0
    %4074 = vmatprep.subr.mxu0 0.0
    %4075 = vmatpush2.msra.mxu0 0.0
    %4076 = vmatprep.subr.mxu0 0.0
    %4077 = vmatpush2.msra.mxu0 0.0
    %4078 = vmatprep.subr.mxu0 0.0
    %4079 = vmatpush2.msra.mxu0 0.0
    %4080 = vmatprep.subr.mxu0 0.0
    %4081 = vmatpush2.msra.mxu0 0.0
    %4082 = vmatprep.subr.mxu0 0.0
    %4083 = vmatpush2.msra.mxu0 0.0
    %4084 = vmatprep.subr.mxu0 0.0
    %4085 = vmatpush2.msra.mxu0 0.0
    %4086 = vmatprep.mubr.f32.mxu0 0.0
    %4087 = vmatmul.mubr.f32.gmra.mxu0 %v4020
    %v4088 = vpop.f32.mrf.mxu0
    %v4089 = vadd.f32 %v4017, %v4088
    %v4090 = vpop.f32.mrf.mxu0
    %4091 = vdwg.mxu0
    %vm4092 = vcmask 58368
    %4093 = vst.msk [vmem:[#allocation2] sm:$0x3] %vm4092, %v4089
    // Predicated region
    $region62: #{forward.1} parent=1 // pred_check
      _
    $region63: #{forward.1} parent=1 // pred_check_branch
      %4095 = sbr.rel (0) target = $region65
    $region64: #{forward.1} parent=1 // pred_region
      %s4097 = ssub.s32 32, 32
      %4098 = vsyncadd [#allocation3], %s4097
      %s4100 = sshll.u32 [#allocation2], 4
      %s4101 = int_to_ptr.vmem [resolvable:$true] %s4100
      %4103 = dma.vmem_to_hbm [thread:$0]  %s4101, 32, %s15, [#allocation3]
    $region65: #{forward.1} parent=1 // pred_fallthru
      _
    // Predicated region
    $region66: #{forward.1} parent=1 // pred_check
      _
    $region67: #{forward.1} parent=1 // pred_check_branch
      %4105 = sbr.rel (0) target = $region69
    $region68: #{forward.1} parent=1 // pred_region
      %4106 = dma.done [#allocation3], 32
    $region69: #{forward.1} parent=1 // pred_fallthru
      _
    %4107 = vsyncpa [#allocation3], 1

</llo_original>
